<compile_context>
chip_gen: v6e
topology: v6e:2x2x1
jax: 0.10.0
libtpu: 0.0.40
codegen_flags: <defaults>
</compile_context>

<pallas_src>
import numpy as np
import jax
import jax.numpy as jnp
from jax import lax
from jax.experimental import pallas as pl
from jax.experimental.pallas import tpu as pltpu


# ----------------------------------------------------------------------------
# Shared LSTM cell on fused gates.  gates: (B, 4H) f32, packed (i, f, o, g):
# one sigmoid pass over [0, 3H), one tanh pass over [3H, 4H).
# ----------------------------------------------------------------------------
def _lstm_cell(gates, c, hidden):
    h3 = 3 * hidden
    sig = jax.nn.sigmoid(gates[:, :h3])
    i_g = sig[:, :hidden]
    f_g = sig[:, hidden:2 * hidden]
    o_g = sig[:, 2 * hidden:h3]
    g_g = jnp.tanh(gates[:, h3:])
    c_new = f_g * c + i_g * g_g
    h_new = o_g * jnp.tanh(c_new)
    return h_new, c_new


# ----------------------------------------------------------------------------
# Pallas kernel 1: one bidirectional LSTM layer over a pre-projected gate
# sequence g (T, B, 8H) = [x@W_ih_f + b_f | x@W_ih_b + b_b] (bf16).  Both
# direction recurrences run interleaved in a single loop; the kernel writes a
# single (T, B, 2H) bf16 output (fwd half / bwd half).
# ----------------------------------------------------------------------------
def _bilstm_seq_kernel(g_ref, whh_f_ref, whh_b_ref, o_ref):
    T, B, G2 = g_ref.shape
    H4 = G2 // 2
    H = H4 // 4

    whh_f = whh_f_ref[...]          # (H, 4H) bf16 — load once, reuse every step
    whh_b = whh_b_ref[...]
    zeros = jnp.zeros((B, H), jnp.float32)

    def step(s, carry):
        h_f, c_f, h_b, c_b = carry
        rs = T - 1 - s
        # two independent direction chains per step -> ILP hides MXU/EUP latency
        gates_f = (g_ref[s, :, :H4].astype(jnp.float32)
                   + jnp.dot(h_f.astype(jnp.bfloat16), whh_f,
                             preferred_element_type=jnp.float32))
        gates_b = (g_ref[rs, :, H4:].astype(jnp.float32)
                   + jnp.dot(h_b.astype(jnp.bfloat16), whh_b,
                             preferred_element_type=jnp.float32))
        h_f, c_f = _lstm_cell(gates_f, c_f, H)
        h_b, c_b = _lstm_cell(gates_b, c_b, H)
        o_ref[s, :, :H] = h_f.astype(o_ref.dtype)
        o_ref[rs, :, H:] = h_b.astype(o_ref.dtype)
        return h_f, c_f, h_b, c_b

    lax.fori_loop(0, T, step, (zeros, zeros, zeros, zeros), unroll=min(T, 8))


# ----------------------------------------------------------------------------
# Pallas kernel 2: layer-1 bidirectional recurrence keeping ONLY the final
# hidden states, with (a) the layer-1 input projection fused in-kernel (gates
# live only in VMEM scratch) and (b) the classifier head fused:
# relu(concat(h_f, h_b) @ W1 + b1) @ W2 + b2, log_softmax.
# ----------------------------------------------------------------------------
def _bilstm_final_head_kernel(x_ref, wih_ref, bih_ref, whh_f_ref, whh_b_ref,
                              w1_ref, b1_ref, w2_ref, b2_ref,
                              logprob_ref, logits_ref, g_scr):
    T, B, H2 = x_ref.shape
    H = H2 // 2
    H4 = 4 * H

    # Fused input projection: one MXU GEMM over the whole sequence; the
    # (T, B, 8H) gate tensor never leaves VMEM.
    x_all = x_ref[...].reshape(T * B, H2)
    g_all = jnp.dot(x_all, wih_ref[...], preferred_element_type=jnp.float32)
    g_all = g_all + bih_ref[...]
    g_scr[...] = g_all.reshape(T, B, 2 * H4).astype(g_scr.dtype)

    whh_f = whh_f_ref[...]
    whh_b = whh_b_ref[...]
    zeros = jnp.zeros((B, H), jnp.float32)

    def step(s, carry):
        h_f, c_f, h_b, c_b = carry
        rs = T - 1 - s
        gates_f = (g_scr[s, :, :H4].astype(jnp.float32)
                   + jnp.dot(h_f.astype(jnp.bfloat16), whh_f,
                             preferred_element_type=jnp.float32))
        gates_b = (g_scr[rs, :, H4:].astype(jnp.float32)
                   + jnp.dot(h_b.astype(jnp.bfloat16), whh_b,
                             preferred_element_type=jnp.float32))
        h_f, c_f = _lstm_cell(gates_f, c_f, H)
        h_b, c_b = _lstm_cell(gates_b, c_b, H)
        return h_f, c_f, h_b, c_b

    h_f, _, h_b, _ = lax.fori_loop(0, T, step, (zeros, zeros, zeros, zeros),
                                   unroll=min(T, 8))

    # classifier head: concat(h_f, h_b) @ W1 expressed as split GEMMs.
    w1 = w1_ref[...]                                            # (2H, E) f32
    hdn = (jnp.dot(h_f, w1[:H, :], preferred_element_type=jnp.float32)
           + jnp.dot(h_b, w1[H:, :], preferred_element_type=jnp.float32)
           + b1_ref[...])
    hdn = jnp.maximum(hdn, 0.0)                                 # relu
    logits = jnp.dot(hdn, w2_ref[...], preferred_element_type=jnp.float32) + b2_ref[...]
    m = jnp.max(logits, axis=-1, keepdims=True)
    lse = jnp.log(jnp.sum(jnp.exp(logits - m), axis=-1, keepdims=True)) + m
    logprob_ref[...] = logits - lse
    logits_ref[...] = logits


# ----------------------------------------------------------------------------
# Wrappers
# ----------------------------------------------------------------------------
def _vmem_spec():
    return pl.BlockSpec(memory_space=pltpu.MemorySpace.VMEM)


def _vmem_limit_bytes(resident_bytes):
    # Size the scoped-VMEM limit to the actual resident blocks (+ headroom),
    # clamped to what every chip generation (v5e/v6e/v7x) can provide.
    return int(min(max(2 * resident_bytes + (8 << 20), 32 << 20), 64 << 20))


def bilstm_layer_seq(gates_tb8h, whh_f, whh_b):
    """Both directions of one LSTM layer; returns the (T, B, 2H) bf16 sequence."""
    T, B, G2 = gates_tb8h.shape
    H = G2 // 8
    resident = (gates_tb8h.size * gates_tb8h.dtype.itemsize
                + T * B * 2 * H * 2
                + (whh_f.size + whh_b.size) * 2)
    return pl.pallas_call(
        _bilstm_seq_kernel,
        out_shape=jax.ShapeDtypeStruct((T, B, 2 * H), jnp.bfloat16),
        in_specs=[_vmem_spec()] * 3,
        out_specs=_vmem_spec(),
        compiler_params=pltpu.CompilerParams(
            vmem_limit_bytes=_vmem_limit_bytes(resident)),
    )(gates_tb8h, whh_f, whh_b)


def bilstm_layer_final_head(x_tb2h, wih, bias, whh_f, whh_b, w1_t, b1, w2_t, b2):
    """Layer-1 input projection + recurrence + classifier head, all in one kernel."""
    T, B, H2 = x_tb2h.shape
    H = H2 // 2
    O = w2_t.shape[1]
    resident = (x_tb2h.size * 2 + T * B * 8 * H * 2
                + (wih.size + whh_f.size + whh_b.size) * 2
                + (w1_t.size + w2_t.size) * 4)
    return pl.pallas_call(
        _bilstm_final_head_kernel,
        out_shape=(jax.ShapeDtypeStruct((B, O), jnp.float32),
                   jax.ShapeDtypeStruct((B, O), jnp.float32)),
        in_specs=[_vmem_spec()] * 9,
        out_specs=(_vmem_spec(), _vmem_spec()),
        scratch_shapes=[pltpu.VMEM((T, B, 8 * H), jnp.bfloat16)],
        compiler_params=pltpu.CompilerParams(
            vmem_limit_bytes=_vmem_limit_bytes(resident)),
    )(x_tb2h, wih, bias, whh_f, whh_b, w1_t, b1, w2_t, b2)


# ----------------------------------------------------------------------------
# Parameter init (deterministic, PyTorch-like uniform(-1/sqrt(H), 1/sqrt(H)))
# ----------------------------------------------------------------------------
def _init_lstm_dir(key, d_in, hidden):
    """Fused-layout weights for one direction: W_ih^T (d_in,4H), W_hh^T (H,4H),
    bias = b_ih + b_hh (4H,).  Gate order along the 4H axis is (i, f, o, g)."""
    k = 1.0 / np.sqrt(hidden)
    k1, k2, k3, k4 = jax.random.split(key, 4)
    wih_t = jax.random.uniform(k1, (d_in, 4 * hidden), jnp.float32, -k, k)
    whh_t = jax.random.uniform(k2, (hidden, 4 * hidden), jnp.float32, -k, k)
    b_ih = jax.random.uniform(k3, (4 * hidden,), jnp.float32, -k, k)
    b_hh = jax.random.uniform(k4, (4 * hidden,), jnp.float32, -k, k)
    return wih_t, whh_t, b_ih + b_hh


def init_params(key, *, hidden_dim, extra_hidden_dim, output_dim,
                vocab_size, max_seq_len, embed_dim=768):
    ks = jax.random.split(key, 12)
    bf16 = jnp.bfloat16
    params = {}
    # embedding stand-in (deterministic) for BERT last_hidden_state
    params["word_emb"] = 0.02 * jax.random.normal(ks[0], (vocab_size, embed_dim), jnp.float32)
    params["pos_emb"] = 0.02 * jax.random.normal(ks[1], (max_seq_len, embed_dim), jnp.float32)
    params["type_emb"] = 0.02 * jax.random.normal(ks[2], (2, embed_dim), jnp.float32)

    # LSTM: layer 0 input 768, layer 1 input 2H (bidirectional).  Weights bf16.
    wih0f, whh0f, b0f = _init_lstm_dir(ks[3], embed_dim, hidden_dim)
    wih0b, whh0b, b0b = _init_lstm_dir(ks[4], embed_dim, hidden_dim)
    wih1f, whh1f, b1f = _init_lstm_dir(ks[5], 2 * hidden_dim, hidden_dim)
    wih1b, whh1b, b1b = _init_lstm_dir(ks[6], 2 * hidden_dim, hidden_dim)
    params["l0_wih"] = jnp.concatenate([wih0f, wih0b], axis=1).astype(bf16)   # (768, 8H)
    params["l0_bias"] = jnp.concatenate([b0f, b0b], axis=0)[None, :]          # (1, 8H) f32
    params["l0_whh_f"] = whh0f.astype(bf16)                                   # (H, 4H)
    params["l0_whh_b"] = whh0b.astype(bf16)
    params["l1_wih"] = jnp.concatenate([wih1f, wih1b], axis=1).astype(bf16)   # (2H, 8H)
    params["l1_bias"] = jnp.concatenate([b1f, b1b], axis=0)[None, :]          # (1, 8H) f32
    params["l1_whh_f"] = whh1f.astype(bf16)
    params["l1_whh_b"] = whh1b.astype(bf16)

    # extra_fc: Linear(2H, E);  fc: Linear(E, O)  (stored pre-transposed, f32)
    k1 = 1.0 / np.sqrt(2 * hidden_dim)
    k2 = 1.0 / np.sqrt(extra_hidden_dim)
    params["w1_t"] = jax.random.uniform(ks[7], (2 * hidden_dim, extra_hidden_dim), jnp.float32, -k1, k1)
    params["b1"] = jax.random.uniform(ks[8], (1, extra_hidden_dim), jnp.float32, -k1, k1)
    params["w2_t"] = jax.random.uniform(ks[9], (extra_hidden_dim, output_dim), jnp.float32, -k2, k2)
    params["b2"] = jax.random.uniform(ks[10], (1, output_dim), jnp.float32, -k2, k2)
    return params


# ----------------------------------------------------------------------------
# Full forward pass
# ----------------------------------------------------------------------------
def bilstm_classifier_forward(params, input_ids, attention_mask, token_type_ids):
    # TODO(synk): attention_mask unused — BERT encoder replaced by embedding lookup;
    # padded positions flow through the LSTM exactly like an unpacked nn.LSTM.
    del attention_mask
    B, T = input_ids.shape
    embedded = (params["word_emb"][input_ids]
                + params["pos_emb"][None, :T, :]
                + params["type_emb"][token_type_ids])             # (B, T, 768) f32

    # pad batch to a sublane multiple (>= 8) so kernel vregs / stores are denser.
    B_pad = max(8, ((B + 7) // 8) * 8)
    if B_pad != B:
        embedded = jnp.pad(embedded, ((0, B_pad - B), (0, 0), (0, 0)))
    x = jnp.transpose(embedded, (1, 0, 2)).astype(jnp.bfloat16)   # (T, B_pad, 768)

    # layer 0: hoisted input projection — one bf16 MXU GEMM over the whole
    # sequence (both directions concatenated -> lane-dense (., 8H)), f32 accum.
    g0 = (jnp.dot(x.reshape(T * B_pad, -1), params["l0_wih"],
                  preferred_element_type=jnp.float32) + params["l0_bias"])
    g0 = g0.reshape(T, B_pad, -1).astype(jnp.bfloat16)            # (T, B_pad, 8H)

    # layer 0: interleaved fwd/bwd recurrence -> single (T, B_pad, 2H) bf16 slab.
    o0 = bilstm_layer_seq(g0, params["l0_whh_f"], params["l0_whh_b"])

    # layer 1 + classifier head fused in one kernel; its input projection runs
    # in-kernel so the (T, B, 8H) gate tensor never hits HBM.
    # (inter-layer dropout is identity at inference)
    log_probs, logits = bilstm_layer_final_head(
        o0, params["l1_wih"], params["l1_bias"],
        params["l1_whh_f"], params["l1_whh_b"],
        params["w1_t"], params["b1"], params["w2_t"], params["b2"])
    return log_probs[:B], logits[:B]


if __name__ == "__main__":
    B, T = 2, 8
    HIDDEN, EXTRA_HIDDEN, OUTPUT = 32, 16, 4
    VOCAB = 1000

    key = jax.random.PRNGKey(0)
    pkey, dkey = jax.random.split(key)
    params = init_params(pkey, hidden_dim=HIDDEN, extra_hidden_dim=EXTRA_HIDDEN,
                         output_dim=OUTPUT, vocab_size=VOCAB, max_seq_len=T)

    input_ids = jax.random.randint(dkey, (B, T), 0, VOCAB, dtype=jnp.int32)
    attention_mask = jnp.ones((B, T), dtype=jnp.int32)
    token_type_ids = jnp.zeros((B, T), dtype=jnp.int32)

    fwd = jax.jit(bilstm_classifier_forward)
    log_probs, logits = fwd(params, input_ids, attention_mask, token_type_ids)
    jax.block_until_ready((log_probs, logits))

    assert log_probs.shape == (B, OUTPUT) and logits.shape == (B, OUTPUT)
    assert bool(jnp.all(jnp.isfinite(log_probs))) and bool(jnp.all(jnp.isfinite(logits)))
    # log_softmax rows must exponentiate-sum to 1
    assert bool(jnp.allclose(jnp.sum(jnp.exp(log_probs), axis=1), 1.0, atol=1e-3))
    print("KERNEL_OK")
</pallas_src>

<mosaic_0001>
module attributes {stable_mosaic.version = 11 : i64} {
  func.func @_bilstm_seq_kernel(%arg0: memref<8x8x256xbf16, #tpu.memory_space<vmem>>, %arg1: memref<32x128xbf16, #tpu.memory_space<vmem>>, %arg2: memref<32x128xbf16, #tpu.memory_space<vmem>>, %arg3: memref<8x8x64xbf16, #tpu.memory_space<vmem>>) attributes {dimension_semantics = [], scalar_prefetch = 0 : i64, scratch_operands = 0 : i64, tpu.core_type = #tpu.core_type<tc>} {
    %c0 = arith.constant 0 : index
    %c0_0 = arith.constant 0 : index
    %0 = vector.load %arg1[%c0, %c0_0] : memref<32x128xbf16, #tpu.memory_space<vmem>>, vector<32x128xbf16>
    %c0_1 = arith.constant 0 : index
    %c0_2 = arith.constant 0 : index
    %1 = vector.load %arg2[%c0_1, %c0_2] : memref<32x128xbf16, #tpu.memory_space<vmem>>, vector<32x128xbf16>
    %cst = arith.constant 0.000000e+00 : f32
    %2 = vector.broadcast %cst : f32 to vector<8x32xf32>
    %c0_i32 = arith.constant 0 : i32
    %c7_i32 = arith.constant 7 : i32
    %3 = arith.subi %c7_i32, %c0_i32 : i32
    %4 = arith.index_cast %c0_i32 : i32 to index
    %c0_3 = arith.constant 0 : index
    %c0_4 = arith.constant 0 : index
    %5 = vector.load %arg0[%4, %c0_3, %c0_4] : memref<8x8x256xbf16, #tpu.memory_space<vmem>>, vector<1x8x128xbf16>
    %6 = vector.shape_cast %5 : vector<1x8x128xbf16> to vector<8x128xbf16>
    %7 = arith.extf %6 : vector<8x128xbf16> to vector<8x128xf32>
    %8 = arith.truncf %2 : vector<8x32xf32> to vector<8x32xbf16>
    %cst_5 = arith.constant dense<0.000000e+00> : vector<8x128xf32>
    %9 = tpu.matmul %8, %0, %cst_5 {dimension_numbers = #tpu.dot_dimension_numbers<[1], [0], [0], [1], [0, 0, 1, 1], [], []>} : vector<8x32xbf16>, vector<32x128xbf16>, vector<8x128xf32> -> vector<8x128xf32>
    %10 = arith.addf %7, %9 : vector<8x128xf32>
    %11 = arith.index_cast %3 : i32 to index
    %c0_6 = arith.constant 0 : index
    %c128 = arith.constant 128 : index
    %12 = vector.load %arg0[%11, %c0_6, %c128] : memref<8x8x256xbf16, #tpu.memory_space<vmem>>, vector<1x8x128xbf16>
    %13 = vector.shape_cast %12 : vector<1x8x128xbf16> to vector<8x128xbf16>
    %14 = arith.extf %13 : vector<8x128xbf16> to vector<8x128xf32>
    %15 = arith.truncf %2 : vector<8x32xf32> to vector<8x32xbf16>
    %cst_7 = arith.constant dense<0.000000e+00> : vector<8x128xf32>
    %16 = tpu.matmul %15, %1, %cst_7 {dimension_numbers = #tpu.dot_dimension_numbers<[1], [0], [0], [1], [0, 0, 1, 1], [], []>} : vector<8x32xbf16>, vector<32x128xbf16>, vector<8x128xf32> -> vector<8x128xf32>
    %17 = arith.addf %14, %16 : vector<8x128xf32>
    %18 = vector.extract_strided_slice %10 {offsets = [0, 0], sizes = [8, 96], strides = [1, 1]} : vector<8x128xf32> to vector<8x96xf32>
    %19 = arith.negf %18 : vector<8x96xf32>
    %20 = math.exp %19 : vector<8x96xf32>
    %cst_8 = arith.constant 1.000000e+00 : f32
    %21 = vector.broadcast %cst_8 : f32 to vector<8x96xf32>
    %22 = arith.addf %21, %20 : vector<8x96xf32>
    %23 = arith.divf %21, %22 : vector<8x96xf32>
    %24 = vector.extract_strided_slice %23 {offsets = [0, 0], sizes = [8, 32], strides = [1, 1]} : vector<8x96xf32> to vector<8x32xf32>
    %25 = vector.extract_strided_slice %23 {offsets = [0, 32], sizes = [8, 32], strides = [1, 1]} : vector<8x96xf32> to vector<8x32xf32>
    %26 = vector.extract_strided_slice %23 {offsets = [0, 64], sizes = [8, 32], strides = [1, 1]} : vector<8x96xf32> to vector<8x32xf32>
    %27 = vector.extract_strided_slice %10 {offsets = [0, 96], sizes = [8, 32], strides = [1, 1]} : vector<8x128xf32> to vector<8x32xf32>
    %28 = math.tanh %27 : vector<8x32xf32>
    %29 = arith.mulf %25, %2 : vector<8x32xf32>
    %30 = arith.mulf %24, %28 : vector<8x32xf32>
    %31 = arith.addf %29, %30 : vector<8x32xf32>
    %32 = math.tanh %31 : vector<8x32xf32>
    %33 = arith.mulf %26, %32 : vector<8x32xf32>
    %34 = vector.extract_strided_slice %17 {offsets = [0, 0], sizes = [8, 96], strides = [1, 1]} : vector<8x128xf32> to vector<8x96xf32>
    %35 = arith.negf %34 : vector<8x96xf32>
    %36 = math.exp %35 : vector<8x96xf32>
    %cst_9 = arith.constant 1.000000e+00 : f32
    %37 = vector.broadcast %cst_9 : f32 to vector<8x96xf32>
    %38 = arith.addf %37, %36 : vector<8x96xf32>
    %39 = arith.divf %37, %38 : vector<8x96xf32>
    %40 = vector.extract_strided_slice %39 {offsets = [0, 0], sizes = [8, 32], strides = [1, 1]} : vector<8x96xf32> to vector<8x32xf32>
    %41 = vector.extract_strided_slice %39 {offsets = [0, 32], sizes = [8, 32], strides = [1, 1]} : vector<8x96xf32> to vector<8x32xf32>
    %42 = vector.extract_strided_slice %39 {offsets = [0, 64], sizes = [8, 32], strides = [1, 1]} : vector<8x96xf32> to vector<8x32xf32>
    %43 = vector.extract_strided_slice %17 {offsets = [0, 96], sizes = [8, 32], strides = [1, 1]} : vector<8x128xf32> to vector<8x32xf32>
    %44 = math.tanh %43 : vector<8x32xf32>
    %45 = arith.mulf %41, %2 : vector<8x32xf32>
    %46 = arith.mulf %40, %44 : vector<8x32xf32>
    %47 = arith.addf %45, %46 : vector<8x32xf32>
    %48 = math.tanh %47 : vector<8x32xf32>
    %49 = arith.mulf %42, %48 : vector<8x32xf32>
    %50 = arith.truncf %33 : vector<8x32xf32> to vector<8x32xbf16>
    %51 = arith.index_cast %c0_i32 : i32 to index
    %c0_10 = arith.constant 0 : index
    %c0_11 = arith.constant 0 : index
    %52 = vector.load %arg3[%51, %c0_10, %c0_11] : memref<8x8x64xbf16, #tpu.memory_space<vmem>>, vector<1x8x32xbf16>
    %53 = vector.shape_cast %52 : vector<1x8x32xbf16> to vector<8x32xbf16>
    %54 = vector.shape_cast %50 : vector<8x32xbf16> to vector<1x8x32xbf16>
    tpu.vector_store %arg3[%51, %c0_10, %c0_11], %54 {strides = array<i32>} : memref<8x8x64xbf16, #tpu.memory_space<vmem>>, vector<1x8x32xbf16>,
    %55 = arith.truncf %49 : vector<8x32xf32> to vector<8x32xbf16>
    %56 = arith.index_cast %3 : i32 to index
    %c0_12 = arith.constant 0 : index
    %c32 = arith.constant 32 : index
    %57 = vector.load %arg3[%56, %c0_12, %c32] : memref<8x8x64xbf16, #tpu.memory_space<vmem>>, vector<1x8x32xbf16>
    %58 = vector.shape_cast %57 : vector<1x8x32xbf16> to vector<8x32xbf16>
    %59 = vector.shape_cast %55 : vector<8x32xbf16> to vector<1x8x32xbf16>
    tpu.vector_store %arg3[%56, %c0_12, %c32], %59 {strides = array<i32>} : memref<8x8x64xbf16, #tpu.memory_space<vmem>>, vector<1x8x32xbf16>,
    %c1_i32 = arith.constant 1 : i32
    %c7_i32_13 = arith.constant 7 : i32
    %60 = arith.subi %c7_i32_13, %c1_i32 : i32
    %61 = arith.index_cast %c1_i32 : i32 to index
    %c0_14 = arith.constant 0 : index
    %c0_15 = arith.constant 0 : index
    %62 = vector.load %arg0[%61, %c0_14, %c0_15] : memref<8x8x256xbf16, #tpu.memory_space<vmem>>, vector<1x8x128xbf16>
    %63 = vector.shape_cast %62 : vector<1x8x128xbf16> to vector<8x128xbf16>
    %64 = arith.extf %63 : vector<8x128xbf16> to vector<8x128xf32>
    %65 = arith.truncf %33 : vector<8x32xf32> to vector<8x32xbf16>
    %cst_16 = arith.constant dense<0.000000e+00> : vector<8x128xf32>
    %66 = tpu.matmul %65, %0, %cst_16 {dimension_numbers = #tpu.dot_dimension_numbers<[1], [0], [0], [1], [0, 0, 1, 1], [], []>} : vector<8x32xbf16>, vector<32x128xbf16>, vector<8x128xf32> -> vector<8x128xf32>
    %67 = arith.addf %64, %66 : vector<8x128xf32>
    %68 = arith.index_cast %60 : i32 to index
    %c0_17 = arith.constant 0 : index
    %c128_18 = arith.constant 128 : index
    %69 = vector.load %arg0[%68, %c0_17, %c128_18] : memref<8x8x256xbf16, #tpu.memory_space<vmem>>, vector<1x8x128xbf16>
    %70 = vector.shape_cast %69 : vector<1x8x128xbf16> to vector<8x128xbf16>
    %71 = arith.extf %70 : vector<8x128xbf16> to vector<8x128xf32>
    %72 = arith.truncf %49 : vector<8x32xf32> to vector<8x32xbf16>
    %cst_19 = arith.constant dense<0.000000e+00> : vector<8x128xf32>
    %73 = tpu.matmul %72, %1, %cst_19 {dimension_numbers = #tpu.dot_dimension_numbers<[1], [0], [0], [1], [0, 0, 1, 1], [], []>} : vector<8x32xbf16>, vector<32x128xbf16>, vector<8x128xf32> -> vector<8x128xf32>
    %74 = arith.addf %71, %73 : vector<8x128xf32>
    %75 = vector.extract_strided_slice %67 {offsets = [0, 0], sizes = [8, 96], strides = [1, 1]} : vector<8x128xf32> to vector<8x96xf32>
    %76 = arith.negf %75 : vector<8x96xf32>
    %77 = math.exp %76 : vector<8x96xf32>
    %cst_20 = arith.constant 1.000000e+00 : f32
    %78 = vector.broadcast %cst_20 : f32 to vector<8x96xf32>
    %79 = arith.addf %78, %77 : vector<8x96xf32>
    %80 = arith.divf %78, %79 : vector<8x96xf32>
    %81 = vector.extract_strided_slice %80 {offsets = [0, 0], sizes = [8, 32], strides = [1, 1]} : vector<8x96xf32> to vector<8x32xf32>
    %82 = vector.extract_strided_slice %80 {offsets = [0, 32], sizes = [8, 32], strides = [1, 1]} : vector<8x96xf32> to vector<8x32xf32>
    %83 = vector.extract_strided_slice %80 {offsets = [0, 64], sizes = [8, 32], strides = [1, 1]} : vector<8x96xf32> to vector<8x32xf32>
    %84 = vector.extract_strided_slice %67 {offsets = [0, 96], sizes = [8, 32], strides = [1, 1]} : vector<8x128xf32> to vector<8x32xf32>
    %85 = math.tanh %84 : vector<8x32xf32>
    %86 = arith.mulf %82, %31 : vector<8x32xf32>
    %87 = arith.mulf %81, %85 : vector<8x32xf32>
    %88 = arith.addf %86, %87 : vector<8x32xf32>
    %89 = math.tanh %88 : vector<8x32xf32>
    %90 = arith.mulf %83, %89 : vector<8x32xf32>
    %91 = vector.extract_strided_slice %74 {offsets = [0, 0], sizes = [8, 96], strides = [1, 1]} : vector<8x128xf32> to vector<8x96xf32>
    %92 = arith.negf %91 : vector<8x96xf32>
    %93 = math.exp %92 : vector<8x96xf32>
    %cst_21 = arith.constant 1.000000e+00 : f32
    %94 = vector.broadcast %cst_21 : f32 to vector<8x96xf32>
    %95 = arith.addf %94, %93 : vector<8x96xf32>
    %96 = arith.divf %94, %95 : vector<8x96xf32>
    %97 = vector.extract_strided_slice %96 {offsets = [0, 0], sizes = [8, 32], strides = [1, 1]} : vector<8x96xf32> to vector<8x32xf32>
    %98 = vector.extract_strided_slice %96 {offsets = [0, 32], sizes = [8, 32], strides = [1, 1]} : vector<8x96xf32> to vector<8x32xf32>
    %99 = vector.extract_strided_slice %96 {offsets = [0, 64], sizes = [8, 32], strides = [1, 1]} : vector<8x96xf32> to vector<8x32xf32>
    %100 = vector.extract_strided_slice %74 {offsets = [0, 96], sizes = [8, 32], strides = [1, 1]} : vector<8x128xf32> to vector<8x32xf32>
    %101 = math.tanh %100 : vector<8x32xf32>
    %102 = arith.mulf %98, %47 : vector<8x32xf32>
    %103 = arith.mulf %97, %101 : vector<8x32xf32>
    %104 = arith.addf %102, %103 : vector<8x32xf32>
    %105 = math.tanh %104 : vector<8x32xf32>
    %106 = arith.mulf %99, %105 : vector<8x32xf32>
    %107 = arith.truncf %90 : vector<8x32xf32> to vector<8x32xbf16>
    %108 = arith.index_cast %c1_i32 : i32 to index
    %c0_22 = arith.constant 0 : index
    %c0_23 = arith.constant 0 : index
    %109 = vector.load %arg3[%108, %c0_22, %c0_23] : memref<8x8x64xbf16, #tpu.memory_space<vmem>>, vector<1x8x32xbf16>
    %110 = vector.shape_cast %109 : vector<1x8x32xbf16> to vector<8x32xbf16>
    %111 = vector.shape_cast %107 : vector<8x32xbf16> to vector<1x8x32xbf16>
    tpu.vector_store %arg3[%108, %c0_22, %c0_23], %111 {strides = array<i32>} : memref<8x8x64xbf16, #tpu.memory_space<vmem>>, vector<1x8x32xbf16>,
    %112 = arith.truncf %106 : vector<8x32xf32> to vector<8x32xbf16>
    %113 = arith.index_cast %60 : i32 to index
    %c0_24 = arith.constant 0 : index
    %c32_25 = arith.constant 32 : index
    %114 = vector.load %arg3[%113, %c0_24, %c32_25] : memref<8x8x64xbf16, #tpu.memory_space<vmem>>, vector<1x8x32xbf16>
    %115 = vector.shape_cast %114 : vector<1x8x32xbf16> to vector<8x32xbf16>
    %116 = vector.shape_cast %112 : vector<8x32xbf16> to vector<1x8x32xbf16>
    tpu.vector_store %arg3[%113, %c0_24, %c32_25], %116 {strides = array<i32>} : memref<8x8x64xbf16, #tpu.memory_space<vmem>>, vector<1x8x32xbf16>,
    %c2_i32 = arith.constant 2 : i32
    %c7_i32_26 = arith.constant 7 : i32
    %117 = arith.subi %c7_i32_26, %c2_i32 : i32
    %118 = arith.index_cast %c2_i32 : i32 to index
    %c0_27 = arith.constant 0 : index
    %c0_28 = arith.constant 0 : index
    %119 = vector.load %arg0[%118, %c0_27, %c0_28] : memref<8x8x256xbf16, #tpu.memory_space<vmem>>, vector<1x8x128xbf16>
    %120 = vector.shape_cast %119 : vector<1x8x128xbf16> to vector<8x128xbf16>
    %121 = arith.extf %120 : vector<8x128xbf16> to vector<8x128xf32>
    %122 = arith.truncf %90 : vector<8x32xf32> to vector<8x32xbf16>
    %cst_29 = arith.constant dense<0.000000e+00> : vector<8x128xf32>
    %123 = tpu.matmul %122, %0, %cst_29 {dimension_numbers = #tpu.dot_dimension_numbers<[1], [0], [0], [1], [0, 0, 1, 1], [], []>} : vector<8x32xbf16>, vector<32x128xbf16>, vector<8x128xf32> -> vector<8x128xf32>
    %124 = arith.addf %121, %123 : vector<8x128xf32>
    %125 = arith.index_cast %117 : i32 to index
    %c0_30 = arith.constant 0 : index
    %c128_31 = arith.constant 128 : index
    %126 = vector.load %arg0[%125, %c0_30, %c128_31] : memref<8x8x256xbf16, #tpu.memory_space<vmem>>, vector<1x8x128xbf16>
    %127 = vector.shape_cast %126 : vector<1x8x128xbf16> to vector<8x128xbf16>
    %128 = arith.extf %127 : vector<8x128xbf16> to vector<8x128xf32>
    %129 = arith.truncf %106 : vector<8x32xf32> to vector<8x32xbf16>
    %cst_32 = arith.constant dense<0.000000e+00> : vector<8x128xf32>
    %130 = tpu.matmul %129, %1, %cst_32 {dimension_numbers = #tpu.dot_dimension_numbers<[1], [0], [0], [1], [0, 0, 1, 1], [], []>} : vector<8x32xbf16>, vector<32x128xbf16>, vector<8x128xf32> -> vector<8x128xf32>
    %131 = arith.addf %128, %130 : vector<8x128xf32>
    %132 = vector.extract_strided_slice %124 {offsets = [0, 0], sizes = [8, 96], strides = [1, 1]} : vector<8x128xf32> to vector<8x96xf32>
    %133 = arith.negf %132 : vector<8x96xf32>
    %134 = math.exp %133 : vector<8x96xf32>
    %cst_33 = arith.constant 1.000000e+00 : f32
    %135 = vector.broadcast %cst_33 : f32 to vector<8x96xf32>
    %136 = arith.addf %135, %134 : vector<8x96xf32>
    %137 = arith.divf %135, %136 : vector<8x96xf32>
    %138 = vector.extract_strided_slice %137 {offsets = [0, 0], sizes = [8, 32], strides = [1, 1]} : vector<8x96xf32> to vector<8x32xf32>
    %139 = vector.extract_strided_slice %137 {offsets = [0, 32], sizes = [8, 32], strides = [1, 1]} : vector<8x96xf32> to vector<8x32xf32>
    %140 = vector.extract_strided_slice %137 {offsets = [0, 64], sizes = [8, 32], strides = [1, 1]} : vector<8x96xf32> to vector<8x32xf32>
    %141 = vector.extract_strided_slice %124 {offsets = [0, 96], sizes = [8, 32], strides = [1, 1]} : vector<8x128xf32> to vector<8x32xf32>
    %142 = math.tanh %141 : vector<8x32xf32>
    %143 = arith.mulf %139, %88 : vector<8x32xf32>
    %144 = arith.mulf %138, %142 : vector<8x32xf32>
    %145 = arith.addf %143, %144 : vector<8x32xf32>
    %146 = math.tanh %145 : vector<8x32xf32>
    %147 = arith.mulf %140, %146 : vector<8x32xf32>
    %148 = vector.extract_strided_slice %131 {offsets = [0, 0], sizes = [8, 96], strides = [1, 1]} : vector<8x128xf32> to vector<8x96xf32>
    %149 = arith.negf %148 : vector<8x96xf32>
    %150 = math.exp %149 : vector<8x96xf32>
    %cst_34 = arith.constant 1.000000e+00 : f32
    %151 = vector.broadcast %cst_34 : f32 to vector<8x96xf32>
    %152 = arith.addf %151, %150 : vector<8x96xf32>
    %153 = arith.divf %151, %152 : vector<8x96xf32>
    %154 = vector.extract_strided_slice %153 {offsets = [0, 0], sizes = [8, 32], strides = [1, 1]} : vector<8x96xf32> to vector<8x32xf32>
    %155 = vector.extract_strided_slice %153 {offsets = [0, 32], sizes = [8, 32], strides = [1, 1]} : vector<8x96xf32> to vector<8x32xf32>
    %156 = vector.extract_strided_slice %153 {offsets = [0, 64], sizes = [8, 32], strides = [1, 1]} : vector<8x96xf32> to vector<8x32xf32>
    %157 = vector.extract_strided_slice %131 {offsets = [0, 96], sizes = [8, 32], strides = [1, 1]} : vector<8x128xf32> to vector<8x32xf32>
    %158 = math.tanh %157 : vector<8x32xf32>
    %159 = arith.mulf %155, %104 : vector<8x32xf32>
    %160 = arith.mulf %154, %158 : vector<8x32xf32>
    %161 = arith.addf %159, %160 : vector<8x32xf32>
    %162 = math.tanh %161 : vector<8x32xf32>
    %163 = arith.mulf %156, %162 : vector<8x32xf32>
    %164 = arith.truncf %147 : vector<8x32xf32> to vector<8x32xbf16>
    %165 = arith.index_cast %c2_i32 : i32 to index
    %c0_35 = arith.constant 0 : index
    %c0_36 = arith.constant 0 : index
    %166 = vector.load %arg3[%165, %c0_35, %c0_36] : memref<8x8x64xbf16, #tpu.memory_space<vmem>>, vector<1x8x32xbf16>
    %167 = vector.shape_cast %166 : vector<1x8x32xbf16> to vector<8x32xbf16>
    %168 = vector.shape_cast %164 : vector<8x32xbf16> to vector<1x8x32xbf16>
    tpu.vector_store %arg3[%165, %c0_35, %c0_36], %168 {strides = array<i32>} : memref<8x8x64xbf16, #tpu.memory_space<vmem>>, vector<1x8x32xbf16>,
    %169 = arith.truncf %163 : vector<8x32xf32> to vector<8x32xbf16>
    %170 = arith.index_cast %117 : i32 to index
    %c0_37 = arith.constant 0 : index
    %c32_38 = arith.constant 32 : index
    %171 = vector.load %arg3[%170, %c0_37, %c32_38] : memref<8x8x64xbf16, #tpu.memory_space<vmem>>, vector<1x8x32xbf16>
    %172 = vector.shape_cast %171 : vector<1x8x32xbf16> to vector<8x32xbf16>
    %173 = vector.shape_cast %169 : vector<8x32xbf16> to vector<1x8x32xbf16>
    tpu.vector_store %arg3[%170, %c0_37, %c32_38], %173 {strides = array<i32>} : memref<8x8x64xbf16, #tpu.memory_space<vmem>>, vector<1x8x32xbf16>,
    %c3_i32 = arith.constant 3 : i32
    %c7_i32_39 = arith.constant 7 : i32
    %174 = arith.subi %c7_i32_39, %c3_i32 : i32
    %175 = arith.index_cast %c3_i32 : i32 to index
    %c0_40 = arith.constant 0 : index
    %c0_41 = arith.constant 0 : index
    %176 = vector.load %arg0[%175, %c0_40, %c0_41] : memref<8x8x256xbf16, #tpu.memory_space<vmem>>, vector<1x8x128xbf16>
    %177 = vector.shape_cast %176 : vector<1x8x128xbf16> to vector<8x128xbf16>
    %178 = arith.extf %177 : vector<8x128xbf16> to vector<8x128xf32>
    %179 = arith.truncf %147 : vector<8x32xf32> to vector<8x32xbf16>
    %cst_42 = arith.constant dense<0.000000e+00> : vector<8x128xf32>
    %180 = tpu.matmul %179, %0, %cst_42 {dimension_numbers = #tpu.dot_dimension_numbers<[1], [0], [0], [1], [0, 0, 1, 1], [], []>} : vector<8x32xbf16>, vector<32x128xbf16>, vector<8x128xf32> -> vector<8x128xf32>
    %181 = arith.addf %178, %180 : vector<8x128xf32>
    %182 = arith.index_cast %174 : i32 to index
    %c0_43 = arith.constant 0 : index
    %c128_44 = arith.constant 128 : index
    %183 = vector.load %arg0[%182, %c0_43, %c128_44] : memref<8x8x256xbf16, #tpu.memory_space<vmem>>, vector<1x8x128xbf16>
    %184 = vector.shape_cast %183 : vector<1x8x128xbf16> to vector<8x128xbf16>
    %185 = arith.extf %184 : vector<8x128xbf16> to vector<8x128xf32>
    %186 = arith.truncf %163 : vector<8x32xf32> to vector<8x32xbf16>
    %cst_45 = arith.constant dense<0.000000e+00> : vector<8x128xf32>
    %187 = tpu.matmul %186, %1, %cst_45 {dimension_numbers = #tpu.dot_dimension_numbers<[1], [0], [0], [1], [0, 0, 1, 1], [], []>} : vector<8x32xbf16>, vector<32x128xbf16>, vector<8x128xf32> -> vector<8x128xf32>
    %188 = arith.addf %185, %187 : vector<8x128xf32>
    %189 = vector.extract_strided_slice %181 {offsets = [0, 0], sizes = [8, 96], strides = [1, 1]} : vector<8x128xf32> to vector<8x96xf32>
    %190 = arith.negf %189 : vector<8x96xf32>
    %191 = math.exp %190 : vector<8x96xf32>
    %cst_46 = arith.constant 1.000000e+00 : f32
    %192 = vector.broadcast %cst_46 : f32 to vector<8x96xf32>
    %193 = arith.addf %192, %191 : vector<8x96xf32>
    %194 = arith.divf %192, %193 : vector<8x96xf32>
    %195 = vector.extract_strided_slice %194 {offsets = [0, 0], sizes = [8, 32], strides = [1, 1]} : vector<8x96xf32> to vector<8x32xf32>
    %196 = vector.extract_strided_slice %194 {offsets = [0, 32], sizes = [8, 32], strides = [1, 1]} : vector<8x96xf32> to vector<8x32xf32>
    %197 = vector.extract_strided_slice %194 {offsets = [0, 64], sizes = [8, 32], strides = [1, 1]} : vector<8x96xf32> to vector<8x32xf32>
    %198 = vector.extract_strided_slice %181 {offsets = [0, 96], sizes = [8, 32], strides = [1, 1]} : vector<8x128xf32> to vector<8x32xf32>
    %199 = math.tanh %198 : vector<8x32xf32>
    %200 = arith.mulf %196, %145 : vector<8x32xf32>
    %201 = arith.mulf %195, %199 : vector<8x32xf32>
    %202 = arith.addf %200, %201 : vector<8x32xf32>
    %203 = math.tanh %202 : vector<8x32xf32>
    %204 = arith.mulf %197, %203 : vector<8x32xf32>
    %205 = vector.extract_strided_slice %188 {offsets = [0, 0], sizes = [8, 96], strides = [1, 1]} : vector<8x128xf32> to vector<8x96xf32>
    %206 = arith.negf %205 : vector<8x96xf32>
    %207 = math.exp %206 : vector<8x96xf32>
    %cst_47 = arith.constant 1.000000e+00 : f32
    %208 = vector.broadcast %cst_47 : f32 to vector<8x96xf32>
    %209 = arith.addf %208, %207 : vector<8x96xf32>
    %210 = arith.divf %208, %209 : vector<8x96xf32>
    %211 = vector.extract_strided_slice %210 {offsets = [0, 0], sizes = [8, 32], strides = [1, 1]} : vector<8x96xf32> to vector<8x32xf32>
    %212 = vector.extract_strided_slice %210 {offsets = [0, 32], sizes = [8, 32], strides = [1, 1]} : vector<8x96xf32> to vector<8x32xf32>
    %213 = vector.extract_strided_slice %210 {offsets = [0, 64], sizes = [8, 32], strides = [1, 1]} : vector<8x96xf32> to vector<8x32xf32>
    %214 = vector.extract_strided_slice %188 {offsets = [0, 96], sizes = [8, 32], strides = [1, 1]} : vector<8x128xf32> to vector<8x32xf32>
    %215 = math.tanh %214 : vector<8x32xf32>
    %216 = arith.mulf %212, %161 : vector<8x32xf32>
    %217 = arith.mulf %211, %215 : vector<8x32xf32>
    %218 = arith.addf %216, %217 : vector<8x32xf32>
    %219 = math.tanh %218 : vector<8x32xf32>
    %220 = arith.mulf %213, %219 : vector<8x32xf32>
    %221 = arith.truncf %204 : vector<8x32xf32> to vector<8x32xbf16>
    %222 = arith.index_cast %c3_i32 : i32 to index
    %c0_48 = arith.constant 0 : index
    %c0_49 = arith.constant 0 : index
    %223 = vector.load %arg3[%222, %c0_48, %c0_49] : memref<8x8x64xbf16, #tpu.memory_space<vmem>>, vector<1x8x32xbf16>
    %224 = vector.shape_cast %223 : vector<1x8x32xbf16> to vector<8x32xbf16>
    %225 = vector.shape_cast %221 : vector<8x32xbf16> to vector<1x8x32xbf16>
    tpu.vector_store %arg3[%222, %c0_48, %c0_49], %225 {strides = array<i32>} : memref<8x8x64xbf16, #tpu.memory_space<vmem>>, vector<1x8x32xbf16>,
    %226 = arith.truncf %220 : vector<8x32xf32> to vector<8x32xbf16>
    %227 = arith.index_cast %174 : i32 to index
    %c0_50 = arith.constant 0 : index
    %c32_51 = arith.constant 32 : index
    %228 = vector.load %arg3[%227, %c0_50, %c32_51] : memref<8x8x64xbf16, #tpu.memory_space<vmem>>, vector<1x8x32xbf16>
    %229 = vector.shape_cast %228 : vector<1x8x32xbf16> to vector<8x32xbf16>
    %230 = vector.shape_cast %226 : vector<8x32xbf16> to vector<1x8x32xbf16>
    tpu.vector_store %arg3[%227, %c0_50, %c32_51], %230 {strides = array<i32>} : memref<8x8x64xbf16, #tpu.memory_space<vmem>>, vector<1x8x32xbf16>,
    %c4_i32 = arith.constant 4 : i32
    %c7_i32_52 = arith.constant 7 : i32
    %231 = arith.subi %c7_i32_52, %c4_i32 : i32
    %232 = arith.index_cast %c4_i32 : i32 to index
    %c0_53 = arith.constant 0 : index
    %c0_54 = arith.constant 0 : index
    %233 = vector.load %arg0[%232, %c0_53, %c0_54] : memref<8x8x256xbf16, #tpu.memory_space<vmem>>, vector<1x8x128xbf16>
    %234 = vector.shape_cast %233 : vector<1x8x128xbf16> to vector<8x128xbf16>
    %235 = arith.extf %234 : vector<8x128xbf16> to vector<8x128xf32>
    %236 = arith.truncf %204 : vector<8x32xf32> to vector<8x32xbf16>
    %cst_55 = arith.constant dense<0.000000e+00> : vector<8x128xf32>
    %237 = tpu.matmul %236, %0, %cst_55 {dimension_numbers = #tpu.dot_dimension_numbers<[1], [0], [0], [1], [0, 0, 1, 1], [], []>} : vector<8x32xbf16>, vector<32x128xbf16>, vector<8x128xf32> -> vector<8x128xf32>
    %238 = arith.addf %235, %237 : vector<8x128xf32>
    %239 = arith.index_cast %231 : i32 to index
    %c0_56 = arith.constant 0 : index
    %c128_57 = arith.constant 128 : index
    %240 = vector.load %arg0[%239, %c0_56, %c128_57] : memref<8x8x256xbf16, #tpu.memory_space<vmem>>, vector<1x8x128xbf16>
    %241 = vector.shape_cast %240 : vector<1x8x128xbf16> to vector<8x128xbf16>
    %242 = arith.extf %241 : vector<8x128xbf16> to vector<8x128xf32>
    %243 = arith.truncf %220 : vector<8x32xf32> to vector<8x32xbf16>
    %cst_58 = arith.constant dense<0.000000e+00> : vector<8x128xf32>
    %244 = tpu.matmul %243, %1, %cst_58 {dimension_numbers = #tpu.dot_dimension_numbers<[1], [0], [0], [1], [0, 0, 1, 1], [], []>} : vector<8x32xbf16>, vector<32x128xbf16>, vector<8x128xf32> -> vector<8x128xf32>
    %245 = arith.addf %242, %244 : vector<8x128xf32>
    %246 = vector.extract_strided_slice %238 {offsets = [0, 0], sizes = [8, 96], strides = [1, 1]} : vector<8x128xf32> to vector<8x96xf32>
    %247 = arith.negf %246 : vector<8x96xf32>
    %248 = math.exp %247 : vector<8x96xf32>
    %cst_59 = arith.constant 1.000000e+00 : f32
    %249 = vector.broadcast %cst_59 : f32 to vector<8x96xf32>
    %250 = arith.addf %249, %248 : vector<8x96xf32>
    %251 = arith.divf %249, %250 : vector<8x96xf32>
    %252 = vector.extract_strided_slice %251 {offsets = [0, 0], sizes = [8, 32], strides = [1, 1]} : vector<8x96xf32> to vector<8x32xf32>
    %253 = vector.extract_strided_slice %251 {offsets = [0, 32], sizes = [8, 32], strides = [1, 1]} : vector<8x96xf32> to vector<8x32xf32>
    %254 = vector.extract_strided_slice %251 {offsets = [0, 64], sizes = [8, 32], strides = [1, 1]} : vector<8x96xf32> to vector<8x32xf32>
    %255 = vector.extract_strided_slice %238 {offsets = [0, 96], sizes = [8, 32], strides = [1, 1]} : vector<8x128xf32> to vector<8x32xf32>
    %256 = math.tanh %255 : vector<8x32xf32>
    %257 = arith.mulf %253, %202 : vector<8x32xf32>
    %258 = arith.mulf %252, %256 : vector<8x32xf32>
    %259 = arith.addf %257, %258 : vector<8x32xf32>
    %260 = math.tanh %259 : vector<8x32xf32>
    %261 = arith.mulf %254, %260 : vector<8x32xf32>
    %262 = vector.extract_strided_slice %245 {offsets = [0, 0], sizes = [8, 96], strides = [1, 1]} : vector<8x128xf32> to vector<8x96xf32>
    %263 = arith.negf %262 : vector<8x96xf32>
    %264 = math.exp %263 : vector<8x96xf32>
    %cst_60 = arith.constant 1.000000e+00 : f32
    %265 = vector.broadcast %cst_60 : f32 to vector<8x96xf32>
    %266 = arith.addf %265, %264 : vector<8x96xf32>
    %267 = arith.divf %265, %266 : vector<8x96xf32>
    %268 = vector.extract_strided_slice %267 {offsets = [0, 0], sizes = [8, 32], strides = [1, 1]} : vector<8x96xf32> to vector<8x32xf32>
    %269 = vector.extract_strided_slice %267 {offsets = [0, 32], sizes = [8, 32], strides = [1, 1]} : vector<8x96xf32> to vector<8x32xf32>
    %270 = vector.extract_strided_slice %267 {offsets = [0, 64], sizes = [8, 32], strides = [1, 1]} : vector<8x96xf32> to vector<8x32xf32>
    %271 = vector.extract_strided_slice %245 {offsets = [0, 96], sizes = [8, 32], strides = [1, 1]} : vector<8x128xf32> to vector<8x32xf32>
    %272 = math.tanh %271 : vector<8x32xf32>
    %273 = arith.mulf %269, %218 : vector<8x32xf32>
    %274 = arith.mulf %268, %272 : vector<8x32xf32>
    %275 = arith.addf %273, %274 : vector<8x32xf32>
    %276 = math.tanh %275 : vector<8x32xf32>
    %277 = arith.mulf %270, %276 : vector<8x32xf32>
    %278 = arith.truncf %261 : vector<8x32xf32> to vector<8x32xbf16>
    %279 = arith.index_cast %c4_i32 : i32 to index
    %c0_61 = arith.constant 0 : index
    %c0_62 = arith.constant 0 : index
    %280 = vector.load %arg3[%279, %c0_61, %c0_62] : memref<8x8x64xbf16, #tpu.memory_space<vmem>>, vector<1x8x32xbf16>
    %281 = vector.shape_cast %280 : vector<1x8x32xbf16> to vector<8x32xbf16>
    %282 = vector.shape_cast %278 : vector<8x32xbf16> to vector<1x8x32xbf16>
    tpu.vector_store %arg3[%279, %c0_61, %c0_62], %282 {strides = array<i32>} : memref<8x8x64xbf16, #tpu.memory_space<vmem>>, vector<1x8x32xbf16>,
    %283 = arith.truncf %277 : vector<8x32xf32> to vector<8x32xbf16>
    %284 = arith.index_cast %231 : i32 to index
    %c0_63 = arith.constant 0 : index
    %c32_64 = arith.constant 32 : index
    %285 = vector.load %arg3[%284, %c0_63, %c32_64] : memref<8x8x64xbf16, #tpu.memory_space<vmem>>, vector<1x8x32xbf16>
    %286 = vector.shape_cast %285 : vector<1x8x32xbf16> to vector<8x32xbf16>
    %287 = vector.shape_cast %283 : vector<8x32xbf16> to vector<1x8x32xbf16>
    tpu.vector_store %arg3[%284, %c0_63, %c32_64], %287 {strides = array<i32>} : memref<8x8x64xbf16, #tpu.memory_space<vmem>>, vector<1x8x32xbf16>,
    %c5_i32 = arith.constant 5 : i32
    %c7_i32_65 = arith.constant 7 : i32
    %288 = arith.subi %c7_i32_65, %c5_i32 : i32
    %289 = arith.index_cast %c5_i32 : i32 to index
    %c0_66 = arith.constant 0 : index
    %c0_67 = arith.constant 0 : index
    %290 = vector.load %arg0[%289, %c0_66, %c0_67] : memref<8x8x256xbf16, #tpu.memory_space<vmem>>, vector<1x8x128xbf16>
    %291 = vector.shape_cast %290 : vector<1x8x128xbf16> to vector<8x128xbf16>
    %292 = arith.extf %291 : vector<8x128xbf16> to vector<8x128xf32>
    %293 = arith.truncf %261 : vector<8x32xf32> to vector<8x32xbf16>
    %cst_68 = arith.constant dense<0.000000e+00> : vector<8x128xf32>
    %294 = tpu.matmul %293, %0, %cst_68 {dimension_numbers = #tpu.dot_dimension_numbers<[1], [0], [0], [1], [0, 0, 1, 1], [], []>} : vector<8x32xbf16>, vector<32x128xbf16>, vector<8x128xf32> -> vector<8x128xf32>
    %295 = arith.addf %292, %294 : vector<8x128xf32>
    %296 = arith.index_cast %288 : i32 to index
    %c0_69 = arith.constant 0 : index
    %c128_70 = arith.constant 128 : index
    %297 = vector.load %arg0[%296, %c0_69, %c128_70] : memref<8x8x256xbf16, #tpu.memory_space<vmem>>, vector<1x8x128xbf16>
    %298 = vector.shape_cast %297 : vector<1x8x128xbf16> to vector<8x128xbf16>
    %299 = arith.extf %298 : vector<8x128xbf16> to vector<8x128xf32>
    %300 = arith.truncf %277 : vector<8x32xf32> to vector<8x32xbf16>
    %cst_71 = arith.constant dense<0.000000e+00> : vector<8x128xf32>
    %301 = tpu.matmul %300, %1, %cst_71 {dimension_numbers = #tpu.dot_dimension_numbers<[1], [0], [0], [1], [0, 0, 1, 1], [], []>} : vector<8x32xbf16>, vector<32x128xbf16>, vector<8x128xf32> -> vector<8x128xf32>
    %302 = arith.addf %299, %301 : vector<8x128xf32>
    %303 = vector.extract_strided_slice %295 {offsets = [0, 0], sizes = [8, 96], strides = [1, 1]} : vector<8x128xf32> to vector<8x96xf32>
    %304 = arith.negf %303 : vector<8x96xf32>
    %305 = math.exp %304 : vector<8x96xf32>
    %cst_72 = arith.constant 1.000000e+00 : f32
    %306 = vector.broadcast %cst_72 : f32 to vector<8x96xf32>
    %307 = arith.addf %306, %305 : vector<8x96xf32>
    %308 = arith.divf %306, %307 : vector<8x96xf32>
    %309 = vector.extract_strided_slice %308 {offsets = [0, 0], sizes = [8, 32], strides = [1, 1]} : vector<8x96xf32> to vector<8x32xf32>
    %310 = vector.extract_strided_slice %308 {offsets = [0, 32], sizes = [8, 32], strides = [1, 1]} : vector<8x96xf32> to vector<8x32xf32>
    %311 = vector.extract_strided_slice %308 {offsets = [0, 64], sizes = [8, 32], strides = [1, 1]} : vector<8x96xf32> to vector<8x32xf32>
    %312 = vector.extract_strided_slice %295 {offsets = [0, 96], sizes = [8, 32], strides = [1, 1]} : vector<8x128xf32> to vector<8x32xf32>
    %313 = math.tanh %312 : vector<8x32xf32>
    %314 = arith.mulf %310, %259 : vector<8x32xf32>
    %315 = arith.mulf %309, %313 : vector<8x32xf32>
    %316 = arith.addf %314, %315 : vector<8x32xf32>
    %317 = math.tanh %316 : vector<8x32xf32>
    %318 = arith.mulf %311, %317 : vector<8x32xf32>
    %319 = vector.extract_strided_slice %302 {offsets = [0, 0], sizes = [8, 96], strides = [1, 1]} : vector<8x128xf32> to vector<8x96xf32>
    %320 = arith.negf %319 : vector<8x96xf32>
    %321 = math.exp %320 : vector<8x96xf32>
    %cst_73 = arith.constant 1.000000e+00 : f32
    %322 = vector.broadcast %cst_73 : f32 to vector<8x96xf32>
    %323 = arith.addf %322, %321 : vector<8x96xf32>
    %324 = arith.divf %322, %323 : vector<8x96xf32>
    %325 = vector.extract_strided_slice %324 {offsets = [0, 0], sizes = [8, 32], strides = [1, 1]} : vector<8x96xf32> to vector<8x32xf32>
    %326 = vector.extract_strided_slice %324 {offsets = [0, 32], sizes = [8, 32], strides = [1, 1]} : vector<8x96xf32> to vector<8x32xf32>
    %327 = vector.extract_strided_slice %324 {offsets = [0, 64], sizes = [8, 32], strides = [1, 1]} : vector<8x96xf32> to vector<8x32xf32>
    %328 = vector.extract_strided_slice %302 {offsets = [0, 96], sizes = [8, 32], strides = [1, 1]} : vector<8x128xf32> to vector<8x32xf32>
    %329 = math.tanh %328 : vector<8x32xf32>
    %330 = arith.mulf %326, %275 : vector<8x32xf32>
    %331 = arith.mulf %325, %329 : vector<8x32xf32>
    %332 = arith.addf %330, %331 : vector<8x32xf32>
    %333 = math.tanh %332 : vector<8x32xf32>
    %334 = arith.mulf %327, %333 : vector<8x32xf32>
    %335 = arith.truncf %318 : vector<8x32xf32> to vector<8x32xbf16>
    %336 = arith.index_cast %c5_i32 : i32 to index
    %c0_74 = arith.constant 0 : index
    %c0_75 = arith.constant 0 : index
    %337 = vector.load %arg3[%336, %c0_74, %c0_75] : memref<8x8x64xbf16, #tpu.memory_space<vmem>>, vector<1x8x32xbf16>
    %338 = vector.shape_cast %337 : vector<1x8x32xbf16> to vector<8x32xbf16>
    %339 = vector.shape_cast %335 : vector<8x32xbf16> to vector<1x8x32xbf16>
    tpu.vector_store %arg3[%336, %c0_74, %c0_75], %339 {strides = array<i32>} : memref<8x8x64xbf16, #tpu.memory_space<vmem>>, vector<1x8x32xbf16>,
    %340 = arith.truncf %334 : vector<8x32xf32> to vector<8x32xbf16>
    %341 = arith.index_cast %288 : i32 to index
    %c0_76 = arith.constant 0 : index
    %c32_77 = arith.constant 32 : index
    %342 = vector.load %arg3[%341, %c0_76, %c32_77] : memref<8x8x64xbf16, #tpu.memory_space<vmem>>, vector<1x8x32xbf16>
    %343 = vector.shape_cast %342 : vector<1x8x32xbf16> to vector<8x32xbf16>
    %344 = vector.shape_cast %340 : vector<8x32xbf16> to vector<1x8x32xbf16>
    tpu.vector_store %arg3[%341, %c0_76, %c32_77], %344 {strides = array<i32>} : memref<8x8x64xbf16, #tpu.memory_space<vmem>>, vector<1x8x32xbf16>,
    %c6_i32 = arith.constant 6 : i32
    %c7_i32_78 = arith.constant 7 : i32
    %345 = arith.subi %c7_i32_78, %c6_i32 : i32
    %346 = arith.index_cast %c6_i32 : i32 to index
    %c0_79 = arith.constant 0 : index
    %c0_80 = arith.constant 0 : index
    %347 = vector.load %arg0[%346, %c0_79, %c0_80] : memref<8x8x256xbf16, #tpu.memory_space<vmem>>, vector<1x8x128xbf16>
    %348 = vector.shape_cast %347 : vector<1x8x128xbf16> to vector<8x128xbf16>
    %349 = arith.extf %348 : vector<8x128xbf16> to vector<8x128xf32>
    %350 = arith.truncf %318 : vector<8x32xf32> to vector<8x32xbf16>
    %cst_81 = arith.constant dense<0.000000e+00> : vector<8x128xf32>
    %351 = tpu.matmul %350, %0, %cst_81 {dimension_numbers = #tpu.dot_dimension_numbers<[1], [0], [0], [1], [0, 0, 1, 1], [], []>} : vector<8x32xbf16>, vector<32x128xbf16>, vector<8x128xf32> -> vector<8x128xf32>
    %352 = arith.addf %349, %351 : vector<8x128xf32>
    %353 = arith.index_cast %345 : i32 to index
    %c0_82 = arith.constant 0 : index
    %c128_83 = arith.constant 128 : index
    %354 = vector.load %arg0[%353, %c0_82, %c128_83] : memref<8x8x256xbf16, #tpu.memory_space<vmem>>, vector<1x8x128xbf16>
    %355 = vector.shape_cast %354 : vector<1x8x128xbf16> to vector<8x128xbf16>
    %356 = arith.extf %355 : vector<8x128xbf16> to vector<8x128xf32>
    %357 = arith.truncf %334 : vector<8x32xf32> to vector<8x32xbf16>
    %cst_84 = arith.constant dense<0.000000e+00> : vector<8x128xf32>
    %358 = tpu.matmul %357, %1, %cst_84 {dimension_numbers = #tpu.dot_dimension_numbers<[1], [0], [0], [1], [0, 0, 1, 1], [], []>} : vector<8x32xbf16>, vector<32x128xbf16>, vector<8x128xf32> -> vector<8x128xf32>
    %359 = arith.addf %356, %358 : vector<8x128xf32>
    %360 = vector.extract_strided_slice %352 {offsets = [0, 0], sizes = [8, 96], strides = [1, 1]} : vector<8x128xf32> to vector<8x96xf32>
    %361 = arith.negf %360 : vector<8x96xf32>
    %362 = math.exp %361 : vector<8x96xf32>
    %cst_85 = arith.constant 1.000000e+00 : f32
    %363 = vector.broadcast %cst_85 : f32 to vector<8x96xf32>
    %364 = arith.addf %363, %362 : vector<8x96xf32>
    %365 = arith.divf %363, %364 : vector<8x96xf32>
    %366 = vector.extract_strided_slice %365 {offsets = [0, 0], sizes = [8, 32], strides = [1, 1]} : vector<8x96xf32> to vector<8x32xf32>
    %367 = vector.extract_strided_slice %365 {offsets = [0, 32], sizes = [8, 32], strides = [1, 1]} : vector<8x96xf32> to vector<8x32xf32>
    %368 = vector.extract_strided_slice %365 {offsets = [0, 64], sizes = [8, 32], strides = [1, 1]} : vector<8x96xf32> to vector<8x32xf32>
    %369 = vector.extract_strided_slice %352 {offsets = [0, 96], sizes = [8, 32], strides = [1, 1]} : vector<8x128xf32> to vector<8x32xf32>
    %370 = math.tanh %369 : vector<8x32xf32>
    %371 = arith.mulf %367, %316 : vector<8x32xf32>
    %372 = arith.mulf %366, %370 : vector<8x32xf32>
    %373 = arith.addf %371, %372 : vector<8x32xf32>
    %374 = math.tanh %373 : vector<8x32xf32>
    %375 = arith.mulf %368, %374 : vector<8x32xf32>
    %376 = vector.extract_strided_slice %359 {offsets = [0, 0], sizes = [8, 96], strides = [1, 1]} : vector<8x128xf32> to vector<8x96xf32>
    %377 = arith.negf %376 : vector<8x96xf32>
    %378 = math.exp %377 : vector<8x96xf32>
    %cst_86 = arith.constant 1.000000e+00 : f32
    %379 = vector.broadcast %cst_86 : f32 to vector<8x96xf32>
    %380 = arith.addf %379, %378 : vector<8x96xf32>
    %381 = arith.divf %379, %380 : vector<8x96xf32>
    %382 = vector.extract_strided_slice %381 {offsets = [0, 0], sizes = [8, 32], strides = [1, 1]} : vector<8x96xf32> to vector<8x32xf32>
    %383 = vector.extract_strided_slice %381 {offsets = [0, 32], sizes = [8, 32], strides = [1, 1]} : vector<8x96xf32> to vector<8x32xf32>
    %384 = vector.extract_strided_slice %381 {offsets = [0, 64], sizes = [8, 32], strides = [1, 1]} : vector<8x96xf32> to vector<8x32xf32>
    %385 = vector.extract_strided_slice %359 {offsets = [0, 96], sizes = [8, 32], strides = [1, 1]} : vector<8x128xf32> to vector<8x32xf32>
    %386 = math.tanh %385 : vector<8x32xf32>
    %387 = arith.mulf %383, %332 : vector<8x32xf32>
    %388 = arith.mulf %382, %386 : vector<8x32xf32>
    %389 = arith.addf %387, %388 : vector<8x32xf32>
    %390 = math.tanh %389 : vector<8x32xf32>
    %391 = arith.mulf %384, %390 : vector<8x32xf32>
    %392 = arith.truncf %375 : vector<8x32xf32> to vector<8x32xbf16>
    %393 = arith.index_cast %c6_i32 : i32 to index
    %c0_87 = arith.constant 0 : index
    %c0_88 = arith.constant 0 : index
    %394 = vector.load %arg3[%393, %c0_87, %c0_88] : memref<8x8x64xbf16, #tpu.memory_space<vmem>>, vector<1x8x32xbf16>
    %395 = vector.shape_cast %394 : vector<1x8x32xbf16> to vector<8x32xbf16>
    %396 = vector.shape_cast %392 : vector<8x32xbf16> to vector<1x8x32xbf16>
    tpu.vector_store %arg3[%393, %c0_87, %c0_88], %396 {strides = array<i32>} : memref<8x8x64xbf16, #tpu.memory_space<vmem>>, vector<1x8x32xbf16>,
    %397 = arith.truncf %391 : vector<8x32xf32> to vector<8x32xbf16>
    %398 = arith.index_cast %345 : i32 to index
    %c0_89 = arith.constant 0 : index
    %c32_90 = arith.constant 32 : index
    %399 = vector.load %arg3[%398, %c0_89, %c32_90] : memref<8x8x64xbf16, #tpu.memory_space<vmem>>, vector<1x8x32xbf16>
    %400 = vector.shape_cast %399 : vector<1x8x32xbf16> to vector<8x32xbf16>
    %401 = vector.shape_cast %397 : vector<8x32xbf16> to vector<1x8x32xbf16>
    tpu.vector_store %arg3[%398, %c0_89, %c32_90], %401 {strides = array<i32>} : memref<8x8x64xbf16, #tpu.memory_space<vmem>>, vector<1x8x32xbf16>,
    %c7_i32_91 = arith.constant 7 : i32
    %c7_i32_92 = arith.constant 7 : i32
    %402 = arith.subi %c7_i32_92, %c7_i32_91 : i32
    %403 = arith.index_cast %c7_i32_91 : i32 to index
    %c0_93 = arith.constant 0 : index
    %c0_94 = arith.constant 0 : index
    %404 = vector.load %arg0[%403, %c0_93, %c0_94] : memref<8x8x256xbf16, #tpu.memory_space<vmem>>, vector<1x8x128xbf16>
    %405 = vector.shape_cast %404 : vector<1x8x128xbf16> to vector<8x128xbf16>
    %406 = arith.extf %405 : vector<8x128xbf16> to vector<8x128xf32>
    %407 = arith.truncf %375 : vector<8x32xf32> to vector<8x32xbf16>
    %cst_95 = arith.constant dense<0.000000e+00> : vector<8x128xf32>
    %408 = tpu.matmul %407, %0, %cst_95 {dimension_numbers = #tpu.dot_dimension_numbers<[1], [0], [0], [1], [0, 0, 1, 1], [], []>} : vector<8x32xbf16>, vector<32x128xbf16>, vector<8x128xf32> -> vector<8x128xf32>
    %409 = arith.addf %406, %408 : vector<8x128xf32>
    %410 = arith.index_cast %402 : i32 to index
    %c0_96 = arith.constant 0 : index
    %c128_97 = arith.constant 128 : index
    %411 = vector.load %arg0[%410, %c0_96, %c128_97] : memref<8x8x256xbf16, #tpu.memory_space<vmem>>, vector<1x8x128xbf16>
    %412 = vector.shape_cast %411 : vector<1x8x128xbf16> to vector<8x128xbf16>
    %413 = arith.extf %412 : vector<8x128xbf16> to vector<8x128xf32>
    %414 = arith.truncf %391 : vector<8x32xf32> to vector<8x32xbf16>
    %cst_98 = arith.constant dense<0.000000e+00> : vector<8x128xf32>
    %415 = tpu.matmul %414, %1, %cst_98 {dimension_numbers = #tpu.dot_dimension_numbers<[1], [0], [0], [1], [0, 0, 1, 1], [], []>} : vector<8x32xbf16>, vector<32x128xbf16>, vector<8x128xf32> -> vector<8x128xf32>
    %416 = arith.addf %413, %415 : vector<8x128xf32>
    %417 = vector.extract_strided_slice %409 {offsets = [0, 0], sizes = [8, 96], strides = [1, 1]} : vector<8x128xf32> to vector<8x96xf32>
    %418 = arith.negf %417 : vector<8x96xf32>
    %419 = math.exp %418 : vector<8x96xf32>
    %cst_99 = arith.constant 1.000000e+00 : f32
    %420 = vector.broadcast %cst_99 : f32 to vector<8x96xf32>
    %421 = arith.addf %420, %419 : vector<8x96xf32>
    %422 = arith.divf %420, %421 : vector<8x96xf32>
    %423 = vector.extract_strided_slice %422 {offsets = [0, 0], sizes = [8, 32], strides = [1, 1]} : vector<8x96xf32> to vector<8x32xf32>
    %424 = vector.extract_strided_slice %422 {offsets = [0, 32], sizes = [8, 32], strides = [1, 1]} : vector<8x96xf32> to vector<8x32xf32>
    %425 = vector.extract_strided_slice %422 {offsets = [0, 64], sizes = [8, 32], strides = [1, 1]} : vector<8x96xf32> to vector<8x32xf32>
    %426 = vector.extract_strided_slice %409 {offsets = [0, 96], sizes = [8, 32], strides = [1, 1]} : vector<8x128xf32> to vector<8x32xf32>
    %427 = math.tanh %426 : vector<8x32xf32>
    %428 = arith.mulf %424, %373 : vector<8x32xf32>
    %429 = arith.mulf %423, %427 : vector<8x32xf32>
    %430 = arith.addf %428, %429 : vector<8x32xf32>
    %431 = math.tanh %430 : vector<8x32xf32>
    %432 = arith.mulf %425, %431 : vector<8x32xf32>
    %433 = vector.extract_strided_slice %416 {offsets = [0, 0], sizes = [8, 96], strides = [1, 1]} : vector<8x128xf32> to vector<8x96xf32>
    %434 = arith.negf %433 : vector<8x96xf32>
    %435 = math.exp %434 : vector<8x96xf32>
    %cst_100 = arith.constant 1.000000e+00 : f32
    %436 = vector.broadcast %cst_100 : f32 to vector<8x96xf32>
    %437 = arith.addf %436, %435 : vector<8x96xf32>
    %438 = arith.divf %436, %437 : vector<8x96xf32>
    %439 = vector.extract_strided_slice %438 {offsets = [0, 0], sizes = [8, 32], strides = [1, 1]} : vector<8x96xf32> to vector<8x32xf32>
    %440 = vector.extract_strided_slice %438 {offsets = [0, 32], sizes = [8, 32], strides = [1, 1]} : vector<8x96xf32> to vector<8x32xf32>
    %441 = vector.extract_strided_slice %438 {offsets = [0, 64], sizes = [8, 32], strides = [1, 1]} : vector<8x96xf32> to vector<8x32xf32>
    %442 = vector.extract_strided_slice %416 {offsets = [0, 96], sizes = [8, 32], strides = [1, 1]} : vector<8x128xf32> to vector<8x32xf32>
    %443 = math.tanh %442 : vector<8x32xf32>
    %444 = arith.mulf %440, %389 : vector<8x32xf32>
    %445 = arith.mulf %439, %443 : vector<8x32xf32>
    %446 = arith.addf %444, %445 : vector<8x32xf32>
    %447 = math.tanh %446 : vector<8x32xf32>
    %448 = arith.mulf %441, %447 : vector<8x32xf32>
    %449 = arith.truncf %432 : vector<8x32xf32> to vector<8x32xbf16>
    %450 = arith.index_cast %c7_i32_91 : i32 to index
    %c0_101 = arith.constant 0 : index
    %c0_102 = arith.constant 0 : index
    %451 = vector.load %arg3[%450, %c0_101, %c0_102] : memref<8x8x64xbf16, #tpu.memory_space<vmem>>, vector<1x8x32xbf16>
    %452 = vector.shape_cast %451 : vector<1x8x32xbf16> to vector<8x32xbf16>
    %453 = vector.shape_cast %449 : vector<8x32xbf16> to vector<1x8x32xbf16>
    tpu.vector_store %arg3[%450, %c0_101, %c0_102], %453 {strides = array<i32>} : memref<8x8x64xbf16, #tpu.memory_space<vmem>>, vector<1x8x32xbf16>,
    %454 = arith.truncf %448 : vector<8x32xf32> to vector<8x32xbf16>
    %455 = arith.index_cast %402 : i32 to index
    %c0_103 = arith.constant 0 : index
    %c32_104 = arith.constant 32 : index
    %456 = vector.load %arg3[%455, %c0_103, %c32_104] : memref<8x8x64xbf16, #tpu.memory_space<vmem>>, vector<1x8x32xbf16>
    %457 = vector.shape_cast %456 : vector<1x8x32xbf16> to vector<8x32xbf16>
    %458 = vector.shape_cast %454 : vector<8x32xbf16> to vector<1x8x32xbf16>
    tpu.vector_store %arg3[%455, %c0_103, %c32_104], %458 {strides = array<i32>} : memref<8x8x64xbf16, #tpu.memory_space<vmem>>, vector<1x8x32xbf16>,
    %c8_i32 = arith.constant 8 : i32
    return
  }
}

module attributes {stable_mosaic.version = 11 : i64} {
  func.func @_bilstm_final_head_kernel(%arg0: memref<8x8x64xbf16, #tpu.memory_space<vmem>>, %arg1: memref<64x256xbf16, #tpu.memory_space<vmem>>, %arg2: memref<1x256xf32, #tpu.memory_space<vmem>>, %arg3: memref<32x128xbf16, #tpu.memory_space<vmem>>, %arg4: memref<32x128xbf16, #tpu.memory_space<vmem>>, %arg5: memref<64x16xf32, #tpu.memory_space<vmem>>, %arg6: memref<1x16xf32, #tpu.memory_space<vmem>>, %arg7: memref<16x4xf32, #tpu.memory_space<vmem>>, %arg8: memref<1x4xf32, #tpu.memory_space<vmem>>, %arg9: memref<8x4xf32, #tpu.memory_space<vmem>>, %arg10: memref<8x4xf32, #tpu.memory_space<vmem>>, %arg11: memref<8x8x256xbf16, #tpu.memory_space<vmem>>) attributes {dimension_semantics = [], scalar_prefetch = 0 : i64, scratch_operands = 1 : i64, tpu.core_type = #tpu.core_type<tc>} {
    %c0 = arith.constant 0 : index
    %c0_0 = arith.constant 0 : index
    %c0_1 = arith.constant 0 : index
    %0 = vector.load %arg0[%c0, %c0_0, %c0_1] : memref<8x8x64xbf16, #tpu.memory_space<vmem>>, vector<8x8x64xbf16>
    %1 = vector.shape_cast %0 : vector<8x8x64xbf16> to vector<64x64xbf16>
    %c0_2 = arith.constant 0 : index
    %c0_3 = arith.constant 0 : index
    %2 = vector.load %arg1[%c0_2, %c0_3] : memref<64x256xbf16, #tpu.memory_space<vmem>>, vector<64x256xbf16>
    %cst = arith.constant dense<0.000000e+00> : vector<64x256xf32>
    %3 = tpu.matmul %1, %2, %cst {dimension_numbers = #tpu.dot_dimension_numbers<[1], [0], [0], [1], [0, 0, 1, 1], [], []>} : vector<64x64xbf16>, vector<64x256xbf16>, vector<64x256xf32> -> vector<64x256xf32>
    %c0_4 = arith.constant 0 : index
    %c0_5 = arith.constant 0 : index
    %4 = vector.load %arg2[%c0_4, %c0_5] : memref<1x256xf32, #tpu.memory_space<vmem>>, vector<1x256xf32>
    %5 = vector.broadcast %4 : vector<1x256xf32> to vector<64x256xf32>
    %6 = arith.addf %3, %5 : vector<64x256xf32>
    %7 = vector.shape_cast %6 : vector<64x256xf32> to vector<8x8x256xf32>
    %8 = arith.truncf %7 : vector<8x8x256xf32> to vector<8x8x256xbf16>
    %c0_6 = arith.constant 0 : index
    %c0_7 = arith.constant 0 : index
    %c0_8 = arith.constant 0 : index
    %9 = vector.load %arg11[%c0_6, %c0_7, %c0_8] : memref<8x8x256xbf16, #tpu.memory_space<vmem>>, vector<8x8x256xbf16>
    tpu.vector_store %arg11[%c0_6, %c0_7, %c0_8], %8 {strides = array<i32>} : memref<8x8x256xbf16, #tpu.memory_space<vmem>>, vector<8x8x256xbf16>,
    %c0_9 = arith.constant 0 : index
    %c0_10 = arith.constant 0 : index
    %10 = vector.load %arg3[%c0_9, %c0_10] : memref<32x128xbf16, #tpu.memory_space<vmem>>, vector<32x128xbf16>
    %c0_11 = arith.constant 0 : index
    %c0_12 = arith.constant 0 : index
    %11 = vector.load %arg4[%c0_11, %c0_12] : memref<32x128xbf16, #tpu.memory_space<vmem>>, vector<32x128xbf16>
    %cst_13 = arith.constant 0.000000e+00 : f32
    %12 = vector.broadcast %cst_13 : f32 to vector<8x32xf32>
    %c0_i32 = arith.constant 0 : i32
    %c7_i32 = arith.constant 7 : i32
    %13 = arith.subi %c7_i32, %c0_i32 : i32
    %14 = arith.index_cast %c0_i32 : i32 to index
    %c0_14 = arith.constant 0 : index
    %c0_15 = arith.constant 0 : index
    %15 = vector.load %arg11[%14, %c0_14, %c0_15] : memref<8x8x256xbf16, #tpu.memory_space<vmem>>, vector<1x8x128xbf16>
    %16 = vector.shape_cast %15 : vector<1x8x128xbf16> to vector<8x128xbf16>
    %17 = arith.extf %16 : vector<8x128xbf16> to vector<8x128xf32>
    %18 = arith.truncf %12 : vector<8x32xf32> to vector<8x32xbf16>
    %cst_16 = arith.constant dense<0.000000e+00> : vector<8x128xf32>
    %19 = tpu.matmul %18, %10, %cst_16 {dimension_numbers = #tpu.dot_dimension_numbers<[1], [0], [0], [1], [0, 0, 1, 1], [], []>} : vector<8x32xbf16>, vector<32x128xbf16>, vector<8x128xf32> -> vector<8x128xf32>
    %20 = arith.addf %17, %19 : vector<8x128xf32>
    %21 = arith.index_cast %13 : i32 to index
    %c0_17 = arith.constant 0 : index
    %c128 = arith.constant 128 : index
    %22 = vector.load %arg11[%21, %c0_17, %c128] : memref<8x8x256xbf16, #tpu.memory_space<vmem>>, vector<1x8x128xbf16>
    %23 = vector.shape_cast %22 : vector<1x8x128xbf16> to vector<8x128xbf16>
    %24 = arith.extf %23 : vector<8x128xbf16> to vector<8x128xf32>
    %25 = arith.truncf %12 : vector<8x32xf32> to vector<8x32xbf16>
    %cst_18 = arith.constant dense<0.000000e+00> : vector<8x128xf32>
    %26 = tpu.matmul %25, %11, %cst_18 {dimension_numbers = #tpu.dot_dimension_numbers<[1], [0], [0], [1], [0, 0, 1, 1], [], []>} : vector<8x32xbf16>, vector<32x128xbf16>, vector<8x128xf32> -> vector<8x128xf32>
    %27 = arith.addf %24, %26 : vector<8x128xf32>
    %28 = vector.extract_strided_slice %20 {offsets = [0, 0], sizes = [8, 96], strides = [1, 1]} : vector<8x128xf32> to vector<8x96xf32>
    %29 = arith.negf %28 : vector<8x96xf32>
    %30 = math.exp %29 : vector<8x96xf32>
    %cst_19 = arith.constant 1.000000e+00 : f32
    %31 = vector.broadcast %cst_19 : f32 to vector<8x96xf32>
    %32 = arith.addf %31, %30 : vector<8x96xf32>
    %33 = arith.divf %31, %32 : vector<8x96xf32>
    %34 = vector.extract_strided_slice %33 {offsets = [0, 0], sizes = [8, 32], strides = [1, 1]} : vector<8x96xf32> to vector<8x32xf32>
    %35 = vector.extract_strided_slice %33 {offsets = [0, 32], sizes = [8, 32], strides = [1, 1]} : vector<8x96xf32> to vector<8x32xf32>
    %36 = vector.extract_strided_slice %33 {offsets = [0, 64], sizes = [8, 32], strides = [1, 1]} : vector<8x96xf32> to vector<8x32xf32>
    %37 = vector.extract_strided_slice %20 {offsets = [0, 96], sizes = [8, 32], strides = [1, 1]} : vector<8x128xf32> to vector<8x32xf32>
    %38 = math.tanh %37 : vector<8x32xf32>
    %39 = arith.mulf %35, %12 : vector<8x32xf32>
    %40 = arith.mulf %34, %38 : vector<8x32xf32>
    %41 = arith.addf %39, %40 : vector<8x32xf32>
    %42 = math.tanh %41 : vector<8x32xf32>
    %43 = arith.mulf %36, %42 : vector<8x32xf32>
    %44 = vector.extract_strided_slice %27 {offsets = [0, 0], sizes = [8, 96], strides = [1, 1]} : vector<8x128xf32> to vector<8x96xf32>
    %45 = arith.negf %44 : vector<8x96xf32>
    %46 = math.exp %45 : vector<8x96xf32>
    %cst_20 = arith.constant 1.000000e+00 : f32
    %47 = vector.broadcast %cst_20 : f32 to vector<8x96xf32>
    %48 = arith.addf %47, %46 : vector<8x96xf32>
    %49 = arith.divf %47, %48 : vector<8x96xf32>
    %50 = vector.extract_strided_slice %49 {offsets = [0, 0], sizes = [8, 32], strides = [1, 1]} : vector<8x96xf32> to vector<8x32xf32>
    %51 = vector.extract_strided_slice %49 {offsets = [0, 32], sizes = [8, 32], strides = [1, 1]} : vector<8x96xf32> to vector<8x32xf32>
    %52 = vector.extract_strided_slice %49 {offsets = [0, 64], sizes = [8, 32], strides = [1, 1]} : vector<8x96xf32> to vector<8x32xf32>
    %53 = vector.extract_strided_slice %27 {offsets = [0, 96], sizes = [8, 32], strides = [1, 1]} : vector<8x128xf32> to vector<8x32xf32>
    %54 = math.tanh %53 : vector<8x32xf32>
    %55 = arith.mulf %51, %12 : vector<8x32xf32>
    %56 = arith.mulf %50, %54 : vector<8x32xf32>
    %57 = arith.addf %55, %56 : vector<8x32xf32>
    %58 = math.tanh %57 : vector<8x32xf32>
    %59 = arith.mulf %52, %58 : vector<8x32xf32>
    %c1_i32 = arith.constant 1 : i32
    %c7_i32_21 = arith.constant 7 : i32
    %60 = arith.subi %c7_i32_21, %c1_i32 : i32
    %61 = arith.index_cast %c1_i32 : i32 to index
    %c0_22 = arith.constant 0 : index
    %c0_23 = arith.constant 0 : index
    %62 = vector.load %arg11[%61, %c0_22, %c0_23] : memref<8x8x256xbf16, #tpu.memory_space<vmem>>, vector<1x8x128xbf16>
    %63 = vector.shape_cast %62 : vector<1x8x128xbf16> to vector<8x128xbf16>
    %64 = arith.extf %63 : vector<8x128xbf16> to vector<8x128xf32>
    %65 = arith.truncf %43 : vector<8x32xf32> to vector<8x32xbf16>
    %cst_24 = arith.constant dense<0.000000e+00> : vector<8x128xf32>
    %66 = tpu.matmul %65, %10, %cst_24 {dimension_numbers = #tpu.dot_dimension_numbers<[1], [0], [0], [1], [0, 0, 1, 1], [], []>} : vector<8x32xbf16>, vector<32x128xbf16>, vector<8x128xf32> -> vector<8x128xf32>
    %67 = arith.addf %64, %66 : vector<8x128xf32>
    %68 = arith.index_cast %60 : i32 to index
    %c0_25 = arith.constant 0 : index
    %c128_26 = arith.constant 128 : index
    %69 = vector.load %arg11[%68, %c0_25, %c128_26] : memref<8x8x256xbf16, #tpu.memory_space<vmem>>, vector<1x8x128xbf16>
    %70 = vector.shape_cast %69 : vector<1x8x128xbf16> to vector<8x128xbf16>
    %71 = arith.extf %70 : vector<8x128xbf16> to vector<8x128xf32>
    %72 = arith.truncf %59 : vector<8x32xf32> to vector<8x32xbf16>
    %cst_27 = arith.constant dense<0.000000e+00> : vector<8x128xf32>
    %73 = tpu.matmul %72, %11, %cst_27 {dimension_numbers = #tpu.dot_dimension_numbers<[1], [0], [0], [1], [0, 0, 1, 1], [], []>} : vector<8x32xbf16>, vector<32x128xbf16>, vector<8x128xf32> -> vector<8x128xf32>
    %74 = arith.addf %71, %73 : vector<8x128xf32>
    %75 = vector.extract_strided_slice %67 {offsets = [0, 0], sizes = [8, 96], strides = [1, 1]} : vector<8x128xf32> to vector<8x96xf32>
    %76 = arith.negf %75 : vector<8x96xf32>
    %77 = math.exp %76 : vector<8x96xf32>
    %cst_28 = arith.constant 1.000000e+00 : f32
    %78 = vector.broadcast %cst_28 : f32 to vector<8x96xf32>
    %79 = arith.addf %78, %77 : vector<8x96xf32>
    %80 = arith.divf %78, %79 : vector<8x96xf32>
    %81 = vector.extract_strided_slice %80 {offsets = [0, 0], sizes = [8, 32], strides = [1, 1]} : vector<8x96xf32> to vector<8x32xf32>
    %82 = vector.extract_strided_slice %80 {offsets = [0, 32], sizes = [8, 32], strides = [1, 1]} : vector<8x96xf32> to vector<8x32xf32>
    %83 = vector.extract_strided_slice %80 {offsets = [0, 64], sizes = [8, 32], strides = [1, 1]} : vector<8x96xf32> to vector<8x32xf32>
    %84 = vector.extract_strided_slice %67 {offsets = [0, 96], sizes = [8, 32], strides = [1, 1]} : vector<8x128xf32> to vector<8x32xf32>
    %85 = math.tanh %84 : vector<8x32xf32>
    %86 = arith.mulf %82, %41 : vector<8x32xf32>
    %87 = arith.mulf %81, %85 : vector<8x32xf32>
    %88 = arith.addf %86, %87 : vector<8x32xf32>
    %89 = math.tanh %88 : vector<8x32xf32>
    %90 = arith.mulf %83, %89 : vector<8x32xf32>
    %91 = vector.extract_strided_slice %74 {offsets = [0, 0], sizes = [8, 96], strides = [1, 1]} : vector<8x128xf32> to vector<8x96xf32>
    %92 = arith.negf %91 : vector<8x96xf32>
    %93 = math.exp %92 : vector<8x96xf32>
    %cst_29 = arith.constant 1.000000e+00 : f32
    %94 = vector.broadcast %cst_29 : f32 to vector<8x96xf32>
    %95 = arith.addf %94, %93 : vector<8x96xf32>
    %96 = arith.divf %94, %95 : vector<8x96xf32>
    %97 = vector.extract_strided_slice %96 {offsets = [0, 0], sizes = [8, 32], strides = [1, 1]} : vector<8x96xf32> to vector<8x32xf32>
    %98 = vector.extract_strided_slice %96 {offsets = [0, 32], sizes = [8, 32], strides = [1, 1]} : vector<8x96xf32> to vector<8x32xf32>
    %99 = vector.extract_strided_slice %96 {offsets = [0, 64], sizes = [8, 32], strides = [1, 1]} : vector<8x96xf32> to vector<8x32xf32>
    %100 = vector.extract_strided_slice %74 {offsets = [0, 96], sizes = [8, 32], strides = [1, 1]} : vector<8x128xf32> to vector<8x32xf32>
    %101 = math.tanh %100 : vector<8x32xf32>
    %102 = arith.mulf %98, %57 : vector<8x32xf32>
    %103 = arith.mulf %97, %101 : vector<8x32xf32>
    %104 = arith.addf %102, %103 : vector<8x32xf32>
    %105 = math.tanh %104 : vector<8x32xf32>
    %106 = arith.mulf %99, %105 : vector<8x32xf32>
    %c2_i32 = arith.constant 2 : i32
    %c7_i32_30 = arith.constant 7 : i32
    %107 = arith.subi %c7_i32_30, %c2_i32 : i32
    %108 = arith.index_cast %c2_i32 : i32 to index
    %c0_31 = arith.constant 0 : index
    %c0_32 = arith.constant 0 : index
    %109 = vector.load %arg11[%108, %c0_31, %c0_32] : memref<8x8x256xbf16, #tpu.memory_space<vmem>>, vector<1x8x128xbf16>
    %110 = vector.shape_cast %109 : vector<1x8x128xbf16> to vector<8x128xbf16>
    %111 = arith.extf %110 : vector<8x128xbf16> to vector<8x128xf32>
    %112 = arith.truncf %90 : vector<8x32xf32> to vector<8x32xbf16>
    %cst_33 = arith.constant dense<0.000000e+00> : vector<8x128xf32>
    %113 = tpu.matmul %112, %10, %cst_33 {dimension_numbers = #tpu.dot_dimension_numbers<[1], [0], [0], [1], [0, 0, 1, 1], [], []>} : vector<8x32xbf16>, vector<32x128xbf16>, vector<8x128xf32> -> vector<8x128xf32>
    %114 = arith.addf %111, %113 : vector<8x128xf32>
    %115 = arith.index_cast %107 : i32 to index
    %c0_34 = arith.constant 0 : index
    %c128_35 = arith.constant 128 : index
    %116 = vector.load %arg11[%115, %c0_34, %c128_35] : memref<8x8x256xbf16, #tpu.memory_space<vmem>>, vector<1x8x128xbf16>
    %117 = vector.shape_cast %116 : vector<1x8x128xbf16> to vector<8x128xbf16>
    %118 = arith.extf %117 : vector<8x128xbf16> to vector<8x128xf32>
    %119 = arith.truncf %106 : vector<8x32xf32> to vector<8x32xbf16>
    %cst_36 = arith.constant dense<0.000000e+00> : vector<8x128xf32>
    %120 = tpu.matmul %119, %11, %cst_36 {dimension_numbers = #tpu.dot_dimension_numbers<[1], [0], [0], [1], [0, 0, 1, 1], [], []>} : vector<8x32xbf16>, vector<32x128xbf16>, vector<8x128xf32> -> vector<8x128xf32>
    %121 = arith.addf %118, %120 : vector<8x128xf32>
    %122 = vector.extract_strided_slice %114 {offsets = [0, 0], sizes = [8, 96], strides = [1, 1]} : vector<8x128xf32> to vector<8x96xf32>
    %123 = arith.negf %122 : vector<8x96xf32>
    %124 = math.exp %123 : vector<8x96xf32>
    %cst_37 = arith.constant 1.000000e+00 : f32
    %125 = vector.broadcast %cst_37 : f32 to vector<8x96xf32>
    %126 = arith.addf %125, %124 : vector<8x96xf32>
    %127 = arith.divf %125, %126 : vector<8x96xf32>
    %128 = vector.extract_strided_slice %127 {offsets = [0, 0], sizes = [8, 32], strides = [1, 1]} : vector<8x96xf32> to vector<8x32xf32>
    %129 = vector.extract_strided_slice %127 {offsets = [0, 32], sizes = [8, 32], strides = [1, 1]} : vector<8x96xf32> to vector<8x32xf32>
    %130 = vector.extract_strided_slice %127 {offsets = [0, 64], sizes = [8, 32], strides = [1, 1]} : vector<8x96xf32> to vector<8x32xf32>
    %131 = vector.extract_strided_slice %114 {offsets = [0, 96], sizes = [8, 32], strides = [1, 1]} : vector<8x128xf32> to vector<8x32xf32>
    %132 = math.tanh %131 : vector<8x32xf32>
    %133 = arith.mulf %129, %88 : vector<8x32xf32>
    %134 = arith.mulf %128, %132 : vector<8x32xf32>
    %135 = arith.addf %133, %134 : vector<8x32xf32>
    %136 = math.tanh %135 : vector<8x32xf32>
    %137 = arith.mulf %130, %136 : vector<8x32xf32>
    %138 = vector.extract_strided_slice %121 {offsets = [0, 0], sizes = [8, 96], strides = [1, 1]} : vector<8x128xf32> to vector<8x96xf32>
    %139 = arith.negf %138 : vector<8x96xf32>
    %140 = math.exp %139 : vector<8x96xf32>
    %cst_38 = arith.constant 1.000000e+00 : f32
    %141 = vector.broadcast %cst_38 : f32 to vector<8x96xf32>
    %142 = arith.addf %141, %140 : vector<8x96xf32>
    %143 = arith.divf %141, %142 : vector<8x96xf32>
    %144 = vector.extract_strided_slice %143 {offsets = [0, 0], sizes = [8, 32], strides = [1, 1]} : vector<8x96xf32> to vector<8x32xf32>
    %145 = vector.extract_strided_slice %143 {offsets = [0, 32], sizes = [8, 32], strides = [1, 1]} : vector<8x96xf32> to vector<8x32xf32>
    %146 = vector.extract_strided_slice %143 {offsets = [0, 64], sizes = [8, 32], strides = [1, 1]} : vector<8x96xf32> to vector<8x32xf32>
    %147 = vector.extract_strided_slice %121 {offsets = [0, 96], sizes = [8, 32], strides = [1, 1]} : vector<8x128xf32> to vector<8x32xf32>
    %148 = math.tanh %147 : vector<8x32xf32>
    %149 = arith.mulf %145, %104 : vector<8x32xf32>
    %150 = arith.mulf %144, %148 : vector<8x32xf32>
    %151 = arith.addf %149, %150 : vector<8x32xf32>
    %152 = math.tanh %151 : vector<8x32xf32>
    %153 = arith.mulf %146, %152 : vector<8x32xf32>
    %c3_i32 = arith.constant 3 : i32
    %c7_i32_39 = arith.constant 7 : i32
    %154 = arith.subi %c7_i32_39, %c3_i32 : i32
    %155 = arith.index_cast %c3_i32 : i32 to index
    %c0_40 = arith.constant 0 : index
    %c0_41 = arith.constant 0 : index
    %156 = vector.load %arg11[%155, %c0_40, %c0_41] : memref<8x8x256xbf16, #tpu.memory_space<vmem>>, vector<1x8x128xbf16>
    %157 = vector.shape_cast %156 : vector<1x8x128xbf16> to vector<8x128xbf16>
    %158 = arith.extf %157 : vector<8x128xbf16> to vector<8x128xf32>
    %159 = arith.truncf %137 : vector<8x32xf32> to vector<8x32xbf16>
    %cst_42 = arith.constant dense<0.000000e+00> : vector<8x128xf32>
    %160 = tpu.matmul %159, %10, %cst_42 {dimension_numbers = #tpu.dot_dimension_numbers<[1], [0], [0], [1], [0, 0, 1, 1], [], []>} : vector<8x32xbf16>, vector<32x128xbf16>, vector<8x128xf32> -> vector<8x128xf32>
    %161 = arith.addf %158, %160 : vector<8x128xf32>
    %162 = arith.index_cast %154 : i32 to index
    %c0_43 = arith.constant 0 : index
    %c128_44 = arith.constant 128 : index
    %163 = vector.load %arg11[%162, %c0_43, %c128_44] : memref<8x8x256xbf16, #tpu.memory_space<vmem>>, vector<1x8x128xbf16>
    %164 = vector.shape_cast %163 : vector<1x8x128xbf16> to vector<8x128xbf16>
    %165 = arith.extf %164 : vector<8x128xbf16> to vector<8x128xf32>
    %166 = arith.truncf %153 : vector<8x32xf32> to vector<8x32xbf16>
    %cst_45 = arith.constant dense<0.000000e+00> : vector<8x128xf32>
    %167 = tpu.matmul %166, %11, %cst_45 {dimension_numbers = #tpu.dot_dimension_numbers<[1], [0], [0], [1], [0, 0, 1, 1], [], []>} : vector<8x32xbf16>, vector<32x128xbf16>, vector<8x128xf32> -> vector<8x128xf32>
    %168 = arith.addf %165, %167 : vector<8x128xf32>
    %169 = vector.extract_strided_slice %161 {offsets = [0, 0], sizes = [8, 96], strides = [1, 1]} : vector<8x128xf32> to vector<8x96xf32>
    %170 = arith.negf %169 : vector<8x96xf32>
    %171 = math.exp %170 : vector<8x96xf32>
    %cst_46 = arith.constant 1.000000e+00 : f32
    %172 = vector.broadcast %cst_46 : f32 to vector<8x96xf32>
    %173 = arith.addf %172, %171 : vector<8x96xf32>
    %174 = arith.divf %172, %173 : vector<8x96xf32>
    %175 = vector.extract_strided_slice %174 {offsets = [0, 0], sizes = [8, 32], strides = [1, 1]} : vector<8x96xf32> to vector<8x32xf32>
    %176 = vector.extract_strided_slice %174 {offsets = [0, 32], sizes = [8, 32], strides = [1, 1]} : vector<8x96xf32> to vector<8x32xf32>
    %177 = vector.extract_strided_slice %174 {offsets = [0, 64], sizes = [8, 32], strides = [1, 1]} : vector<8x96xf32> to vector<8x32xf32>
    %178 = vector.extract_strided_slice %161 {offsets = [0, 96], sizes = [8, 32], strides = [1, 1]} : vector<8x128xf32> to vector<8x32xf32>
    %179 = math.tanh %178 : vector<8x32xf32>
    %180 = arith.mulf %176, %135 : vector<8x32xf32>
    %181 = arith.mulf %175, %179 : vector<8x32xf32>
    %182 = arith.addf %180, %181 : vector<8x32xf32>
    %183 = math.tanh %182 : vector<8x32xf32>
    %184 = arith.mulf %177, %183 : vector<8x32xf32>
    %185 = vector.extract_strided_slice %168 {offsets = [0, 0], sizes = [8, 96], strides = [1, 1]} : vector<8x128xf32> to vector<8x96xf32>
    %186 = arith.negf %185 : vector<8x96xf32>
    %187 = math.exp %186 : vector<8x96xf32>
    %cst_47 = arith.constant 1.000000e+00 : f32
    %188 = vector.broadcast %cst_47 : f32 to vector<8x96xf32>
    %189 = arith.addf %188, %187 : vector<8x96xf32>
    %190 = arith.divf %188, %189 : vector<8x96xf32>
    %191 = vector.extract_strided_slice %190 {offsets = [0, 0], sizes = [8, 32], strides = [1, 1]} : vector<8x96xf32> to vector<8x32xf32>
    %192 = vector.extract_strided_slice %190 {offsets = [0, 32], sizes = [8, 32], strides = [1, 1]} : vector<8x96xf32> to vector<8x32xf32>
    %193 = vector.extract_strided_slice %190 {offsets = [0, 64], sizes = [8, 32], strides = [1, 1]} : vector<8x96xf32> to vector<8x32xf32>
    %194 = vector.extract_strided_slice %168 {offsets = [0, 96], sizes = [8, 32], strides = [1, 1]} : vector<8x128xf32> to vector<8x32xf32>
    %195 = math.tanh %194 : vector<8x32xf32>
    %196 = arith.mulf %192, %151 : vector<8x32xf32>
    %197 = arith.mulf %191, %195 : vector<8x32xf32>
    %198 = arith.addf %196, %197 : vector<8x32xf32>
    %199 = math.tanh %198 : vector<8x32xf32>
    %200 = arith.mulf %193, %199 : vector<8x32xf32>
    %c4_i32 = arith.constant 4 : i32
    %c7_i32_48 = arith.constant 7 : i32
    %201 = arith.subi %c7_i32_48, %c4_i32 : i32
    %202 = arith.index_cast %c4_i32 : i32 to index
    %c0_49 = arith.constant 0 : index
    %c0_50 = arith.constant 0 : index
    %203 = vector.load %arg11[%202, %c0_49, %c0_50] : memref<8x8x256xbf16, #tpu.memory_space<vmem>>, vector<1x8x128xbf16>
    %204 = vector.shape_cast %203 : vector<1x8x128xbf16> to vector<8x128xbf16>
    %205 = arith.extf %204 : vector<8x128xbf16> to vector<8x128xf32>
    %206 = arith.truncf %184 : vector<8x32xf32> to vector<8x32xbf16>
    %cst_51 = arith.constant dense<0.000000e+00> : vector<8x128xf32>
    %207 = tpu.matmul %206, %10, %cst_51 {dimension_numbers = #tpu.dot_dimension_numbers<[1], [0], [0], [1], [0, 0, 1, 1], [], []>} : vector<8x32xbf16>, vector<32x128xbf16>, vector<8x128xf32> -> vector<8x128xf32>
    %208 = arith.addf %205, %207 : vector<8x128xf32>
    %209 = arith.index_cast %201 : i32 to index
    %c0_52 = arith.constant 0 : index
    %c128_53 = arith.constant 128 : index
    %210 = vector.load %arg11[%209, %c0_52, %c128_53] : memref<8x8x256xbf16, #tpu.memory_space<vmem>>, vector<1x8x128xbf16>
    %211 = vector.shape_cast %210 : vector<1x8x128xbf16> to vector<8x128xbf16>
    %212 = arith.extf %211 : vector<8x128xbf16> to vector<8x128xf32>
    %213 = arith.truncf %200 : vector<8x32xf32> to vector<8x32xbf16>
    %cst_54 = arith.constant dense<0.000000e+00> : vector<8x128xf32>
    %214 = tpu.matmul %213, %11, %cst_54 {dimension_numbers = #tpu.dot_dimension_numbers<[1], [0], [0], [1], [0, 0, 1, 1], [], []>} : vector<8x32xbf16>, vector<32x128xbf16>, vector<8x128xf32> -> vector<8x128xf32>
    %215 = arith.addf %212, %214 : vector<8x128xf32>
    %216 = vector.extract_strided_slice %208 {offsets = [0, 0], sizes = [8, 96], strides = [1, 1]} : vector<8x128xf32> to vector<8x96xf32>
    %217 = arith.negf %216 : vector<8x96xf32>
    %218 = math.exp %217 : vector<8x96xf32>
    %cst_55 = arith.constant 1.000000e+00 : f32
    %219 = vector.broadcast %cst_55 : f32 to vector<8x96xf32>
    %220 = arith.addf %219, %218 : vector<8x96xf32>
    %221 = arith.divf %219, %220 : vector<8x96xf32>
    %222 = vector.extract_strided_slice %221 {offsets = [0, 0], sizes = [8, 32], strides = [1, 1]} : vector<8x96xf32> to vector<8x32xf32>
    %223 = vector.extract_strided_slice %221 {offsets = [0, 32], sizes = [8, 32], strides = [1, 1]} : vector<8x96xf32> to vector<8x32xf32>
    %224 = vector.extract_strided_slice %221 {offsets = [0, 64], sizes = [8, 32], strides = [1, 1]} : vector<8x96xf32> to vector<8x32xf32>
    %225 = vector.extract_strided_slice %208 {offsets = [0, 96], sizes = [8, 32], strides = [1, 1]} : vector<8x128xf32> to vector<8x32xf32>
    %226 = math.tanh %225 : vector<8x32xf32>
    %227 = arith.mulf %223, %182 : vector<8x32xf32>
    %228 = arith.mulf %222, %226 : vector<8x32xf32>
    %229 = arith.addf %227, %228 : vector<8x32xf32>
    %230 = math.tanh %229 : vector<8x32xf32>
    %231 = arith.mulf %224, %230 : vector<8x32xf32>
    %232 = vector.extract_strided_slice %215 {offsets = [0, 0], sizes = [8, 96], strides = [1, 1]} : vector<8x128xf32> to vector<8x96xf32>
    %233 = arith.negf %232 : vector<8x96xf32>
    %234 = math.exp %233 : vector<8x96xf32>
    %cst_56 = arith.constant 1.000000e+00 : f32
    %235 = vector.broadcast %cst_56 : f32 to vector<8x96xf32>
    %236 = arith.addf %235, %234 : vector<8x96xf32>
    %237 = arith.divf %235, %236 : vector<8x96xf32>
    %238 = vector.extract_strided_slice %237 {offsets = [0, 0], sizes = [8, 32], strides = [1, 1]} : vector<8x96xf32> to vector<8x32xf32>
    %239 = vector.extract_strided_slice %237 {offsets = [0, 32], sizes = [8, 32], strides = [1, 1]} : vector<8x96xf32> to vector<8x32xf32>
    %240 = vector.extract_strided_slice %237 {offsets = [0, 64], sizes = [8, 32], strides = [1, 1]} : vector<8x96xf32> to vector<8x32xf32>
    %241 = vector.extract_strided_slice %215 {offsets = [0, 96], sizes = [8, 32], strides = [1, 1]} : vector<8x128xf32> to vector<8x32xf32>
    %242 = math.tanh %241 : vector<8x32xf32>
    %243 = arith.mulf %239, %198 : vector<8x32xf32>
    %244 = arith.mulf %238, %242 : vector<8x32xf32>
    %245 = arith.addf %243, %244 : vector<8x32xf32>
    %246 = math.tanh %245 : vector<8x32xf32>
    %247 = arith.mulf %240, %246 : vector<8x32xf32>
    %c5_i32 = arith.constant 5 : i32
    %c7_i32_57 = arith.constant 7 : i32
    %248 = arith.subi %c7_i32_57, %c5_i32 : i32
    %249 = arith.index_cast %c5_i32 : i32 to index
    %c0_58 = arith.constant 0 : index
    %c0_59 = arith.constant 0 : index
    %250 = vector.load %arg11[%249, %c0_58, %c0_59] : memref<8x8x256xbf16, #tpu.memory_space<vmem>>, vector<1x8x128xbf16>
    %251 = vector.shape_cast %250 : vector<1x8x128xbf16> to vector<8x128xbf16>
    %252 = arith.extf %251 : vector<8x128xbf16> to vector<8x128xf32>
    %253 = arith.truncf %231 : vector<8x32xf32> to vector<8x32xbf16>
    %cst_60 = arith.constant dense<0.000000e+00> : vector<8x128xf32>
    %254 = tpu.matmul %253, %10, %cst_60 {dimension_numbers = #tpu.dot_dimension_numbers<[1], [0], [0], [1], [0, 0, 1, 1], [], []>} : vector<8x32xbf16>, vector<32x128xbf16>, vector<8x128xf32> -> vector<8x128xf32>
    %255 = arith.addf %252, %254 : vector<8x128xf32>
    %256 = arith.index_cast %248 : i32 to index
    %c0_61 = arith.constant 0 : index
    %c128_62 = arith.constant 128 : index
    %257 = vector.load %arg11[%256, %c0_61, %c128_62] : memref<8x8x256xbf16, #tpu.memory_space<vmem>>, vector<1x8x128xbf16>
    %258 = vector.shape_cast %257 : vector<1x8x128xbf16> to vector<8x128xbf16>
    %259 = arith.extf %258 : vector<8x128xbf16> to vector<8x128xf32>
    %260 = arith.truncf %247 : vector<8x32xf32> to vector<8x32xbf16>
    %cst_63 = arith.constant dense<0.000000e+00> : vector<8x128xf32>
    %261 = tpu.matmul %260, %11, %cst_63 {dimension_numbers = #tpu.dot_dimension_numbers<[1], [0], [0], [1], [0, 0, 1, 1], [], []>} : vector<8x32xbf16>, vector<32x128xbf16>, vector<8x128xf32> -> vector<8x128xf32>
    %262 = arith.addf %259, %261 : vector<8x128xf32>
    %263 = vector.extract_strided_slice %255 {offsets = [0, 0], sizes = [8, 96], strides = [1, 1]} : vector<8x128xf32> to vector<8x96xf32>
    %264 = arith.negf %263 : vector<8x96xf32>
    %265 = math.exp %264 : vector<8x96xf32>
    %cst_64 = arith.constant 1.000000e+00 : f32
    %266 = vector.broadcast %cst_64 : f32 to vector<8x96xf32>
    %267 = arith.addf %266, %265 : vector<8x96xf32>
    %268 = arith.divf %266, %267 : vector<8x96xf32>
    %269 = vector.extract_strided_slice %268 {offsets = [0, 0], sizes = [8, 32], strides = [1, 1]} : vector<8x96xf32> to vector<8x32xf32>
    %270 = vector.extract_strided_slice %268 {offsets = [0, 32], sizes = [8, 32], strides = [1, 1]} : vector<8x96xf32> to vector<8x32xf32>
    %271 = vector.extract_strided_slice %268 {offsets = [0, 64], sizes = [8, 32], strides = [1, 1]} : vector<8x96xf32> to vector<8x32xf32>
    %272 = vector.extract_strided_slice %255 {offsets = [0, 96], sizes = [8, 32], strides = [1, 1]} : vector<8x128xf32> to vector<8x32xf32>
    %273 = math.tanh %272 : vector<8x32xf32>
    %274 = arith.mulf %270, %229 : vector<8x32xf32>
    %275 = arith.mulf %269, %273 : vector<8x32xf32>
    %276 = arith.addf %274, %275 : vector<8x32xf32>
    %277 = math.tanh %276 : vector<8x32xf32>
    %278 = arith.mulf %271, %277 : vector<8x32xf32>
    %279 = vector.extract_strided_slice %262 {offsets = [0, 0], sizes = [8, 96], strides = [1, 1]} : vector<8x128xf32> to vector<8x96xf32>
    %280 = arith.negf %279 : vector<8x96xf32>
    %281 = math.exp %280 : vector<8x96xf32>
    %cst_65 = arith.constant 1.000000e+00 : f32
    %282 = vector.broadcast %cst_65 : f32 to vector<8x96xf32>
    %283 = arith.addf %282, %281 : vector<8x96xf32>
    %284 = arith.divf %282, %283 : vector<8x96xf32>
    %285 = vector.extract_strided_slice %284 {offsets = [0, 0], sizes = [8, 32], strides = [1, 1]} : vector<8x96xf32> to vector<8x32xf32>
    %286 = vector.extract_strided_slice %284 {offsets = [0, 32], sizes = [8, 32], strides = [1, 1]} : vector<8x96xf32> to vector<8x32xf32>
    %287 = vector.extract_strided_slice %284 {offsets = [0, 64], sizes = [8, 32], strides = [1, 1]} : vector<8x96xf32> to vector<8x32xf32>
    %288 = vector.extract_strided_slice %262 {offsets = [0, 96], sizes = [8, 32], strides = [1, 1]} : vector<8x128xf32> to vector<8x32xf32>
    %289 = math.tanh %288 : vector<8x32xf32>
    %290 = arith.mulf %286, %245 : vector<8x32xf32>
    %291 = arith.mulf %285, %289 : vector<8x32xf32>
    %292 = arith.addf %290, %291 : vector<8x32xf32>
    %293 = math.tanh %292 : vector<8x32xf32>
    %294 = arith.mulf %287, %293 : vector<8x32xf32>
    %c6_i32 = arith.constant 6 : i32
    %c7_i32_66 = arith.constant 7 : i32
    %295 = arith.subi %c7_i32_66, %c6_i32 : i32
    %296 = arith.index_cast %c6_i32 : i32 to index
    %c0_67 = arith.constant 0 : index
    %c0_68 = arith.constant 0 : index
    %297 = vector.load %arg11[%296, %c0_67, %c0_68] : memref<8x8x256xbf16, #tpu.memory_space<vmem>>, vector<1x8x128xbf16>
    %298 = vector.shape_cast %297 : vector<1x8x128xbf16> to vector<8x128xbf16>
    %299 = arith.extf %298 : vector<8x128xbf16> to vector<8x128xf32>
    %300 = arith.truncf %278 : vector<8x32xf32> to vector<8x32xbf16>
    %cst_69 = arith.constant dense<0.000000e+00> : vector<8x128xf32>
    %301 = tpu.matmul %300, %10, %cst_69 {dimension_numbers = #tpu.dot_dimension_numbers<[1], [0], [0], [1], [0, 0, 1, 1], [], []>} : vector<8x32xbf16>, vector<32x128xbf16>, vector<8x128xf32> -> vector<8x128xf32>
    %302 = arith.addf %299, %301 : vector<8x128xf32>
    %303 = arith.index_cast %295 : i32 to index
    %c0_70 = arith.constant 0 : index
    %c128_71 = arith.constant 128 : index
    %304 = vector.load %arg11[%303, %c0_70, %c128_71] : memref<8x8x256xbf16, #tpu.memory_space<vmem>>, vector<1x8x128xbf16>
    %305 = vector.shape_cast %304 : vector<1x8x128xbf16> to vector<8x128xbf16>
    %306 = arith.extf %305 : vector<8x128xbf16> to vector<8x128xf32>
    %307 = arith.truncf %294 : vector<8x32xf32> to vector<8x32xbf16>
    %cst_72 = arith.constant dense<0.000000e+00> : vector<8x128xf32>
    %308 = tpu.matmul %307, %11, %cst_72 {dimension_numbers = #tpu.dot_dimension_numbers<[1], [0], [0], [1], [0, 0, 1, 1], [], []>} : vector<8x32xbf16>, vector<32x128xbf16>, vector<8x128xf32> -> vector<8x128xf32>
    %309 = arith.addf %306, %308 : vector<8x128xf32>
    %310 = vector.extract_strided_slice %302 {offsets = [0, 0], sizes = [8, 96], strides = [1, 1]} : vector<8x128xf32> to vector<8x96xf32>
    %311 = arith.negf %310 : vector<8x96xf32>
    %312 = math.exp %311 : vector<8x96xf32>
    %cst_73 = arith.constant 1.000000e+00 : f32
    %313 = vector.broadcast %cst_73 : f32 to vector<8x96xf32>
    %314 = arith.addf %313, %312 : vector<8x96xf32>
    %315 = arith.divf %313, %314 : vector<8x96xf32>
    %316 = vector.extract_strided_slice %315 {offsets = [0, 0], sizes = [8, 32], strides = [1, 1]} : vector<8x96xf32> to vector<8x32xf32>
    %317 = vector.extract_strided_slice %315 {offsets = [0, 32], sizes = [8, 32], strides = [1, 1]} : vector<8x96xf32> to vector<8x32xf32>
    %318 = vector.extract_strided_slice %315 {offsets = [0, 64], sizes = [8, 32], strides = [1, 1]} : vector<8x96xf32> to vector<8x32xf32>
    %319 = vector.extract_strided_slice %302 {offsets = [0, 96], sizes = [8, 32], strides = [1, 1]} : vector<8x128xf32> to vector<8x32xf32>
    %320 = math.tanh %319 : vector<8x32xf32>
    %321 = arith.mulf %317, %276 : vector<8x32xf32>
    %322 = arith.mulf %316, %320 : vector<8x32xf32>
    %323 = arith.addf %321, %322 : vector<8x32xf32>
    %324 = math.tanh %323 : vector<8x32xf32>
    %325 = arith.mulf %318, %324 : vector<8x32xf32>
    %326 = vector.extract_strided_slice %309 {offsets = [0, 0], sizes = [8, 96], strides = [1, 1]} : vector<8x128xf32> to vector<8x96xf32>
    %327 = arith.negf %326 : vector<8x96xf32>
    %328 = math.exp %327 : vector<8x96xf32>
    %cst_74 = arith.constant 1.000000e+00 : f32
    %329 = vector.broadcast %cst_74 : f32 to vector<8x96xf32>
    %330 = arith.addf %329, %328 : vector<8x96xf32>
    %331 = arith.divf %329, %330 : vector<8x96xf32>
    %332 = vector.extract_strided_slice %331 {offsets = [0, 0], sizes = [8, 32], strides = [1, 1]} : vector<8x96xf32> to vector<8x32xf32>
    %333 = vector.extract_strided_slice %331 {offsets = [0, 32], sizes = [8, 32], strides = [1, 1]} : vector<8x96xf32> to vector<8x32xf32>
    %334 = vector.extract_strided_slice %331 {offsets = [0, 64], sizes = [8, 32], strides = [1, 1]} : vector<8x96xf32> to vector<8x32xf32>
    %335 = vector.extract_strided_slice %309 {offsets = [0, 96], sizes = [8, 32], strides = [1, 1]} : vector<8x128xf32> to vector<8x32xf32>
    %336 = math.tanh %335 : vector<8x32xf32>
    %337 = arith.mulf %333, %292 : vector<8x32xf32>
    %338 = arith.mulf %332, %336 : vector<8x32xf32>
    %339 = arith.addf %337, %338 : vector<8x32xf32>
    %340 = math.tanh %339 : vector<8x32xf32>
    %341 = arith.mulf %334, %340 : vector<8x32xf32>
    %c7_i32_75 = arith.constant 7 : i32
    %c7_i32_76 = arith.constant 7 : i32
    %342 = arith.subi %c7_i32_76, %c7_i32_75 : i32
    %343 = arith.index_cast %c7_i32_75 : i32 to index
    %c0_77 = arith.constant 0 : index
    %c0_78 = arith.constant 0 : index
    %344 = vector.load %arg11[%343, %c0_77, %c0_78] : memref<8x8x256xbf16, #tpu.memory_space<vmem>>, vector<1x8x128xbf16>
    %345 = vector.shape_cast %344 : vector<1x8x128xbf16> to vector<8x128xbf16>
    %346 = arith.extf %345 : vector<8x128xbf16> to vector<8x128xf32>
    %347 = arith.truncf %325 : vector<8x32xf32> to vector<8x32xbf16>
    %cst_79 = arith.constant dense<0.000000e+00> : vector<8x128xf32>
    %348 = tpu.matmul %347, %10, %cst_79 {dimension_numbers = #tpu.dot_dimension_numbers<[1], [0], [0], [1], [0, 0, 1, 1], [], []>} : vector<8x32xbf16>, vector<32x128xbf16>, vector<8x128xf32> -> vector<8x128xf32>
    %349 = arith.addf %346, %348 : vector<8x128xf32>
    %350 = arith.index_cast %342 : i32 to index
    %c0_80 = arith.constant 0 : index
    %c128_81 = arith.constant 128 : index
    %351 = vector.load %arg11[%350, %c0_80, %c128_81] : memref<8x8x256xbf16, #tpu.memory_space<vmem>>, vector<1x8x128xbf16>
    %352 = vector.shape_cast %351 : vector<1x8x128xbf16> to vector<8x128xbf16>
    %353 = arith.extf %352 : vector<8x128xbf16> to vector<8x128xf32>
    %354 = arith.truncf %341 : vector<8x32xf32> to vector<8x32xbf16>
    %cst_82 = arith.constant dense<0.000000e+00> : vector<8x128xf32>
    %355 = tpu.matmul %354, %11, %cst_82 {dimension_numbers = #tpu.dot_dimension_numbers<[1], [0], [0], [1], [0, 0, 1, 1], [], []>} : vector<8x32xbf16>, vector<32x128xbf16>, vector<8x128xf32> -> vector<8x128xf32>
    %356 = arith.addf %353, %355 : vector<8x128xf32>
    %357 = vector.extract_strided_slice %349 {offsets = [0, 0], sizes = [8, 96], strides = [1, 1]} : vector<8x128xf32> to vector<8x96xf32>
    %358 = arith.negf %357 : vector<8x96xf32>
    %359 = math.exp %358 : vector<8x96xf32>
    %cst_83 = arith.constant 1.000000e+00 : f32
    %360 = vector.broadcast %cst_83 : f32 to vector<8x96xf32>
    %361 = arith.addf %360, %359 : vector<8x96xf32>
    %362 = arith.divf %360, %361 : vector<8x96xf32>
    %363 = vector.extract_strided_slice %362 {offsets = [0, 0], sizes = [8, 32], strides = [1, 1]} : vector<8x96xf32> to vector<8x32xf32>
    %364 = vector.extract_strided_slice %362 {offsets = [0, 32], sizes = [8, 32], strides = [1, 1]} : vector<8x96xf32> to vector<8x32xf32>
    %365 = vector.extract_strided_slice %362 {offsets = [0, 64], sizes = [8, 32], strides = [1, 1]} : vector<8x96xf32> to vector<8x32xf32>
    %366 = vector.extract_strided_slice %349 {offsets = [0, 96], sizes = [8, 32], strides = [1, 1]} : vector<8x128xf32> to vector<8x32xf32>
    %367 = math.tanh %366 : vector<8x32xf32>
    %368 = arith.mulf %364, %323 : vector<8x32xf32>
    %369 = arith.mulf %363, %367 : vector<8x32xf32>
    %370 = arith.addf %368, %369 : vector<8x32xf32>
    %371 = math.tanh %370 : vector<8x32xf32>
    %372 = arith.mulf %365, %371 : vector<8x32xf32>
    %373 = vector.extract_strided_slice %356 {offsets = [0, 0], sizes = [8, 96], strides = [1, 1]} : vector<8x128xf32> to vector<8x96xf32>
    %374 = arith.negf %373 : vector<8x96xf32>
    %375 = math.exp %374 : vector<8x96xf32>
    %cst_84 = arith.constant 1.000000e+00 : f32
    %376 = vector.broadcast %cst_84 : f32 to vector<8x96xf32>
    %377 = arith.addf %376, %375 : vector<8x96xf32>
    %378 = arith.divf %376, %377 : vector<8x96xf32>
    %379 = vector.extract_strided_slice %378 {offsets = [0, 0], sizes = [8, 32], strides = [1, 1]} : vector<8x96xf32> to vector<8x32xf32>
    %380 = vector.extract_strided_slice %378 {offsets = [0, 32], sizes = [8, 32], strides = [1, 1]} : vector<8x96xf32> to vector<8x32xf32>
    %381 = vector.extract_strided_slice %378 {offsets = [0, 64], sizes = [8, 32], strides = [1, 1]} : vector<8x96xf32> to vector<8x32xf32>
    %382 = vector.extract_strided_slice %356 {offsets = [0, 96], sizes = [8, 32], strides = [1, 1]} : vector<8x128xf32> to vector<8x32xf32>
    %383 = math.tanh %382 : vector<8x32xf32>
    %384 = arith.mulf %380, %339 : vector<8x32xf32>
    %385 = arith.mulf %379, %383 : vector<8x32xf32>
    %386 = arith.addf %384, %385 : vector<8x32xf32>
    %387 = math.tanh %386 : vector<8x32xf32>
    %388 = arith.mulf %381, %387 : vector<8x32xf32>
    %c8_i32 = arith.constant 8 : i32
    %c0_85 = arith.constant 0 : index
    %c0_86 = arith.constant 0 : index
    %389 = vector.load %arg5[%c0_85, %c0_86] : memref<64x16xf32, #tpu.memory_space<vmem>>, vector<64x16xf32>
    %390 = vector.extract_strided_slice %389 {offsets = [0, 0], sizes = [32, 16], strides = [1, 1]} : vector<64x16xf32> to vector<32x16xf32>
    %cst_87 = arith.constant dense<0.000000e+00> : vector<8x16xf32>
    %391 = tpu.matmul %372, %390, %cst_87 {dimension_numbers = #tpu.dot_dimension_numbers<[1], [0], [0], [1], [0, 0, 1, 1], [], []>} : vector<8x32xf32>, vector<32x16xf32>, vector<8x16xf32> -> vector<8x16xf32>
    %392 = vector.extract_strided_slice %389 {offsets = [32, 0], sizes = [32, 16], strides = [1, 1]} : vector<64x16xf32> to vector<32x16xf32>
    %cst_88 = arith.constant dense<0.000000e+00> : vector<8x16xf32>
    %393 = tpu.matmul %388, %392, %cst_88 {dimension_numbers = #tpu.dot_dimension_numbers<[1], [0], [0], [1], [0, 0, 1, 1], [], []>} : vector<8x32xf32>, vector<32x16xf32>, vector<8x16xf32> -> vector<8x16xf32>
    %394 = arith.addf %391, %393 : vector<8x16xf32>
    %c0_89 = arith.constant 0 : index
    %c0_90 = arith.constant 0 : index
    %395 = vector.load %arg6[%c0_89, %c0_90] : memref<1x16xf32, #tpu.memory_space<vmem>>, vector<1x16xf32>
    %396 = vector.broadcast %395 : vector<1x16xf32> to vector<8x16xf32>
    %397 = arith.addf %394, %396 : vector<8x16xf32>
    %cst_91 = arith.constant 0.000000e+00 : f32
    %398 = vector.broadcast %cst_91 : f32 to vector<8x16xf32>
    %399 = arith.maximumf %397, %398 : vector<8x16xf32>
    %c0_92 = arith.constant 0 : index
    %c0_93 = arith.constant 0 : index
    %400 = vector.load %arg7[%c0_92, %c0_93] : memref<16x4xf32, #tpu.memory_space<vmem>>, vector<16x4xf32>
    %cst_94 = arith.constant dense<0.000000e+00> : vector<8x4xf32>
    %401 = tpu.matmul %399, %400, %cst_94 {dimension_numbers = #tpu.dot_dimension_numbers<[1], [0], [0], [1], [0, 0, 1, 1], [], []>} : vector<8x16xf32>, vector<16x4xf32>, vector<8x4xf32> -> vector<8x4xf32>
    %c0_95 = arith.constant 0 : index
    %c0_96 = arith.constant 0 : index
    %402 = vector.load %arg8[%c0_95, %c0_96] : memref<1x4xf32, #tpu.memory_space<vmem>>, vector<1x4xf32>
    %403 = vector.broadcast %402 : vector<1x4xf32> to vector<8x4xf32>
    %404 = arith.addf %401, %403 : vector<8x4xf32>
    %cst_97 = arith.constant dense<0xFF800000> : vector<8xf32>
    %405 = vector.multi_reduction <maximumf>, %404, %cst_97 [1] : vector<8x4xf32> to vector<8xf32>
    %406 = vector.shape_cast %405 : vector<8xf32> to vector<8x1xf32>
    %407 = vector.broadcast %406 : vector<8x1xf32> to vector<8x4xf32>
    %408 = arith.subf %404, %407 : vector<8x4xf32>
    %409 = math.exp %408 : vector<8x4xf32>
    %cst_98 = arith.constant dense<0.000000e+00> : vector<8xf32>
    %410 = vector.multi_reduction <add>, %409, %cst_98 [1] : vector<8x4xf32> to vector<8xf32>
    %411 = vector.shape_cast %410 : vector<8xf32> to vector<8x1xf32>
    %412 = math.log %411 : vector<8x1xf32>
    %413 = arith.addf %412, %406 : vector<8x1xf32>
    %414 = vector.broadcast %413 : vector<8x1xf32> to vector<8x4xf32>
    %415 = arith.subf %404, %414 : vector<8x4xf32>
    %c0_99 = arith.constant 0 : index
    %c0_100 = arith.constant 0 : index
    %416 = vector.load %arg9[%c0_99, %c0_100] : memref<8x4xf32, #tpu.memory_space<vmem>>, vector<8x4xf32>
    tpu.vector_store %arg9[%c0_99, %c0_100], %415 {strides = array<i32>} : memref<8x4xf32, #tpu.memory_space<vmem>>, vector<8x4xf32>,
    %c0_101 = arith.constant 0 : index
    %c0_102 = arith.constant 0 : index
    %417 = vector.load %arg10[%c0_101, %c0_102] : memref<8x4xf32, #tpu.memory_space<vmem>>, vector<8x4xf32>
    tpu.vector_store %arg10[%c0_101, %c0_102], %404 {strides = array<i32>} : memref<8x4xf32, #tpu.memory_space<vmem>>, vector<8x4xf32>,
    return
  }
}

</mosaic_0001>

<llo_original>
// kernel: bilstm_classifier_forward.2
$region0: #{bilstm_classifier_forward.2}
  #allocation0 [shape = 'u32[]', space=smem, size = 0x4, offset = 0x4, fixed_abs, tag = 'smem constant byte address 0x4 - core index']
  #allocation1 [shape = 'u32[144,128]{1,0:T(1,128)}', space=vmem, size = 0x12000, scoped, tag = 'internal scratch']
  %s0 = inlined_call_operand.vmem [shape: bf16[8,8,256], index: 0, kind: input, shape index: {}]
  %s1 = inlined_call_operand.hbm [shape: bf16[32,128], index: 1, kind: input, shape index: {}]
  %s2 = inlined_call_operand.hbm [shape: bf16[32,128], index: 2, kind: input, shape index: {}]
  %s3 = inlined_call_operand.vmem [shape: bf16[8,8,64], index: 3, kind: output, shape index: {}]
  %s4 = sld [smem:[#allocation0]]
  $region30: #{bilstm_classifier_forward.2} parent=0
    _
  %s6 = ssub.s32 1, %s4
  %s7 = scalar_select 0, %s6, %s4
  $region1: #{bilstm_classifier_forward.2} parent=0
    #allocation2 [shape = 'u8[8192]{0}', space=vmem, size = 0x2000, scoped, tag = 'input window, operand 1, single buffered']
    #allocation3 [shape = 's32[1]{0}', space=sflag, size = 0x4, scoped, tag = 'scoped memory for bilstm_classifier_forward.2']
    #allocation4 [shape = 'u8[8192]{0}', space=vmem, size = 0x2000, scoped, tag = 'input window, operand 2, single buffered']
    #allocation5 [shape = 's32[1]{0}', space=sflag, size = 0x4, scoped, tag = 'scoped memory for bilstm_classifier_forward.2']
    %8 = vsyncpa [#allocation3], 0
    %9 = vsyncpa [#allocation5], 0
    // Predicated region
    $region2: #{bilstm_classifier_forward.2} parent=1 // pred_check
      _
    $region3: #{bilstm_classifier_forward.2} parent=1 // pred_check_branch
      %11 = sbr.rel (0) target = $region5
    $region4: #{bilstm_classifier_forward.2} parent=1 // pred_region
      _
    $region5: #{bilstm_classifier_forward.2} parent=1 // pred_fallthru
      _
    // Predicated region
    $region6: #{bilstm_classifier_forward.2} parent=1 // pred_check
      _
    $region7: #{bilstm_classifier_forward.2} parent=1 // pred_check_branch
      %13 = sbr.rel (0) target = $region9
    $region8: #{bilstm_classifier_forward.2} parent=1 // pred_region
      %s15 = ssub.s32 256, 256
      %16 = vsyncadd [#allocation3], %s15
      %s17 = sshll.u32 [#allocation2], 4
      %s18 = int_to_ptr.vmem [resolvable:$true] %s17
      %23 = dma.hbm_to_vmem [thread:$0]  %s1, 256, %s18, [#allocation3], 64, 64, 4
    $region9: #{bilstm_classifier_forward.2} parent=1 // pred_fallthru
      _
    // Predicated region
    $region10: #{bilstm_classifier_forward.2} parent=1 // pred_check
      _
    $region11: #{bilstm_classifier_forward.2} parent=1 // pred_check_branch
      %25 = sbr.rel (0) target = $region13
    $region12: #{bilstm_classifier_forward.2} parent=1 // pred_region
      %s27 = ssub.s32 256, 256
      %28 = vsyncadd [#allocation5], %s27
      %s29 = sshll.u32 [#allocation4], 4
      %s30 = int_to_ptr.vmem [resolvable:$true] %s29
      %35 = dma.hbm_to_vmem [thread:$0]  %s2, 256, %s30, [#allocation5], 64, 64, 4
    $region13: #{bilstm_classifier_forward.2} parent=1 // pred_fallthru
      _
    // Predicated region
    $region14: #{bilstm_classifier_forward.2} parent=1 // pred_check
      _
    $region15: #{bilstm_classifier_forward.2} parent=1 // pred_check_branch
      %37 = sbr.rel (0) target = $region17
    $region16: #{bilstm_classifier_forward.2} parent=1 // pred_region
      %38 = dma.done [#allocation3], 256
    $region17: #{bilstm_classifier_forward.2} parent=1 // pred_fallthru
      _
    // Predicated region
    $region18: #{bilstm_classifier_forward.2} parent=1 // pred_check
      _
    $region19: #{bilstm_classifier_forward.2} parent=1 // pred_check_branch
      %40 = sbr.rel (0) target = $region21
    $region20: #{bilstm_classifier_forward.2} parent=1 // pred_region
      %41 = dma.done [#allocation5], 256
    $region21: #{bilstm_classifier_forward.2} parent=1 // pred_fallthru
      _
    %v43 = vld [vmem:[#allocation2] sm:$0xf]
    %v44 = vld [vmem:[#allocation2 + $0x4] sm:$0xf]
    %v45 = vld [vmem:[#allocation2 + $0x8] sm:$0xf]
    %v46 = vld [vmem:[#allocation2 + $0xc] sm:$0xf]
    %v47 = vld [vmem:[#allocation4] sm:$0xf]
    %v48 = vld [vmem:[#allocation4 + $0x4] sm:$0xf]
    %v49 = vld [vmem:[#allocation4 + $0x8] sm:$0xf]
    %v50 = vld [vmem:[#allocation4 + $0xc] sm:$0xf]
    %v51 = vld [vmem:[%s0] sm:$0xf]
    %v52 = vunpack.c.l.bf16 %v51
    %v57 = vunpack.c.l.b16 %v43
    %v58 = vunpack.c.l.b16 %v44
    %v59 = vunpack.c.l.b16 %v45
    %v60 = vunpack.c.l.b16 %v46
    %v61 = vpack.c.b16 %v58, %v57
    %v62 = vpack.c.b16 %v60, %v59
    %vm65 = vcmask 261120
    %v67 = vsel %vm65, 0, 0
    %69 = vmatprep.subr.bf16.mxu0 0
    %70 = vmatpush1.bf16.msra.mxu0 0
    %71 = vmatprep.subr.bf16.mxu0 0
    %72 = vmatpush1.bf16.msra.mxu0 0
    %73 = vmatprep.subr.bf16.mxu0 0
    %74 = vmatpush1.bf16.msra.mxu0 0
    %75 = vmatprep.subr.bf16.mxu0 0
    %76 = vmatpush1.bf16.msra.mxu0 0
    %77 = vmatprep.subr.bf16.mxu0 0
    %78 = vmatpush1.bf16.msra.mxu0 0
    %79 = vmatprep.subr.bf16.mxu0 0
    %80 = vmatpush1.bf16.msra.mxu0 0
    %81 = vmatprep.subr.bf16.mxu0 0
    %82 = vmatpush1.bf16.msra.mxu0 %v62
    %83 = vmatprep.subr.bf16.mxu0 0
    %84 = vmatpush1.bf16.msra.mxu0 %v61
    %85 = vmatprep.subr.bf16.mxu0 0
    %86 = vmatpush2.bf16.msra.mxu0 0
    %87 = vmatprep.subr.bf16.mxu0 0
    %88 = vmatpush2.bf16.msra.mxu0 0
    %89 = vmatprep.subr.bf16.mxu0 0
    %90 = vmatpush2.bf16.msra.mxu0 0
    %91 = vmatprep.subr.bf16.mxu0 0
    %92 = vmatpush2.bf16.msra.mxu0 0
    %93 = vmatprep.subr.bf16.mxu0 0
    %94 = vmatpush2.bf16.msra.mxu0 0
    %95 = vmatprep.subr.bf16.mxu0 0
    %96 = vmatpush2.bf16.msra.mxu0 0
    %97 = vmatprep.subr.bf16.mxu0 0
    %98 = vmatpush2.bf16.msra.mxu0 0
    %99 = vmatprep.subr.bf16.mxu0 0
    %100 = vmatpush2.bf16.msra.mxu0 0
    %101 = vmatprep.mubr.bf16.mxu0 0
    %102 = vmatmul.mubr.bf16.gmra.mxu0 %v67
    %v103 = vpop.f32.mrf.mxu0
    %v104 = vadd.f32 0.0, %v103
    %v105 = vpop.f32.mrf.mxu0
    %v106 = vpop.f32.mrf.mxu0
    %v107 = vpop.f32.mrf.mxu0
    %108 = vdwg.mxu0
    %v109 = vadd.f32 %v52, %v104
    %s110 = scalar_lea.vmem %s0, 56
    %v111 = vld [vmem:[%s110 + $0x4] sm:$0xf]
    %v112 = vunpack.c.l.bf16 %v111
    %v117 = vunpack.c.l.b16 %v47
    %v118 = vunpack.c.l.b16 %v48
    %v119 = vunpack.c.l.b16 %v49
    %v120 = vunpack.c.l.b16 %v50
    %v121 = vpack.c.b16 %v118, %v117
    %v122 = vpack.c.b16 %v120, %v119
    %125 = vmatprep.subr.bf16.mxu0 0
    %126 = vmatpush1.bf16.msra.mxu0 0
    %127 = vmatprep.subr.bf16.mxu0 0
    %128 = vmatpush1.bf16.msra.mxu0 0
    %129 = vmatprep.subr.bf16.mxu0 0
    %130 = vmatpush1.bf16.msra.mxu0 0
    %131 = vmatprep.subr.bf16.mxu0 0
    %132 = vmatpush1.bf16.msra.mxu0 0
    %133 = vmatprep.subr.bf16.mxu0 0
    %134 = vmatpush1.bf16.msra.mxu0 0
    %135 = vmatprep.subr.bf16.mxu0 0
    %136 = vmatpush1.bf16.msra.mxu0 0
    %137 = vmatprep.subr.bf16.mxu0 0
    %138 = vmatpush1.bf16.msra.mxu0 %v122
    %139 = vmatprep.subr.bf16.mxu0 0
    %140 = vmatpush1.bf16.msra.mxu0 %v121
    %141 = vmatprep.subr.bf16.mxu0 0
    %142 = vmatpush2.bf16.msra.mxu0 0
    %143 = vmatprep.subr.bf16.mxu0 0
    %144 = vmatpush2.bf16.msra.mxu0 0
    %145 = vmatprep.subr.bf16.mxu0 0
    %146 = vmatpush2.bf16.msra.mxu0 0
    %147 = vmatprep.subr.bf16.mxu0 0
    %148 = vmatpush2.bf16.msra.mxu0 0
    %149 = vmatprep.subr.bf16.mxu0 0
    %150 = vmatpush2.bf16.msra.mxu0 0
    %151 = vmatprep.subr.bf16.mxu0 0
    %152 = vmatpush2.bf16.msra.mxu0 0
    %153 = vmatprep.subr.bf16.mxu0 0
    %154 = vmatpush2.bf16.msra.mxu0 0
    %155 = vmatprep.subr.bf16.mxu0 0
    %156 = vmatpush2.bf16.msra.mxu0 0
    %157 = vmatprep.mubr.bf16.mxu0 0
    %158 = vmatmul.mubr.bf16.gmra.mxu0 %v67
    %v159 = vpop.f32.mrf.mxu0
    %v160 = vadd.f32 0.0, %v159
    %v161 = vpop.f32.mrf.mxu0
    %v162 = vpop.f32.mrf.mxu0
    %v163 = vpop.f32.mrf.mxu0
    %164 = vdwg.mxu0
    %v165 = vadd.f32 %v112, %v160
    %v166 = vxor.u32 %v109, 2147483648
    %v167 = vmul.f32 %v166, 1.442695
    %v168 = vpow.pop %v167
    %v169 = vadd.f32 %v168, 1.0
    %v170 = vrcp.pop %v169
    %v171 = vmul.f32 1.0, %v170
    %v172 = vtanh.pop %v109
    %v173 = vmul.f32 %v171, 0.0
    %175 = vrot.lane.b32.xlu0 %v172, 32
    %v176 = vpop.permute.xlu0 %175
    %v178 = vmul.f32 %v171, %v176
    %180 = vrot.lane.b32.xlu0 %v178, 32
    %v181 = vpop.permute.xlu0 %180
    %v183 = vadd.f32 %v173, %v181
    %v184 = vtanh.pop %v183
    %186 = vrot.lane.b32.xlu0 %v184, 32
    %v187 = vpop.permute.xlu0 %186
    %v189 = vmul.f32 %v171, %v187
    %v190 = vxor.u32 %v165, 2147483648
    %v191 = vmul.f32 %v190, 1.442695
    %v192 = vpow.pop %v191
    %v193 = vadd.f32 %v192, 1.0
    %v194 = vrcp.pop %v193
    %v195 = vmul.f32 1.0, %v194
    %v196 = vtanh.pop %v165
    %v197 = vmul.f32 %v195, 0.0
    %199 = vrot.lane.b32.xlu0 %v196, 32
    %v200 = vpop.permute.xlu0 %199
    %v202 = vmul.f32 %v195, %v200
    %204 = vrot.lane.b32.xlu0 %v202, 32
    %v205 = vpop.permute.xlu0 %204
    %v207 = vadd.f32 %v197, %v205
    %v208 = vtanh.pop %v207
    %210 = vrot.lane.b32.xlu0 %v208, 32
    %v211 = vpop.permute.xlu0 %210
    %v213 = vmul.f32 %v195, %v211
    %v214 = vpack.c.bf16 %v189, %v189
    %v216 = vunpack.c.l.b16 %v214
    %v217 = vpack.c.b16 %v216, %v216
    %218 = vrot.lane.b32.xlu0 %v217, 64
    %v219 = vpop.permute.xlu0 %218
    %vm221 = vcmask 257024
    %222 = vst.msk [vmem:[%s3] sm:$0xf] %vm221, %v219
    %v223 = vpack.c.bf16 %v213, %v213
    %v225 = vunpack.c.l.b16 %v223
    %v226 = vpack.c.b16 %v225, %v225
    %227 = vrot.lane.b32.xlu0 %v226, 96
    %v228 = vpop.permute.xlu0 %227
    %s230 = scalar_lea.vmem %s3, 28
    %vm231 = vcmask 519424
    %232 = vst.msk [vmem:[%s230] sm:$0xf] %vm231, %v228
    %s233 = scalar_lea.vmem %s0, 8
    %v234 = vld [vmem:[%s233] sm:$0xf]
    %v235 = vunpack.c.l.bf16 %v234
    %236 = vrot.lane.b32.xlu0 %v214, 64
    %v237 = vpop.permute.xlu0 %236
    %v239 = vsel %vm65, %v237, 0
    %241 = vmatprep.subr.bf16.mxu0 0
    %242 = vmatpush1.bf16.msra.mxu0 0
    %243 = vmatprep.subr.bf16.mxu0 0
    %244 = vmatpush1.bf16.msra.mxu0 0
    %245 = vmatprep.subr.bf16.mxu0 0
    %246 = vmatpush1.bf16.msra.mxu0 0
    %247 = vmatprep.subr.bf16.mxu0 0
    %248 = vmatpush1.bf16.msra.mxu0 0
    %249 = vmatprep.subr.bf16.mxu0 0
    %250 = vmatpush1.bf16.msra.mxu0 0
    %251 = vmatprep.subr.bf16.mxu0 0
    %252 = vmatpush1.bf16.msra.mxu0 0
    %253 = vmatprep.subr.bf16.mxu0 0
    %254 = vmatpush1.bf16.msra.mxu0 %v62
    %255 = vmatprep.subr.bf16.mxu0 0
    %256 = vmatpush1.bf16.msra.mxu0 %v61
    %257 = vmatprep.subr.bf16.mxu0 0
    %258 = vmatpush2.bf16.msra.mxu0 0
    %259 = vmatprep.subr.bf16.mxu0 0
    %260 = vmatpush2.bf16.msra.mxu0 0
    %261 = vmatprep.subr.bf16.mxu0 0
    %262 = vmatpush2.bf16.msra.mxu0 0
    %263 = vmatprep.subr.bf16.mxu0 0
    %264 = vmatpush2.bf16.msra.mxu0 0
    %265 = vmatprep.subr.bf16.mxu0 0
    %266 = vmatpush2.bf16.msra.mxu0 0
    %267 = vmatprep.subr.bf16.mxu0 0
    %268 = vmatpush2.bf16.msra.mxu0 0
    %269 = vmatprep.subr.bf16.mxu0 0
    %270 = vmatpush2.bf16.msra.mxu0 0
    %271 = vmatprep.subr.bf16.mxu0 0
    %272 = vmatpush2.bf16.msra.mxu0 0
    %273 = vmatprep.mubr.bf16.mxu0 0
    %274 = vmatmul.mubr.bf16.gmra.mxu0 %v239
    %v275 = vpop.f32.mrf.mxu0
    %v276 = vadd.f32 0.0, %v275
    %v277 = vpop.f32.mrf.mxu0
    %v278 = vpop.f32.mrf.mxu0
    %v279 = vpop.f32.mrf.mxu0
    %280 = vdwg.mxu0
    %v281 = vadd.f32 %v235, %v276
    %s282 = scalar_lea.vmem %s0, 48
    %v283 = vld [vmem:[%s282 + $0x4] sm:$0xf]
    %v284 = vunpack.c.l.bf16 %v283
    %285 = vrot.lane.b32.xlu0 %v223, 64
    %v286 = vpop.permute.xlu0 %285
    %v288 = vsel %vm65, %v286, 0
    %290 = vmatprep.subr.bf16.mxu0 0
    %291 = vmatpush1.bf16.msra.mxu0 0
    %292 = vmatprep.subr.bf16.mxu0 0
    %293 = vmatpush1.bf16.msra.mxu0 0
    %294 = vmatprep.subr.bf16.mxu0 0
    %295 = vmatpush1.bf16.msra.mxu0 0
    %296 = vmatprep.subr.bf16.mxu0 0
    %297 = vmatpush1.bf16.msra.mxu0 0
    %298 = vmatprep.subr.bf16.mxu0 0
    %299 = vmatpush1.bf16.msra.mxu0 0
    %300 = vmatprep.subr.bf16.mxu0 0
    %301 = vmatpush1.bf16.msra.mxu0 0
    %302 = vmatprep.subr.bf16.mxu0 0
    %303 = vmatpush1.bf16.msra.mxu0 %v122
    %304 = vmatprep.subr.bf16.mxu0 0
    %305 = vmatpush1.bf16.msra.mxu0 %v121
    %306 = vmatprep.subr.bf16.mxu0 0
    %307 = vmatpush2.bf16.msra.mxu0 0
    %308 = vmatprep.subr.bf16.mxu0 0
    %309 = vmatpush2.bf16.msra.mxu0 0
    %310 = vmatprep.subr.bf16.mxu0 0
    %311 = vmatpush2.bf16.msra.mxu0 0
    %312 = vmatprep.subr.bf16.mxu0 0
    %313 = vmatpush2.bf16.msra.mxu0 0
    %314 = vmatprep.subr.bf16.mxu0 0
    %315 = vmatpush2.bf16.msra.mxu0 0
    %316 = vmatprep.subr.bf16.mxu0 0
    %317 = vmatpush2.bf16.msra.mxu0 0
    %318 = vmatprep.subr.bf16.mxu0 0
    %319 = vmatpush2.bf16.msra.mxu0 0
    %320 = vmatprep.subr.bf16.mxu0 0
    %321 = vmatpush2.bf16.msra.mxu0 0
    %322 = vmatprep.mubr.bf16.mxu0 0
    %323 = vmatmul.mubr.bf16.gmra.mxu0 %v288
    %v324 = vpop.f32.mrf.mxu0
    %v325 = vadd.f32 0.0, %v324
    %v326 = vpop.f32.mrf.mxu0
    %v327 = vpop.f32.mrf.mxu0
    %v328 = vpop.f32.mrf.mxu0
    %329 = vdwg.mxu0
    %v330 = vadd.f32 %v284, %v325
    %v331 = vxor.u32 %v281, 2147483648
    %v332 = vmul.f32 %v331, 1.442695
    %v333 = vpow.pop %v332
    %v334 = vadd.f32 %v333, 1.0
    %v335 = vrcp.pop %v334
    %v336 = vmul.f32 1.0, %v335
    %v337 = vtanh.pop %v281
    %v338 = vmul.f32 %v336, %v183
    %340 = vrot.lane.b32.xlu0 %v337, 32
    %v341 = vpop.permute.xlu0 %340
    %v343 = vmul.f32 %v336, %v341
    %345 = vrot.lane.b32.xlu0 %v343, 32
    %v346 = vpop.permute.xlu0 %345
    %v348 = vadd.f32 %v338, %v346
    %v349 = vtanh.pop %v348
    %351 = vrot.lane.b32.xlu0 %v349, 32
    %v352 = vpop.permute.xlu0 %351
    %v354 = vmul.f32 %v336, %v352
    %v355 = vxor.u32 %v330, 2147483648
    %v356 = vmul.f32 %v355, 1.442695
    %v357 = vpow.pop %v356
    %v358 = vadd.f32 %v357, 1.0
    %v359 = vrcp.pop %v358
    %v360 = vmul.f32 1.0, %v359
    %v361 = vtanh.pop %v330
    %v362 = vmul.f32 %v360, %v207
    %364 = vrot.lane.b32.xlu0 %v361, 32
    %v365 = vpop.permute.xlu0 %364
    %v367 = vmul.f32 %v360, %v365
    %369 = vrot.lane.b32.xlu0 %v367, 32
    %v370 = vpop.permute.xlu0 %369
    %v372 = vadd.f32 %v362, %v370
    %v373 = vtanh.pop %v372
    %375 = vrot.lane.b32.xlu0 %v373, 32
    %v376 = vpop.permute.xlu0 %375
    %v378 = vmul.f32 %v360, %v376
    %v379 = vpack.c.bf16 %v354, %v354
    %v381 = vunpack.c.l.b16 %v379
    %v382 = vpack.c.b16 %v381, %v381
    %383 = vrot.lane.b32.xlu0 %v382, 64
    %v384 = vpop.permute.xlu0 %383
    %s386 = scalar_lea.vmem %s3, 4
    %387 = vst.msk [vmem:[%s386] sm:$0xf] %vm221, %v384
    %v388 = vpack.c.bf16 %v378, %v378
    %v390 = vunpack.c.l.b16 %v388
    %v391 = vpack.c.b16 %v390, %v390
    %392 = vrot.lane.b32.xlu0 %v391, 96
    %v393 = vpop.permute.xlu0 %392
    %s395 = scalar_lea.vmem %s3, 24
    %396 = vst.msk [vmem:[%s395] sm:$0xf] %vm231, %v393
    %s397 = scalar_lea.vmem %s0, 16
    %v398 = vld [vmem:[%s397] sm:$0xf]
    %v399 = vunpack.c.l.bf16 %v398
    %400 = vrot.lane.b32.xlu0 %v379, 64
    %v401 = vpop.permute.xlu0 %400
    %v403 = vsel %vm65, %v401, 0
    %405 = vmatprep.subr.bf16.mxu0 0
    %406 = vmatpush1.bf16.msra.mxu0 0
    %407 = vmatprep.subr.bf16.mxu0 0
    %408 = vmatpush1.bf16.msra.mxu0 0
    %409 = vmatprep.subr.bf16.mxu0 0
    %410 = vmatpush1.bf16.msra.mxu0 0
    %411 = vmatprep.subr.bf16.mxu0 0
    %412 = vmatpush1.bf16.msra.mxu0 0
    %413 = vmatprep.subr.bf16.mxu0 0
    %414 = vmatpush1.bf16.msra.mxu0 0
    %415 = vmatprep.subr.bf16.mxu0 0
    %416 = vmatpush1.bf16.msra.mxu0 0
    %417 = vmatprep.subr.bf16.mxu0 0
    %418 = vmatpush1.bf16.msra.mxu0 %v62
    %419 = vmatprep.subr.bf16.mxu0 0
    %420 = vmatpush1.bf16.msra.mxu0 %v61
    %421 = vmatprep.subr.bf16.mxu0 0
    %422 = vmatpush2.bf16.msra.mxu0 0
    %423 = vmatprep.subr.bf16.mxu0 0
    %424 = vmatpush2.bf16.msra.mxu0 0
    %425 = vmatprep.subr.bf16.mxu0 0
    %426 = vmatpush2.bf16.msra.mxu0 0
    %427 = vmatprep.subr.bf16.mxu0 0
    %428 = vmatpush2.bf16.msra.mxu0 0
    %429 = vmatprep.subr.bf16.mxu0 0
    %430 = vmatpush2.bf16.msra.mxu0 0
    %431 = vmatprep.subr.bf16.mxu0 0
    %432 = vmatpush2.bf16.msra.mxu0 0
    %433 = vmatprep.subr.bf16.mxu0 0
    %434 = vmatpush2.bf16.msra.mxu0 0
    %435 = vmatprep.subr.bf16.mxu0 0
    %436 = vmatpush2.bf16.msra.mxu0 0
    %437 = vmatprep.mubr.bf16.mxu0 0
    %438 = vmatmul.mubr.bf16.gmra.mxu0 %v403
    %v439 = vpop.f32.mrf.mxu0
    %v440 = vadd.f32 0.0, %v439
    %v441 = vpop.f32.mrf.mxu0
    %v442 = vpop.f32.mrf.mxu0
    %v443 = vpop.f32.mrf.mxu0
    %444 = vdwg.mxu0
    %v445 = vadd.f32 %v399, %v440
    %s446 = scalar_lea.vmem %s0, 40
    %v447 = vld [vmem:[%s446 + $0x4] sm:$0xf]
    %v448 = vunpack.c.l.bf16 %v447
    %449 = vrot.lane.b32.xlu0 %v388, 64
    %v450 = vpop.permute.xlu0 %449
    %v452 = vsel %vm65, %v450, 0
    %454 = vmatprep.subr.bf16.mxu0 0
    %455 = vmatpush1.bf16.msra.mxu0 0
    %456 = vmatprep.subr.bf16.mxu0 0
    %457 = vmatpush1.bf16.msra.mxu0 0
    %458 = vmatprep.subr.bf16.mxu0 0
    %459 = vmatpush1.bf16.msra.mxu0 0
    %460 = vmatprep.subr.bf16.mxu0 0
    %461 = vmatpush1.bf16.msra.mxu0 0
    %462 = vmatprep.subr.bf16.mxu0 0
    %463 = vmatpush1.bf16.msra.mxu0 0
    %464 = vmatprep.subr.bf16.mxu0 0
    %465 = vmatpush1.bf16.msra.mxu0 0
    %466 = vmatprep.subr.bf16.mxu0 0
    %467 = vmatpush1.bf16.msra.mxu0 %v122
    %468 = vmatprep.subr.bf16.mxu0 0
    %469 = vmatpush1.bf16.msra.mxu0 %v121
    %470 = vmatprep.subr.bf16.mxu0 0
    %471 = vmatpush2.bf16.msra.mxu0 0
    %472 = vmatprep.subr.bf16.mxu0 0
    %473 = vmatpush2.bf16.msra.mxu0 0
    %474 = vmatprep.subr.bf16.mxu0 0
    %475 = vmatpush2.bf16.msra.mxu0 0
    %476 = vmatprep.subr.bf16.mxu0 0
    %477 = vmatpush2.bf16.msra.mxu0 0
    %478 = vmatprep.subr.bf16.mxu0 0
    %479 = vmatpush2.bf16.msra.mxu0 0
    %480 = vmatprep.subr.bf16.mxu0 0
    %481 = vmatpush2.bf16.msra.mxu0 0
    %482 = vmatprep.subr.bf16.mxu0 0
    %483 = vmatpush2.bf16.msra.mxu0 0
    %484 = vmatprep.subr.bf16.mxu0 0
    %485 = vmatpush2.bf16.msra.mxu0 0
    %486 = vmatprep.mubr.bf16.mxu0 0
    %487 = vmatmul.mubr.bf16.gmra.mxu0 %v452
    %v488 = vpop.f32.mrf.mxu0
    %v489 = vadd.f32 0.0, %v488
    %v490 = vpop.f32.mrf.mxu0
    %v491 = vpop.f32.mrf.mxu0
    %v492 = vpop.f32.mrf.mxu0
    %493 = vdwg.mxu0
    %v494 = vadd.f32 %v448, %v489
    %v495 = vxor.u32 %v445, 2147483648
    %v496 = vmul.f32 %v495, 1.442695
    %v497 = vpow.pop %v496
    %v498 = vadd.f32 %v497, 1.0
    %v499 = vrcp.pop %v498
    %v500 = vmul.f32 1.0, %v499
    %v501 = vtanh.pop %v445
    %v502 = vmul.f32 %v500, %v348
    %504 = vrot.lane.b32.xlu0 %v501, 32
    %v505 = vpop.permute.xlu0 %504
    %v507 = vmul.f32 %v500, %v505
    %509 = vrot.lane.b32.xlu0 %v507, 32
    %v510 = vpop.permute.xlu0 %509
    %v512 = vadd.f32 %v502, %v510
    %v513 = vtanh.pop %v512
    %515 = vrot.lane.b32.xlu0 %v513, 32
    %v516 = vpop.permute.xlu0 %515
    %v518 = vmul.f32 %v500, %v516
    %v519 = vxor.u32 %v494, 2147483648
    %v520 = vmul.f32 %v519, 1.442695
    %v521 = vpow.pop %v520
    %v522 = vadd.f32 %v521, 1.0
    %v523 = vrcp.pop %v522
    %v524 = vmul.f32 1.0, %v523
    %v525 = vtanh.pop %v494
    %v526 = vmul.f32 %v524, %v372
    %528 = vrot.lane.b32.xlu0 %v525, 32
    %v529 = vpop.permute.xlu0 %528
    %v531 = vmul.f32 %v524, %v529
    %533 = vrot.lane.b32.xlu0 %v531, 32
    %v534 = vpop.permute.xlu0 %533
    %v536 = vadd.f32 %v526, %v534
    %v537 = vtanh.pop %v536
    %539 = vrot.lane.b32.xlu0 %v537, 32
    %v540 = vpop.permute.xlu0 %539
    %v542 = vmul.f32 %v524, %v540
    %v543 = vpack.c.bf16 %v518, %v518
    %v545 = vunpack.c.l.b16 %v543
    %v546 = vpack.c.b16 %v545, %v545
    %547 = vrot.lane.b32.xlu0 %v546, 64
    %v548 = vpop.permute.xlu0 %547
    %s550 = scalar_lea.vmem %s3, 8
    %551 = vst.msk [vmem:[%s550] sm:$0xf] %vm221, %v548
    %v552 = vpack.c.bf16 %v542, %v542
    %v554 = vunpack.c.l.b16 %v552
    %v555 = vpack.c.b16 %v554, %v554
    %556 = vrot.lane.b32.xlu0 %v555, 96
    %v557 = vpop.permute.xlu0 %556
    %s559 = scalar_lea.vmem %s3, 20
    %560 = vst.msk [vmem:[%s559] sm:$0xf] %vm231, %v557
    %s561 = scalar_lea.vmem %s0, 24
    %v562 = vld [vmem:[%s561] sm:$0xf]
    %v563 = vunpack.c.l.bf16 %v562
    %564 = vrot.lane.b32.xlu0 %v543, 64
    %v565 = vpop.permute.xlu0 %564
    %v567 = vsel %vm65, %v565, 0
    %569 = vmatprep.subr.bf16.mxu0 0
    %570 = vmatpush1.bf16.msra.mxu0 0
    %571 = vmatprep.subr.bf16.mxu0 0
    %572 = vmatpush1.bf16.msra.mxu0 0
    %573 = vmatprep.subr.bf16.mxu0 0
    %574 = vmatpush1.bf16.msra.mxu0 0
    %575 = vmatprep.subr.bf16.mxu0 0
    %576 = vmatpush1.bf16.msra.mxu0 0
    %577 = vmatprep.subr.bf16.mxu0 0
    %578 = vmatpush1.bf16.msra.mxu0 0
    %579 = vmatprep.subr.bf16.mxu0 0
    %580 = vmatpush1.bf16.msra.mxu0 0
    %581 = vmatprep.subr.bf16.mxu0 0
    %582 = vmatpush1.bf16.msra.mxu0 %v62
    %583 = vmatprep.subr.bf16.mxu0 0
    %584 = vmatpush1.bf16.msra.mxu0 %v61
    %585 = vmatprep.subr.bf16.mxu0 0
    %586 = vmatpush2.bf16.msra.mxu0 0
    %587 = vmatprep.subr.bf16.mxu0 0
    %588 = vmatpush2.bf16.msra.mxu0 0
    %589 = vmatprep.subr.bf16.mxu0 0
    %590 = vmatpush2.bf16.msra.mxu0 0
    %591 = vmatprep.subr.bf16.mxu0 0
    %592 = vmatpush2.bf16.msra.mxu0 0
    %593 = vmatprep.subr.bf16.mxu0 0
    %594 = vmatpush2.bf16.msra.mxu0 0
    %595 = vmatprep.subr.bf16.mxu0 0
    %596 = vmatpush2.bf16.msra.mxu0 0
    %597 = vmatprep.subr.bf16.mxu0 0
    %598 = vmatpush2.bf16.msra.mxu0 0
    %599 = vmatprep.subr.bf16.mxu0 0
    %600 = vmatpush2.bf16.msra.mxu0 0
    %601 = vmatprep.mubr.bf16.mxu0 0
    %602 = vmatmul.mubr.bf16.gmra.mxu0 %v567
    %v603 = vpop.f32.mrf.mxu0
    %v604 = vadd.f32 0.0, %v603
    %v605 = vpop.f32.mrf.mxu0
    %v606 = vpop.f32.mrf.mxu0
    %v607 = vpop.f32.mrf.mxu0
    %608 = vdwg.mxu0
    %v609 = vadd.f32 %v563, %v604
    %s610 = scalar_lea.vmem %s0, 32
    %v611 = vld [vmem:[%s610 + $0x4] sm:$0xf]
    %v612 = vunpack.c.l.bf16 %v611
    %613 = vrot.lane.b32.xlu0 %v552, 64
    %v614 = vpop.permute.xlu0 %613
    %v616 = vsel %vm65, %v614, 0
    %618 = vmatprep.subr.bf16.mxu0 0
    %619 = vmatpush1.bf16.msra.mxu0 0
    %620 = vmatprep.subr.bf16.mxu0 0
    %621 = vmatpush1.bf16.msra.mxu0 0
    %622 = vmatprep.subr.bf16.mxu0 0
    %623 = vmatpush1.bf16.msra.mxu0 0
    %624 = vmatprep.subr.bf16.mxu0 0
    %625 = vmatpush1.bf16.msra.mxu0 0
    %626 = vmatprep.subr.bf16.mxu0 0
    %627 = vmatpush1.bf16.msra.mxu0 0
    %628 = vmatprep.subr.bf16.mxu0 0
    %629 = vmatpush1.bf16.msra.mxu0 0
    %630 = vmatprep.subr.bf16.mxu0 0
    %631 = vmatpush1.bf16.msra.mxu0 %v122
    %632 = vmatprep.subr.bf16.mxu0 0
    %633 = vmatpush1.bf16.msra.mxu0 %v121
    %634 = vmatprep.subr.bf16.mxu0 0
    %635 = vmatpush2.bf16.msra.mxu0 0
    %636 = vmatprep.subr.bf16.mxu0 0
    %637 = vmatpush2.bf16.msra.mxu0 0
    %638 = vmatprep.subr.bf16.mxu0 0
    %639 = vmatpush2.bf16.msra.mxu0 0
    %640 = vmatprep.subr.bf16.mxu0 0
    %641 = vmatpush2.bf16.msra.mxu0 0
    %642 = vmatprep.subr.bf16.mxu0 0
    %643 = vmatpush2.bf16.msra.mxu0 0
    %644 = vmatprep.subr.bf16.mxu0 0
    %645 = vmatpush2.bf16.msra.mxu0 0
    %646 = vmatprep.subr.bf16.mxu0 0
    %647 = vmatpush2.bf16.msra.mxu0 0
    %648 = vmatprep.subr.bf16.mxu0 0
    %649 = vmatpush2.bf16.msra.mxu0 0
    %650 = vmatprep.mubr.bf16.mxu0 0
    %651 = vmatmul.mubr.bf16.gmra.mxu0 %v616
    %v652 = vpop.f32.mrf.mxu0
    %v653 = vadd.f32 0.0, %v652
    %v654 = vpop.f32.mrf.mxu0
    %v655 = vpop.f32.mrf.mxu0
    %v656 = vpop.f32.mrf.mxu0
    %657 = vdwg.mxu0
    %v658 = vadd.f32 %v612, %v653
    %v659 = vxor.u32 %v609, 2147483648
    %v660 = vmul.f32 %v659, 1.442695
    %v661 = vpow.pop %v660
    %v662 = vadd.f32 %v661, 1.0
    %v663 = vrcp.pop %v662
    %v664 = vmul.f32 1.0, %v663
    %v665 = vtanh.pop %v609
    %v666 = vmul.f32 %v664, %v512
    %668 = vrot.lane.b32.xlu0 %v665, 32
    %v669 = vpop.permute.xlu0 %668
    %v671 = vmul.f32 %v664, %v669
    %673 = vrot.lane.b32.xlu0 %v671, 32
    %v674 = vpop.permute.xlu0 %673
    %v676 = vadd.f32 %v666, %v674
    %v677 = vtanh.pop %v676
    %679 = vrot.lane.b32.xlu0 %v677, 32
    %v680 = vpop.permute.xlu0 %679
    %v682 = vmul.f32 %v664, %v680
    %v683 = vxor.u32 %v658, 2147483648
    %v684 = vmul.f32 %v683, 1.442695
    %v685 = vpow.pop %v684
    %v686 = vadd.f32 %v685, 1.0
    %v687 = vrcp.pop %v686
    %v688 = vmul.f32 1.0, %v687
    %v689 = vtanh.pop %v658
    %v690 = vmul.f32 %v688, %v536
    %692 = vrot.lane.b32.xlu0 %v689, 32
    %v693 = vpop.permute.xlu0 %692
    %v695 = vmul.f32 %v688, %v693
    %697 = vrot.lane.b32.xlu0 %v695, 32
    %v698 = vpop.permute.xlu0 %697
    %v700 = vadd.f32 %v690, %v698
    %v701 = vtanh.pop %v700
    %703 = vrot.lane.b32.xlu0 %v701, 32
    %v704 = vpop.permute.xlu0 %703
    %v706 = vmul.f32 %v688, %v704
    %v707 = vpack.c.bf16 %v682, %v682
    %v709 = vunpack.c.l.b16 %v707
    %v710 = vpack.c.b16 %v709, %v709
    %711 = vrot.lane.b32.xlu0 %v710, 64
    %v712 = vpop.permute.xlu0 %711
    %s714 = scalar_lea.vmem %s3, 12
    %715 = vst.msk [vmem:[%s714] sm:$0xf] %vm221, %v712
    %v716 = vpack.c.bf16 %v706, %v706
    %v718 = vunpack.c.l.b16 %v716
    %v719 = vpack.c.b16 %v718, %v718
    %720 = vrot.lane.b32.xlu0 %v719, 96
    %v721 = vpop.permute.xlu0 %720
    %s723 = scalar_lea.vmem %s3, 16
    %724 = vst.msk [vmem:[%s723] sm:$0xf] %vm231, %v721
    %v725 = vld [vmem:[%s610] sm:$0xf]
    %v726 = vunpack.c.l.bf16 %v725
    %727 = vrot.lane.b32.xlu0 %v707, 64
    %v728 = vpop.permute.xlu0 %727
    %v730 = vsel %vm65, %v728, 0
    %732 = vmatprep.subr.bf16.mxu0 0
    %733 = vmatpush1.bf16.msra.mxu0 0
    %734 = vmatprep.subr.bf16.mxu0 0
    %735 = vmatpush1.bf16.msra.mxu0 0
    %736 = vmatprep.subr.bf16.mxu0 0
    %737 = vmatpush1.bf16.msra.mxu0 0
    %738 = vmatprep.subr.bf16.mxu0 0
    %739 = vmatpush1.bf16.msra.mxu0 0
    %740 = vmatprep.subr.bf16.mxu0 0
    %741 = vmatpush1.bf16.msra.mxu0 0
    %742 = vmatprep.subr.bf16.mxu0 0
    %743 = vmatpush1.bf16.msra.mxu0 0
    %744 = vmatprep.subr.bf16.mxu0 0
    %745 = vmatpush1.bf16.msra.mxu0 %v62
    %746 = vmatprep.subr.bf16.mxu0 0
    %747 = vmatpush1.bf16.msra.mxu0 %v61
    %748 = vmatprep.subr.bf16.mxu0 0
    %749 = vmatpush2.bf16.msra.mxu0 0
    %750 = vmatprep.subr.bf16.mxu0 0
    %751 = vmatpush2.bf16.msra.mxu0 0
    %752 = vmatprep.subr.bf16.mxu0 0
    %753 = vmatpush2.bf16.msra.mxu0 0
    %754 = vmatprep.subr.bf16.mxu0 0
    %755 = vmatpush2.bf16.msra.mxu0 0
    %756 = vmatprep.subr.bf16.mxu0 0
    %757 = vmatpush2.bf16.msra.mxu0 0
    %758 = vmatprep.subr.bf16.mxu0 0
    %759 = vmatpush2.bf16.msra.mxu0 0
    %760 = vmatprep.subr.bf16.mxu0 0
    %761 = vmatpush2.bf16.msra.mxu0 0
    %762 = vmatprep.subr.bf16.mxu0 0
    %763 = vmatpush2.bf16.msra.mxu0 0
    %764 = vmatprep.mubr.bf16.mxu0 0
    %765 = vmatmul.mubr.bf16.gmra.mxu0 %v730
    %v766 = vpop.f32.mrf.mxu0
    %v767 = vadd.f32 0.0, %v766
    %v768 = vpop.f32.mrf.mxu0
    %v769 = vpop.f32.mrf.mxu0
    %v770 = vpop.f32.mrf.mxu0
    %771 = vdwg.mxu0
    %v772 = vadd.f32 %v726, %v767
    %v773 = vld [vmem:[%s561 + $0x4] sm:$0xf]
    %v774 = vunpack.c.l.bf16 %v773
    %775 = vrot.lane.b32.xlu0 %v716, 64
    %v776 = vpop.permute.xlu0 %775
    %v778 = vsel %vm65, %v776, 0
    %780 = vmatprep.subr.bf16.mxu0 0
    %781 = vmatpush1.bf16.msra.mxu0 0
    %782 = vmatprep.subr.bf16.mxu0 0
    %783 = vmatpush1.bf16.msra.mxu0 0
    %784 = vmatprep.subr.bf16.mxu0 0
    %785 = vmatpush1.bf16.msra.mxu0 0
    %786 = vmatprep.subr.bf16.mxu0 0
    %787 = vmatpush1.bf16.msra.mxu0 0
    %788 = vmatprep.subr.bf16.mxu0 0
    %789 = vmatpush1.bf16.msra.mxu0 0
    %790 = vmatprep.subr.bf16.mxu0 0
    %791 = vmatpush1.bf16.msra.mxu0 0
    %792 = vmatprep.subr.bf16.mxu0 0
    %793 = vmatpush1.bf16.msra.mxu0 %v122
    %794 = vmatprep.subr.bf16.mxu0 0
    %795 = vmatpush1.bf16.msra.mxu0 %v121
    %796 = vmatprep.subr.bf16.mxu0 0
    %797 = vmatpush2.bf16.msra.mxu0 0
    %798 = vmatprep.subr.bf16.mxu0 0
    %799 = vmatpush2.bf16.msra.mxu0 0
    %800 = vmatprep.subr.bf16.mxu0 0
    %801 = vmatpush2.bf16.msra.mxu0 0
    %802 = vmatprep.subr.bf16.mxu0 0
    %803 = vmatpush2.bf16.msra.mxu0 0
    %804 = vmatprep.subr.bf16.mxu0 0
    %805 = vmatpush2.bf16.msra.mxu0 0
    %806 = vmatprep.subr.bf16.mxu0 0
    %807 = vmatpush2.bf16.msra.mxu0 0
    %808 = vmatprep.subr.bf16.mxu0 0
    %809 = vmatpush2.bf16.msra.mxu0 0
    %810 = vmatprep.subr.bf16.mxu0 0
    %811 = vmatpush2.bf16.msra.mxu0 0
    %812 = vmatprep.mubr.bf16.mxu0 0
    %813 = vmatmul.mubr.bf16.gmra.mxu0 %v778
    %v814 = vpop.f32.mrf.mxu0
    %v815 = vadd.f32 0.0, %v814
    %v816 = vpop.f32.mrf.mxu0
    %v817 = vpop.f32.mrf.mxu0
    %v818 = vpop.f32.mrf.mxu0
    %819 = vdwg.mxu0
    %v820 = vadd.f32 %v774, %v815
    %v821 = vxor.u32 %v772, 2147483648
    %v822 = vmul.f32 %v821, 1.442695
    %v823 = vpow.pop %v822
    %v824 = vadd.f32 %v823, 1.0
    %v825 = vrcp.pop %v824
    %v826 = vmul.f32 1.0, %v825
    %v827 = vtanh.pop %v772
    %v828 = vmul.f32 %v826, %v676
    %830 = vrot.lane.b32.xlu0 %v827, 32
    %v831 = vpop.permute.xlu0 %830
    %v833 = vmul.f32 %v826, %v831
    %835 = vrot.lane.b32.xlu0 %v833, 32
    %v836 = vpop.permute.xlu0 %835
    %v838 = vadd.f32 %v828, %v836
    %v839 = vtanh.pop %v838
    %841 = vrot.lane.b32.xlu0 %v839, 32
    %v842 = vpop.permute.xlu0 %841
    %v844 = vmul.f32 %v826, %v842
    %v845 = vxor.u32 %v820, 2147483648
    %v846 = vmul.f32 %v845, 1.442695
    %v847 = vpow.pop %v846
    %v848 = vadd.f32 %v847, 1.0
    %v849 = vrcp.pop %v848
    %v850 = vmul.f32 1.0, %v849
    %v851 = vtanh.pop %v820
    %v852 = vmul.f32 %v850, %v700
    %854 = vrot.lane.b32.xlu0 %v851, 32
    %v855 = vpop.permute.xlu0 %854
    %v857 = vmul.f32 %v850, %v855
    %859 = vrot.lane.b32.xlu0 %v857, 32
    %v860 = vpop.permute.xlu0 %859
    %v862 = vadd.f32 %v852, %v860
    %v863 = vtanh.pop %v862
    %865 = vrot.lane.b32.xlu0 %v863, 32
    %v866 = vpop.permute.xlu0 %865
    %v868 = vmul.f32 %v850, %v866
    %v869 = vpack.c.bf16 %v844, %v844
    %v871 = vunpack.c.l.b16 %v869
    %v872 = vpack.c.b16 %v871, %v871
    %873 = vrot.lane.b32.xlu0 %v872, 64
    %v874 = vpop.permute.xlu0 %873
    %876 = vst.msk [vmem:[%s723] sm:$0xf] %vm221, %v874
    %v877 = vpack.c.bf16 %v868, %v868
    %v879 = vunpack.c.l.b16 %v877
    %v880 = vpack.c.b16 %v879, %v879
    %881 = vrot.lane.b32.xlu0 %v880, 96
    %v882 = vpop.permute.xlu0 %881
    %884 = vst.msk [vmem:[%s714] sm:$0xf] %vm231, %v882
    %v885 = vld [vmem:[%s446] sm:$0xf]
    %v886 = vunpack.c.l.bf16 %v885
    %887 = vrot.lane.b32.xlu0 %v869, 64
    %v888 = vpop.permute.xlu0 %887
    %v890 = vsel %vm65, %v888, 0
    %892 = vmatprep.subr.bf16.mxu0 0
    %893 = vmatpush1.bf16.msra.mxu0 0
    %894 = vmatprep.subr.bf16.mxu0 0
    %895 = vmatpush1.bf16.msra.mxu0 0
    %896 = vmatprep.subr.bf16.mxu0 0
    %897 = vmatpush1.bf16.msra.mxu0 0
    %898 = vmatprep.subr.bf16.mxu0 0
    %899 = vmatpush1.bf16.msra.mxu0 0
    %900 = vmatprep.subr.bf16.mxu0 0
    %901 = vmatpush1.bf16.msra.mxu0 0
    %902 = vmatprep.subr.bf16.mxu0 0
    %903 = vmatpush1.bf16.msra.mxu0 0
    %904 = vmatprep.subr.bf16.mxu0 0
    %905 = vmatpush1.bf16.msra.mxu0 %v62
    %906 = vmatprep.subr.bf16.mxu0 0
    %907 = vmatpush1.bf16.msra.mxu0 %v61
    %908 = vmatprep.subr.bf16.mxu0 0
    %909 = vmatpush2.bf16.msra.mxu0 0
    %910 = vmatprep.subr.bf16.mxu0 0
    %911 = vmatpush2.bf16.msra.mxu0 0
    %912 = vmatprep.subr.bf16.mxu0 0
    %913 = vmatpush2.bf16.msra.mxu0 0
    %914 = vmatprep.subr.bf16.mxu0 0
    %915 = vmatpush2.bf16.msra.mxu0 0
    %916 = vmatprep.subr.bf16.mxu0 0
    %917 = vmatpush2.bf16.msra.mxu0 0
    %918 = vmatprep.subr.bf16.mxu0 0
    %919 = vmatpush2.bf16.msra.mxu0 0
    %920 = vmatprep.subr.bf16.mxu0 0
    %921 = vmatpush2.bf16.msra.mxu0 0
    %922 = vmatprep.subr.bf16.mxu0 0
    %923 = vmatpush2.bf16.msra.mxu0 0
    %924 = vmatprep.mubr.bf16.mxu0 0
    %925 = vmatmul.mubr.bf16.gmra.mxu0 %v890
    %v926 = vpop.f32.mrf.mxu0
    %v927 = vadd.f32 0.0, %v926
    %v928 = vpop.f32.mrf.mxu0
    %v929 = vpop.f32.mrf.mxu0
    %v930 = vpop.f32.mrf.mxu0
    %931 = vdwg.mxu0
    %v932 = vadd.f32 %v886, %v927
    %v933 = vld [vmem:[%s397 + $0x4] sm:$0xf]
    %v934 = vunpack.c.l.bf16 %v933
    %935 = vrot.lane.b32.xlu0 %v877, 64
    %v936 = vpop.permute.xlu0 %935
    %v938 = vsel %vm65, %v936, 0
    %940 = vmatprep.subr.bf16.mxu0 0
    %941 = vmatpush1.bf16.msra.mxu0 0
    %942 = vmatprep.subr.bf16.mxu0 0
    %943 = vmatpush1.bf16.msra.mxu0 0
    %944 = vmatprep.subr.bf16.mxu0 0
    %945 = vmatpush1.bf16.msra.mxu0 0
    %946 = vmatprep.subr.bf16.mxu0 0
    %947 = vmatpush1.bf16.msra.mxu0 0
    %948 = vmatprep.subr.bf16.mxu0 0
    %949 = vmatpush1.bf16.msra.mxu0 0
    %950 = vmatprep.subr.bf16.mxu0 0
    %951 = vmatpush1.bf16.msra.mxu0 0
    %952 = vmatprep.subr.bf16.mxu0 0
    %953 = vmatpush1.bf16.msra.mxu0 %v122
    %954 = vmatprep.subr.bf16.mxu0 0
    %955 = vmatpush1.bf16.msra.mxu0 %v121
    %956 = vmatprep.subr.bf16.mxu0 0
    %957 = vmatpush2.bf16.msra.mxu0 0
    %958 = vmatprep.subr.bf16.mxu0 0
    %959 = vmatpush2.bf16.msra.mxu0 0
    %960 = vmatprep.subr.bf16.mxu0 0
    %961 = vmatpush2.bf16.msra.mxu0 0
    %962 = vmatprep.subr.bf16.mxu0 0
    %963 = vmatpush2.bf16.msra.mxu0 0
    %964 = vmatprep.subr.bf16.mxu0 0
    %965 = vmatpush2.bf16.msra.mxu0 0
    %966 = vmatprep.subr.bf16.mxu0 0
    %967 = vmatpush2.bf16.msra.mxu0 0
    %968 = vmatprep.subr.bf16.mxu0 0
    %969 = vmatpush2.bf16.msra.mxu0 0
    %970 = vmatprep.subr.bf16.mxu0 0
    %971 = vmatpush2.bf16.msra.mxu0 0
    %972 = vmatprep.mubr.bf16.mxu0 0
    %973 = vmatmul.mubr.bf16.gmra.mxu0 %v938
    %v974 = vpop.f32.mrf.mxu0
    %v975 = vadd.f32 0.0, %v974
    %v976 = vpop.f32.mrf.mxu0
    %v977 = vpop.f32.mrf.mxu0
    %v978 = vpop.f32.mrf.mxu0
    %979 = vdwg.mxu0
    %v980 = vadd.f32 %v934, %v975
    %v981 = vxor.u32 %v932, 2147483648
    %v982 = vmul.f32 %v981, 1.442695
    %v983 = vpow.pop %v982
    %v984 = vadd.f32 %v983, 1.0
    %v985 = vrcp.pop %v984
    %v986 = vmul.f32 1.0, %v985
    %v987 = vtanh.pop %v932
    %v988 = vmul.f32 %v986, %v838
    %990 = vrot.lane.b32.xlu0 %v987, 32
    %v991 = vpop.permute.xlu0 %990
    %v993 = vmul.f32 %v986, %v991
    %995 = vrot.lane.b32.xlu0 %v993, 32
    %v996 = vpop.permute.xlu0 %995
    %v998 = vadd.f32 %v988, %v996
    %v999 = vtanh.pop %v998
    %1001 = vrot.lane.b32.xlu0 %v999, 32
    %v1002 = vpop.permute.xlu0 %1001
    %v1004 = vmul.f32 %v986, %v1002
    %v1005 = vxor.u32 %v980, 2147483648
    %v1006 = vmul.f32 %v1005, 1.442695
    %v1007 = vpow.pop %v1006
    %v1008 = vadd.f32 %v1007, 1.0
    %v1009 = vrcp.pop %v1008
    %v1010 = vmul.f32 1.0, %v1009
    %v1011 = vtanh.pop %v980
    %v1012 = vmul.f32 %v1010, %v862
    %1014 = vrot.lane.b32.xlu0 %v1011, 32
    %v1015 = vpop.permute.xlu0 %1014
    %v1017 = vmul.f32 %v1010, %v1015
    %1019 = vrot.lane.b32.xlu0 %v1017, 32
    %v1020 = vpop.permute.xlu0 %1019
    %v1022 = vadd.f32 %v1012, %v1020
    %v1023 = vtanh.pop %v1022
    %1025 = vrot.lane.b32.xlu0 %v1023, 32
    %v1026 = vpop.permute.xlu0 %1025
    %v1028 = vmul.f32 %v1010, %v1026
    %v1029 = vpack.c.bf16 %v1004, %v1004
    %v1031 = vunpack.c.l.b16 %v1029
    %v1032 = vpack.c.b16 %v1031, %v1031
    %1033 = vrot.lane.b32.xlu0 %v1032, 64
    %v1034 = vpop.permute.xlu0 %1033
    %1036 = vst.msk [vmem:[%s559] sm:$0xf] %vm221, %v1034
    %v1037 = vpack.c.bf16 %v1028, %v1028
    %v1039 = vunpack.c.l.b16 %v1037
    %v1040 = vpack.c.b16 %v1039, %v1039
    %1041 = vrot.lane.b32.xlu0 %v1040, 96
    %v1042 = vpop.permute.xlu0 %1041
    %1044 = vst.msk [vmem:[%s550] sm:$0xf] %vm231, %v1042
    %v1045 = vld [vmem:[%s282] sm:$0xf]
    %v1046 = vunpack.c.l.bf16 %v1045
    %1047 = vrot.lane.b32.xlu0 %v1029, 64
    %v1048 = vpop.permute.xlu0 %1047
    %v1050 = vsel %vm65, %v1048, 0
    %1052 = vmatprep.subr.bf16.mxu0 0
    %1053 = vmatpush1.bf16.msra.mxu0 0
    %1054 = vmatprep.subr.bf16.mxu0 0
    %1055 = vmatpush1.bf16.msra.mxu0 0
    %1056 = vmatprep.subr.bf16.mxu0 0
    %1057 = vmatpush1.bf16.msra.mxu0 0
    %1058 = vmatprep.subr.bf16.mxu0 0
    %1059 = vmatpush1.bf16.msra.mxu0 0
    %1060 = vmatprep.subr.bf16.mxu0 0
    %1061 = vmatpush1.bf16.msra.mxu0 0
    %1062 = vmatprep.subr.bf16.mxu0 0
    %1063 = vmatpush1.bf16.msra.mxu0 0
    %1064 = vmatprep.subr.bf16.mxu0 0
    %1065 = vmatpush1.bf16.msra.mxu0 %v62
    %1066 = vmatprep.subr.bf16.mxu0 0
    %1067 = vmatpush1.bf16.msra.mxu0 %v61
    %1068 = vmatprep.subr.bf16.mxu0 0
    %1069 = vmatpush2.bf16.msra.mxu0 0
    %1070 = vmatprep.subr.bf16.mxu0 0
    %1071 = vmatpush2.bf16.msra.mxu0 0
    %1072 = vmatprep.subr.bf16.mxu0 0
    %1073 = vmatpush2.bf16.msra.mxu0 0
    %1074 = vmatprep.subr.bf16.mxu0 0
    %1075 = vmatpush2.bf16.msra.mxu0 0
    %1076 = vmatprep.subr.bf16.mxu0 0
    %1077 = vmatpush2.bf16.msra.mxu0 0
    %1078 = vmatprep.subr.bf16.mxu0 0
    %1079 = vmatpush2.bf16.msra.mxu0 0
    %1080 = vmatprep.subr.bf16.mxu0 0
    %1081 = vmatpush2.bf16.msra.mxu0 0
    %1082 = vmatprep.subr.bf16.mxu0 0
    %1083 = vmatpush2.bf16.msra.mxu0 0
    %1084 = vmatprep.mubr.bf16.mxu0 0
    %1085 = vmatmul.mubr.bf16.gmra.mxu0 %v1050
    %v1086 = vpop.f32.mrf.mxu0
    %v1087 = vadd.f32 0.0, %v1086
    %v1088 = vpop.f32.mrf.mxu0
    %v1089 = vpop.f32.mrf.mxu0
    %v1090 = vpop.f32.mrf.mxu0
    %1091 = vdwg.mxu0
    %v1092 = vadd.f32 %v1046, %v1087
    %v1093 = vld [vmem:[%s233 + $0x4] sm:$0xf]
    %v1094 = vunpack.c.l.bf16 %v1093
    %1095 = vrot.lane.b32.xlu0 %v1037, 64
    %v1096 = vpop.permute.xlu0 %1095
    %v1098 = vsel %vm65, %v1096, 0
    %1100 = vmatprep.subr.bf16.mxu0 0
    %1101 = vmatpush1.bf16.msra.mxu0 0
    %1102 = vmatprep.subr.bf16.mxu0 0
    %1103 = vmatpush1.bf16.msra.mxu0 0
    %1104 = vmatprep.subr.bf16.mxu0 0
    %1105 = vmatpush1.bf16.msra.mxu0 0
    %1106 = vmatprep.subr.bf16.mxu0 0
    %1107 = vmatpush1.bf16.msra.mxu0 0
    %1108 = vmatprep.subr.bf16.mxu0 0
    %1109 = vmatpush1.bf16.msra.mxu0 0
    %1110 = vmatprep.subr.bf16.mxu0 0
    %1111 = vmatpush1.bf16.msra.mxu0 0
    %1112 = vmatprep.subr.bf16.mxu0 0
    %1113 = vmatpush1.bf16.msra.mxu0 %v122
    %1114 = vmatprep.subr.bf16.mxu0 0
    %1115 = vmatpush1.bf16.msra.mxu0 %v121
    %1116 = vmatprep.subr.bf16.mxu0 0
    %1117 = vmatpush2.bf16.msra.mxu0 0
    %1118 = vmatprep.subr.bf16.mxu0 0
    %1119 = vmatpush2.bf16.msra.mxu0 0
    %1120 = vmatprep.subr.bf16.mxu0 0
    %1121 = vmatpush2.bf16.msra.mxu0 0
    %1122 = vmatprep.subr.bf16.mxu0 0
    %1123 = vmatpush2.bf16.msra.mxu0 0
    %1124 = vmatprep.subr.bf16.mxu0 0
    %1125 = vmatpush2.bf16.msra.mxu0 0
    %1126 = vmatprep.subr.bf16.mxu0 0
    %1127 = vmatpush2.bf16.msra.mxu0 0
    %1128 = vmatprep.subr.bf16.mxu0 0
    %1129 = vmatpush2.bf16.msra.mxu0 0
    %1130 = vmatprep.subr.bf16.mxu0 0
    %1131 = vmatpush2.bf16.msra.mxu0 0
    %1132 = vmatprep.mubr.bf16.mxu0 0
    %1133 = vmatmul.mubr.bf16.gmra.mxu0 %v1098
    %v1134 = vpop.f32.mrf.mxu0
    %v1135 = vadd.f32 0.0, %v1134
    %v1136 = vpop.f32.mrf.mxu0
    %v1137 = vpop.f32.mrf.mxu0
    %v1138 = vpop.f32.mrf.mxu0
    %1139 = vdwg.mxu0
    %v1140 = vadd.f32 %v1094, %v1135
    %v1141 = vxor.u32 %v1092, 2147483648
    %v1142 = vmul.f32 %v1141, 1.442695
    %v1143 = vpow.pop %v1142
    %v1144 = vadd.f32 %v1143, 1.0
    %v1145 = vrcp.pop %v1144
    %v1146 = vmul.f32 1.0, %v1145
    %v1147 = vtanh.pop %v1092
    %v1148 = vmul.f32 %v1146, %v998
    %1150 = vrot.lane.b32.xlu0 %v1147, 32
    %v1151 = vpop.permute.xlu0 %1150
    %v1153 = vmul.f32 %v1146, %v1151
    %1155 = vrot.lane.b32.xlu0 %v1153, 32
    %v1156 = vpop.permute.xlu0 %1155
    %v1158 = vadd.f32 %v1148, %v1156
    %v1159 = vtanh.pop %v1158
    %1161 = vrot.lane.b32.xlu0 %v1159, 32
    %v1162 = vpop.permute.xlu0 %1161
    %v1164 = vmul.f32 %v1146, %v1162
    %v1165 = vxor.u32 %v1140, 2147483648
    %v1166 = vmul.f32 %v1165, 1.442695
    %v1167 = vpow.pop %v1166
    %v1168 = vadd.f32 %v1167, 1.0
    %v1169 = vrcp.pop %v1168
    %v1170 = vmul.f32 1.0, %v1169
    %v1171 = vtanh.pop %v1140
    %v1172 = vmul.f32 %v1170, %v1022
    %1174 = vrot.lane.b32.xlu0 %v1171, 32
    %v1175 = vpop.permute.xlu0 %1174
    %v1177 = vmul.f32 %v1170, %v1175
    %1179 = vrot.lane.b32.xlu0 %v1177, 32
    %v1180 = vpop.permute.xlu0 %1179
    %v1182 = vadd.f32 %v1172, %v1180
    %v1183 = vtanh.pop %v1182
    %1185 = vrot.lane.b32.xlu0 %v1183, 32
    %v1186 = vpop.permute.xlu0 %1185
    %v1188 = vmul.f32 %v1170, %v1186
    %v1189 = vpack.c.bf16 %v1164, %v1164
    %v1191 = vunpack.c.l.b16 %v1189
    %v1192 = vpack.c.b16 %v1191, %v1191
    %1193 = vrot.lane.b32.xlu0 %v1192, 64
    %v1194 = vpop.permute.xlu0 %1193
    %1196 = vst.msk [vmem:[%s395] sm:$0xf] %vm221, %v1194
    %v1197 = vpack.c.bf16 %v1188, %v1188
    %v1199 = vunpack.c.l.b16 %v1197
    %v1200 = vpack.c.b16 %v1199, %v1199
    %1201 = vrot.lane.b32.xlu0 %v1200, 96
    %v1202 = vpop.permute.xlu0 %1201
    %1204 = vst.msk [vmem:[%s386] sm:$0xf] %vm231, %v1202
    %v1205 = vld [vmem:[%s110] sm:$0xf]
    %v1206 = vunpack.c.l.bf16 %v1205
    %1207 = vrot.lane.b32.xlu0 %v1189, 64
    %v1208 = vpop.permute.xlu0 %1207
    %v1210 = vsel %vm65, %v1208, 0
    %1212 = vmatprep.subr.bf16.mxu0 0
    %1213 = vmatpush1.bf16.msra.mxu0 0
    %1214 = vmatprep.subr.bf16.mxu0 0
    %1215 = vmatpush1.bf16.msra.mxu0 0
    %1216 = vmatprep.subr.bf16.mxu0 0
    %1217 = vmatpush1.bf16.msra.mxu0 0
    %1218 = vmatprep.subr.bf16.mxu0 0
    %1219 = vmatpush1.bf16.msra.mxu0 0
    %1220 = vmatprep.subr.bf16.mxu0 0
    %1221 = vmatpush1.bf16.msra.mxu0 0
    %1222 = vmatprep.subr.bf16.mxu0 0
    %1223 = vmatpush1.bf16.msra.mxu0 0
    %1224 = vmatprep.subr.bf16.mxu0 0
    %1225 = vmatpush1.bf16.msra.mxu0 %v62
    %1226 = vmatprep.subr.bf16.mxu0 0
    %1227 = vmatpush1.bf16.msra.mxu0 %v61
    %1228 = vmatprep.subr.bf16.mxu0 0
    %1229 = vmatpush2.bf16.msra.mxu0 0
    %1230 = vmatprep.subr.bf16.mxu0 0
    %1231 = vmatpush2.bf16.msra.mxu0 0
    %1232 = vmatprep.subr.bf16.mxu0 0
    %1233 = vmatpush2.bf16.msra.mxu0 0
    %1234 = vmatprep.subr.bf16.mxu0 0
    %1235 = vmatpush2.bf16.msra.mxu0 0
    %1236 = vmatprep.subr.bf16.mxu0 0
    %1237 = vmatpush2.bf16.msra.mxu0 0
    %1238 = vmatprep.subr.bf16.mxu0 0
    %1239 = vmatpush2.bf16.msra.mxu0 0
    %1240 = vmatprep.subr.bf16.mxu0 0
    %1241 = vmatpush2.bf16.msra.mxu0 0
    %1242 = vmatprep.subr.bf16.mxu0 0
    %1243 = vmatpush2.bf16.msra.mxu0 0
    %1244 = vmatprep.mubr.bf16.mxu0 0
    %1245 = vmatmul.mubr.bf16.gmra.mxu0 %v1210
    %v1246 = vpop.f32.mrf.mxu0
    %v1247 = vadd.f32 0.0, %v1246
    %v1248 = vpop.f32.mrf.mxu0
    %v1249 = vpop.f32.mrf.mxu0
    %v1250 = vpop.f32.mrf.mxu0
    %1251 = vdwg.mxu0
    %v1252 = vadd.f32 %v1206, %v1247
    %v1253 = vld [vmem:[%s0 + $0x4] sm:$0xf]
    %v1254 = vunpack.c.l.bf16 %v1253
    %1255 = vrot.lane.b32.xlu0 %v1197, 64
    %v1256 = vpop.permute.xlu0 %1255
    %v1258 = vsel %vm65, %v1256, 0
    %1260 = vmatprep.subr.bf16.mxu0 0
    %1261 = vmatpush1.bf16.msra.mxu0 0
    %1262 = vmatprep.subr.bf16.mxu0 0
    %1263 = vmatpush1.bf16.msra.mxu0 0
    %1264 = vmatprep.subr.bf16.mxu0 0
    %1265 = vmatpush1.bf16.msra.mxu0 0
    %1266 = vmatprep.subr.bf16.mxu0 0
    %1267 = vmatpush1.bf16.msra.mxu0 0
    %1268 = vmatprep.subr.bf16.mxu0 0
    %1269 = vmatpush1.bf16.msra.mxu0 0
    %1270 = vmatprep.subr.bf16.mxu0 0
    %1271 = vmatpush1.bf16.msra.mxu0 0
    %1272 = vmatprep.subr.bf16.mxu0 0
    %1273 = vmatpush1.bf16.msra.mxu0 %v122
    %1274 = vmatprep.subr.bf16.mxu0 0
    %1275 = vmatpush1.bf16.msra.mxu0 %v121
    %1276 = vmatprep.subr.bf16.mxu0 0
    %1277 = vmatpush2.bf16.msra.mxu0 0
    %1278 = vmatprep.subr.bf16.mxu0 0
    %1279 = vmatpush2.bf16.msra.mxu0 0
    %1280 = vmatprep.subr.bf16.mxu0 0
    %1281 = vmatpush2.bf16.msra.mxu0 0
    %1282 = vmatprep.subr.bf16.mxu0 0
    %1283 = vmatpush2.bf16.msra.mxu0 0
    %1284 = vmatprep.subr.bf16.mxu0 0
    %1285 = vmatpush2.bf16.msra.mxu0 0
    %1286 = vmatprep.subr.bf16.mxu0 0
    %1287 = vmatpush2.bf16.msra.mxu0 0
    %1288 = vmatprep.subr.bf16.mxu0 0
    %1289 = vmatpush2.bf16.msra.mxu0 0
    %1290 = vmatprep.subr.bf16.mxu0 0
    %1291 = vmatpush2.bf16.msra.mxu0 0
    %1292 = vmatprep.mubr.bf16.mxu0 0
    %1293 = vmatmul.mubr.bf16.gmra.mxu0 %v1258
    %v1294 = vpop.f32.mrf.mxu0
    %v1295 = vadd.f32 0.0, %v1294
    %v1296 = vpop.f32.mrf.mxu0
    %v1297 = vpop.f32.mrf.mxu0
    %v1298 = vpop.f32.mrf.mxu0
    %1299 = vdwg.mxu0
    %v1300 = vadd.f32 %v1254, %v1295
    %v1301 = vxor.u32 %v1252, 2147483648
    %v1302 = vmul.f32 %v1301, 1.442695
    %v1303 = vpow.pop %v1302
    %v1304 = vadd.f32 %v1303, 1.0
    %v1305 = vrcp.pop %v1304
    %v1306 = vmul.f32 1.0, %v1305
    %v1307 = vtanh.pop %v1252
    %v1308 = vmul.f32 %v1306, %v1158
    %1310 = vrot.lane.b32.xlu0 %v1307, 32
    %v1311 = vpop.permute.xlu0 %1310
    %v1313 = vmul.f32 %v1306, %v1311
    %1315 = vrot.lane.b32.xlu0 %v1313, 32
    %v1316 = vpop.permute.xlu0 %1315
    %v1318 = vadd.f32 %v1308, %v1316
    %v1319 = vtanh.pop %v1318
    %1321 = vrot.lane.b32.xlu0 %v1319, 32
    %v1322 = vpop.permute.xlu0 %1321
    %v1324 = vmul.f32 %v1306, %v1322
    %v1325 = vxor.u32 %v1300, 2147483648
    %v1326 = vmul.f32 %v1325, 1.442695
    %v1327 = vpow.pop %v1326
    %v1328 = vadd.f32 %v1327, 1.0
    %v1329 = vrcp.pop %v1328
    %v1330 = vmul.f32 1.0, %v1329
    %v1331 = vtanh.pop %v1300
    %v1332 = vmul.f32 %v1330, %v1182
    %1334 = vrot.lane.b32.xlu0 %v1331, 32
    %v1335 = vpop.permute.xlu0 %1334
    %v1337 = vmul.f32 %v1330, %v1335
    %1339 = vrot.lane.b32.xlu0 %v1337, 32
    %v1340 = vpop.permute.xlu0 %1339
    %v1342 = vadd.f32 %v1332, %v1340
    %v1343 = vtanh.pop %v1342
    %1345 = vrot.lane.b32.xlu0 %v1343, 32
    %v1346 = vpop.permute.xlu0 %1345
    %v1348 = vmul.f32 %v1330, %v1346
    %v1349 = vpack.c.bf16 %v1324, %v1324
    %v1351 = vunpack.c.l.b16 %v1349
    %v1352 = vpack.c.b16 %v1351, %v1351
    %1353 = vrot.lane.b32.xlu0 %v1352, 64
    %v1354 = vpop.permute.xlu0 %1353
    %1356 = vst.msk [vmem:[%s230] sm:$0xf] %vm221, %v1354
    %v1357 = vpack.c.bf16 %v1348, %v1348
    %v1359 = vunpack.c.l.b16 %v1357
    %v1360 = vpack.c.b16 %v1359, %v1359
    %1361 = vrot.lane.b32.xlu0 %v1360, 96
    %v1362 = vpop.permute.xlu0 %1361
    %1364 = vst.msk [vmem:[%s3] sm:$0xf] %vm231, %v1362
    // Predicated region
    $region22: #{bilstm_classifier_forward.2} parent=1 // pred_check
      _
    $region23: #{bilstm_classifier_forward.2} parent=1 // pred_check_branch
      %1366 = sbr.rel (0) target = $region25
    $region24: #{bilstm_classifier_forward.2} parent=1 // pred_region
      _
    $region25: #{bilstm_classifier_forward.2} parent=1 // pred_fallthru
      _
    // Predicated region
    $region26: #{bilstm_classifier_forward.2} parent=1 // pred_check
      _
    $region27: #{bilstm_classifier_forward.2} parent=1 // pred_check_branch
      %1368 = sbr.rel (0) target = $region29
    $region28: #{bilstm_classifier_forward.2} parent=1 // pred_region
      _
    $region29: #{bilstm_classifier_forward.2} parent=1 // pred_fallthru
      _
    %1369 = vsyncpa [#allocation3], 1
    %1370 = vsyncpa [#allocation5], 1

// kernel: bilstm_classifier_forward.3
$region0: #{bilstm_classifier_forward.3}
  #allocation0 [shape = 'u32[]', space=smem, size = 0x4, offset = 0x4, fixed_abs, tag = 'smem constant byte address 0x4 - core index']
  #allocation1 [shape = 'u32[144,128]{1,0:T(1,128)}', space=vmem, size = 0x12000, scoped, tag = 'internal scratch']
  #allocation2 [shape = 'bf16[8,8,256]{2,1,0:T(8,128)(2,1)}', space=vmem, size = 0x8000, scoped, tag = 'scratch operand']
  %s0 = inlined_call_operand.vmem [shape: bf16[8,8,64], index: 0, kind: input, shape index: {}]
  %s1 = inlined_call_operand.hbm [shape: bf16[64,256], index: 1, kind: input, shape index: {}]
  %s2 = inlined_call_operand.hbm [shape: f32[1,256], index: 2, kind: input, shape index: {}]
  %s3 = inlined_call_operand.hbm [shape: bf16[32,128], index: 3, kind: input, shape index: {}]
  %s4 = inlined_call_operand.hbm [shape: bf16[32,128], index: 4, kind: input, shape index: {}]
  %s5 = inlined_call_operand.vmem [shape: f32[64,16], index: 5, kind: input, shape index: {}]
  %s6 = inlined_call_operand.hbm [shape: f32[1,16], index: 6, kind: input, shape index: {}]
  %s7 = inlined_call_operand.vmem [shape: f32[16,4], index: 7, kind: input, shape index: {}]
  %s8 = inlined_call_operand.hbm [shape: f32[1,4], index: 8, kind: input, shape index: {}]
  %s9 = inlined_call_operand.vmem [shape: f32[8,4], index: 9, kind: output, shape index: {0}]
  %s10 = inlined_call_operand.vmem [shape: f32[8,4], index: 10, kind: output, shape index: {1}]
  %11 = xla_tuple %s9, %s10
  %s12 = sld [smem:[#allocation0]]
  $region78: #{bilstm_classifier_forward.3} parent=0
    _
  %s14 = ssub.s32 1, %s12
  %s15 = scalar_select 0, %s14, %s12
  $region1: #{bilstm_classifier_forward.3} parent=0
    #allocation3 [shape = 'u8[32768]{0}', space=vmem, size = 0x8000, scoped, tag = 'input window, operand 1, single buffered']
    #allocation4 [shape = 's32[1]{0}', space=sflag, size = 0x4, scoped, tag = 'scoped memory for bilstm_classifier_forward.3']
    #allocation5 [shape = 'u8[1024]{0}', space=vmem, size = 0x400, scoped, tag = 'input window, operand 2, single buffered']
    #allocation6 [shape = 's32[1]{0}', space=sflag, size = 0x4, scoped, tag = 'scoped memory for bilstm_classifier_forward.3']
    #allocation7 [shape = 'u8[8192]{0}', space=vmem, size = 0x2000, scoped, tag = 'input window, operand 3, single buffered']
    #allocation8 [shape = 'u8[8192]{0}', space=vmem, size = 0x2000, scoped, tag = 'input window, operand 4, single buffered']
    #allocation9 [shape = 's32[1]{0}', space=sflag, size = 0x4, scoped, tag = 'scoped memory for bilstm_classifier_forward.3']
    #allocation10 [shape = 'u8[512]{0}', space=vmem, size = 0x400, scoped, tag = 'input window, operand 6, single buffered']
    #allocation11 [shape = 'u8[512]{0}', space=vmem, size = 0x400, scoped, tag = 'input window, operand 8, single buffered']
    #allocation12 [shape = 's32[1]{0}', space=sflag, size = 0x4, scoped, tag = 'scoped memory for bilstm_classifier_forward.3']
    %16 = vsyncpa [#allocation4], 0
    %17 = vsyncpa [#allocation6], 0
    %18 = vsyncpa [#allocation9], 0
    %19 = vsyncpa [#allocation12], 0
    // Predicated region
    $region2: #{bilstm_classifier_forward.3} parent=1 // pred_check
      _
    $region3: #{bilstm_classifier_forward.3} parent=1 // pred_check_branch
      %21 = sbr.rel (0) target = $region5
    $region4: #{bilstm_classifier_forward.3} parent=1 // pred_region
      _
    $region5: #{bilstm_classifier_forward.3} parent=1 // pred_fallthru
      _
    // Predicated region
    $region6: #{bilstm_classifier_forward.3} parent=1 // pred_check
      _
    $region7: #{bilstm_classifier_forward.3} parent=1 // pred_check_branch
      %23 = sbr.rel (0) target = $region9
    $region8: #{bilstm_classifier_forward.3} parent=1 // pred_region
      %s25 = ssub.s32 1024, 1024
      %26 = vsyncadd [#allocation4], %s25
      %s27 = sshll.u32 [#allocation3], 4
      %s28 = int_to_ptr.vmem [resolvable:$true] %s27
      %33 = dma.hbm_to_vmem [thread:$0]  %s1, 1024, %s28, [#allocation4], 128, 128, 8
    $region9: #{bilstm_classifier_forward.3} parent=1 // pred_fallthru
      _
    // Predicated region
    $region10: #{bilstm_classifier_forward.3} parent=1 // pred_check
      _
    $region11: #{bilstm_classifier_forward.3} parent=1 // pred_check_branch
      %35 = sbr.rel (0) target = $region13
    $region12: #{bilstm_classifier_forward.3} parent=1 // pred_region
      %s37 = ssub.s32 32, 32
      %38 = vsyncadd [#allocation6], %s37
      %s40 = sshll.u32 [#allocation5], 4
      %s41 = int_to_ptr.vmem [resolvable:$true] %s40
      %43 = dma.hbm_to_vmem [thread:$0]  %s2, 32, %s41, [#allocation6]
    $region13: #{bilstm_classifier_forward.3} parent=1 // pred_fallthru
      _
    // Predicated region
    $region14: #{bilstm_classifier_forward.3} parent=1 // pred_check
      _
    $region15: #{bilstm_classifier_forward.3} parent=1 // pred_check_branch
      %45 = sbr.rel (0) target = $region17
    $region16: #{bilstm_classifier_forward.3} parent=1 // pred_region
      %s47 = ssub.s32 256, 256
      %48 = vsyncadd [#allocation6], %s47
      %s49 = sshll.u32 [#allocation7], 4
      %s50 = int_to_ptr.vmem [resolvable:$true] %s49
      %55 = dma.hbm_to_vmem [thread:$0]  %s3, 256, %s50, [#allocation6], 64, 64, 4
    $region17: #{bilstm_classifier_forward.3} parent=1 // pred_fallthru
      _
    // Predicated region
    $region18: #{bilstm_classifier_forward.3} parent=1 // pred_check
      _
    $region19: #{bilstm_classifier_forward.3} parent=1 // pred_check_branch
      %57 = sbr.rel (0) target = $region21
    $region20: #{bilstm_classifier_forward.3} parent=1 // pred_region
      %s59 = ssub.s32 256, 256
      %60 = vsyncadd [#allocation9], %s59
      %s61 = sshll.u32 [#allocation8], 4
      %s62 = int_to_ptr.vmem [resolvable:$true] %s61
      %67 = dma.hbm_to_vmem [thread:$0]  %s4, 256, %s62, [#allocation9], 64, 64, 4
    $region21: #{bilstm_classifier_forward.3} parent=1 // pred_fallthru
      _
    // Predicated region
    $region22: #{bilstm_classifier_forward.3} parent=1 // pred_check
      _
    $region23: #{bilstm_classifier_forward.3} parent=1 // pred_check_branch
      %69 = sbr.rel (0) target = $region25
    $region24: #{bilstm_classifier_forward.3} parent=1 // pred_region
      _
    $region25: #{bilstm_classifier_forward.3} parent=1 // pred_fallthru
      _
    // Predicated region
    $region26: #{bilstm_classifier_forward.3} parent=1 // pred_check
      _
    $region27: #{bilstm_classifier_forward.3} parent=1 // pred_check_branch
      %71 = sbr.rel (0) target = $region29
    $region28: #{bilstm_classifier_forward.3} parent=1 // pred_region
      %s73 = ssub.s32 16, 16
      %74 = vsyncadd [#allocation9], %s73
      %s76 = sshll.u32 [#allocation10], 4
      %s77 = int_to_ptr.vmem [resolvable:$true] %s76
      %79 = dma.hbm_to_vmem [thread:$0]  %s6, 16, %s77, [#allocation9]
    $region29: #{bilstm_classifier_forward.3} parent=1 // pred_fallthru
      _
    // Predicated region
    $region30: #{bilstm_classifier_forward.3} parent=1 // pred_check
      _
    $region31: #{bilstm_classifier_forward.3} parent=1 // pred_check_branch
      %81 = sbr.rel (0) target = $region33
    $region32: #{bilstm_classifier_forward.3} parent=1 // pred_region
      _
    $region33: #{bilstm_classifier_forward.3} parent=1 // pred_fallthru
      _
    // Predicated region
    $region34: #{bilstm_classifier_forward.3} parent=1 // pred_check
      _
    $region35: #{bilstm_classifier_forward.3} parent=1 // pred_check_branch
      %83 = sbr.rel (0) target = $region37
    $region36: #{bilstm_classifier_forward.3} parent=1 // pred_region
      %s85 = ssub.s32 16, 16
      %86 = vsyncadd [#allocation12], %s85
      %s88 = sshll.u32 [#allocation11], 4
      %s89 = int_to_ptr.vmem [resolvable:$true] %s88
      %91 = dma.hbm_to_vmem [thread:$0]  %s8, 16, %s89, [#allocation12]
    $region37: #{bilstm_classifier_forward.3} parent=1 // pred_fallthru
      _
    // Predicated region
    $region38: #{bilstm_classifier_forward.3} parent=1 // pred_check
      _
    $region39: #{bilstm_classifier_forward.3} parent=1 // pred_check_branch
      %93 = sbr.rel (0) target = $region41
    $region40: #{bilstm_classifier_forward.3} parent=1 // pred_region
      %94 = dma.done [#allocation4], 1024
    $region41: #{bilstm_classifier_forward.3} parent=1 // pred_fallthru
      _
    // Predicated region
    $region42: #{bilstm_classifier_forward.3} parent=1 // pred_check
      _
    $region43: #{bilstm_classifier_forward.3} parent=1 // pred_check_branch
      %96 = sbr.rel (0) target = $region45
    $region44: #{bilstm_classifier_forward.3} parent=1 // pred_region
      %97 = dma.done [#allocation6], 32
    $region45: #{bilstm_classifier_forward.3} parent=1 // pred_fallthru
      _
    // Predicated region
    $region46: #{bilstm_classifier_forward.3} parent=1 // pred_check
      _
    $region47: #{bilstm_classifier_forward.3} parent=1 // pred_check_branch
      %99 = sbr.rel (0) target = $region49
    $region48: #{bilstm_classifier_forward.3} parent=1 // pred_region
      %100 = dma.done [#allocation6], 256
    $region49: #{bilstm_classifier_forward.3} parent=1 // pred_fallthru
      _
    // Predicated region
    $region50: #{bilstm_classifier_forward.3} parent=1 // pred_check
      _
    $region51: #{bilstm_classifier_forward.3} parent=1 // pred_check_branch
      %102 = sbr.rel (0) target = $region53
    $region52: #{bilstm_classifier_forward.3} parent=1 // pred_region
      %103 = dma.done [#allocation9], 256
    $region53: #{bilstm_classifier_forward.3} parent=1 // pred_fallthru
      _
    // Predicated region
    $region54: #{bilstm_classifier_forward.3} parent=1 // pred_check
      _
    $region55: #{bilstm_classifier_forward.3} parent=1 // pred_check_branch
      %105 = sbr.rel (0) target = $region57
    $region56: #{bilstm_classifier_forward.3} parent=1 // pred_region
      %106 = dma.done [#allocation9], 16
    $region57: #{bilstm_classifier_forward.3} parent=1 // pred_fallthru
      _
    // Predicated region
    $region58: #{bilstm_classifier_forward.3} parent=1 // pred_check
      _
    $region59: #{bilstm_classifier_forward.3} parent=1 // pred_check_branch
      %108 = sbr.rel (0) target = $region61
    $region60: #{bilstm_classifier_forward.3} parent=1 // pred_region
      %109 = dma.done [#allocation12], 16
    $region61: #{bilstm_classifier_forward.3} parent=1 // pred_fallthru
      _
    %v111 = vld [vmem:[%s0] sm:$0xf]
    %v112 = vld [vmem:[%s0 + $0x4] sm:$0xf]
    %v113 = vld [vmem:[%s0 + $0x8] sm:$0xf]
    %v114 = vld [vmem:[%s0 + $0xc] sm:$0xf]
    %v115 = vld [vmem:[%s0 + $0x10] sm:$0xf]
    %v116 = vld [vmem:[%s0 + $0x14] sm:$0xf]
    %v117 = vld [vmem:[%s0 + $0x18] sm:$0xf]
    %v118 = vld [vmem:[%s0 + $0x1c] sm:$0xf]
    %v119 = vld [vmem:[#allocation3] sm:$0xff]
    %v120 = vld [vmem:[#allocation3 + $0x8] sm:$0xff]
    %v121 = vld [vmem:[#allocation3 + $0x10] sm:$0xff]
    %v122 = vld [vmem:[#allocation3 + $0x18] sm:$0xff]
    %v123 = vld [vmem:[#allocation3 + $0x20] sm:$0xff]
    %v124 = vld [vmem:[#allocation3 + $0x28] sm:$0xff]
    %v125 = vld [vmem:[#allocation3 + $0x30] sm:$0xff]
    %v126 = vld [vmem:[#allocation3 + $0x38] sm:$0xff]
    %v127 = vld [vmem:[#allocation5] sm:$0x3]
    %v129 = vlaneseq
    %v130 = vshrl.u32 %v129, 7
    %v131 = vsub.s32 0, %v130
    %v132 = vrot.slane %v127, %v131
    %v133 = vlaneseq
    %v134 = vshrl.u32 %v133, 7
    %v135 = vsub.s32 1, %v134
    %v136 = vrot.slane %v127, %v135
    %v147 = vunpack.c.l.b16 %v111
    %v148 = vunpack.c.l.b16 %v112
    %v149 = vunpack.c.l.b16 %v113
    %v150 = vunpack.c.l.b16 %v114
    %v151 = vunpack.c.l.b16 %v115
    %v152 = vunpack.c.l.b16 %v116
    %v153 = vunpack.c.l.b16 %v117
    %v154 = vunpack.c.l.b16 %v118
    %v155 = vpack.c.b16 %v148, %v147
    %v156 = vpack.c.b16 %v150, %v149
    %v157 = vpack.c.b16 %v152, %v151
    %v158 = vpack.c.b16 %v154, %v153
    %v167 = vunpack.c.l.b16 %v119
    %v168 = vunpack.c.h.b16 %v119
    %v169 = vunpack.c.l.b16 %v120
    %v170 = vunpack.c.h.b16 %v120
    %v171 = vunpack.c.l.b16 %v121
    %v172 = vunpack.c.h.b16 %v121
    %v173 = vunpack.c.l.b16 %v122
    %v174 = vunpack.c.h.b16 %v122
    %v175 = vunpack.c.l.b16 %v123
    %v176 = vunpack.c.h.b16 %v123
    %v177 = vunpack.c.l.b16 %v124
    %v178 = vunpack.c.h.b16 %v124
    %v179 = vunpack.c.l.b16 %v125
    %v180 = vunpack.c.h.b16 %v125
    %v181 = vunpack.c.l.b16 %v126
    %v182 = vunpack.c.h.b16 %v126
    %v183 = vpack.c.b16 %v169, %v167
    %v184 = vpack.c.b16 %v170, %v168
    %v185 = vpack.c.b16 %v173, %v171
    %v186 = vpack.c.b16 %v174, %v172
    %v187 = vpack.c.b16 %v177, %v175
    %v188 = vpack.c.b16 %v178, %v176
    %v189 = vpack.c.b16 %v181, %v179
    %v190 = vpack.c.b16 %v182, %v180
    %vm199 = vcmask 523264
    %v201 = vsel %vm199, %v155, 0
    %v204 = vsel %vm199, %v156, 0
    %v207 = vsel %vm199, %v157, 0
    %v210 = vsel %vm199, %v158, 0
    %212 = vmatprep.subr.bf16.mxu0 0
    %213 = vmatpush1.bf16.msra.mxu0 0
    %214 = vmatprep.subr.bf16.mxu0 0
    %215 = vmatpush1.bf16.msra.mxu0 0
    %216 = vmatprep.subr.bf16.mxu0 0
    %217 = vmatpush1.bf16.msra.mxu0 0
    %218 = vmatprep.subr.bf16.mxu0 0
    %219 = vmatpush1.bf16.msra.mxu0 0
    %220 = vmatprep.subr.bf16.mxu0 %v190
    %221 = vmatpush1.bf16.msra.mxu0 %v189
    %222 = vmatprep.subr.bf16.mxu0 %v188
    %223 = vmatpush1.bf16.msra.mxu0 %v187
    %224 = vmatprep.subr.bf16.mxu0 %v186
    %225 = vmatpush1.bf16.msra.mxu0 %v185
    %226 = vmatprep.subr.bf16.mxu0 %v184
    %227 = vmatpush1.bf16.msra.mxu0 %v183
    %228 = vmatprep.subr.bf16.mxu0 0
    %229 = vmatpush2.bf16.msra.mxu0 0
    %230 = vmatprep.subr.bf16.mxu0 0
    %231 = vmatpush2.bf16.msra.mxu0 0
    %232 = vmatprep.subr.bf16.mxu0 0
    %233 = vmatpush2.bf16.msra.mxu0 0
    %234 = vmatprep.subr.bf16.mxu0 0
    %235 = vmatpush2.bf16.msra.mxu0 0
    %236 = vmatprep.subr.bf16.mxu0 0
    %237 = vmatpush2.bf16.msra.mxu0 0
    %238 = vmatprep.subr.bf16.mxu0 0
    %239 = vmatpush2.bf16.msra.mxu0 0
    %240 = vmatprep.subr.bf16.mxu0 0
    %241 = vmatpush2.bf16.msra.mxu0 0
    %242 = vmatprep.subr.bf16.mxu0 0
    %243 = vmatpush2.bf16.msra.mxu0 0
    %244 = vmatprep.mubr.bf16.mxu0 0
    %245 = vmatmul.mubr.bf16.gmra.mxu0 %v201
    %v246 = vpop.f32.mrf.mxu0
    %v247 = vadd.f32 %v132, %v246
    %v248 = vpop.f32.mrf.mxu0
    %v249 = vadd.f32 %v136, %v248
    %v250 = vpop.f32.mrf.mxu0
    %v251 = vadd.f32 %v132, %v250
    %v252 = vpop.f32.mrf.mxu0
    %v253 = vadd.f32 %v136, %v252
    %254 = vmatprep.mubr.bf16.mxu0 0
    %255 = vmatmul.mubr.bf16.gmra.mxu0 %v204
    %v256 = vpop.f32.mrf.mxu0
    %v257 = vadd.f32 %v132, %v256
    %v258 = vpop.f32.mrf.mxu0
    %v259 = vadd.f32 %v136, %v258
    %v260 = vpop.f32.mrf.mxu0
    %v261 = vadd.f32 %v132, %v260
    %v262 = vpop.f32.mrf.mxu0
    %v263 = vadd.f32 %v136, %v262
    %264 = vmatprep.mubr.bf16.mxu0 0
    %265 = vmatmul.mubr.bf16.gmra.mxu0 %v207
    %v266 = vpop.f32.mrf.mxu0
    %v267 = vadd.f32 %v132, %v266
    %v268 = vpop.f32.mrf.mxu0
    %v269 = vadd.f32 %v136, %v268
    %v270 = vpop.f32.mrf.mxu0
    %v271 = vadd.f32 %v132, %v270
    %v272 = vpop.f32.mrf.mxu0
    %v273 = vadd.f32 %v136, %v272
    %274 = vmatprep.mubr.bf16.mxu0 0
    %275 = vmatmul.mubr.bf16.gmra.mxu0 %v210
    %v276 = vpop.f32.mrf.mxu0
    %v277 = vadd.f32 %v132, %v276
    %v278 = vpop.f32.mrf.mxu0
    %v279 = vadd.f32 %v136, %v278
    %v280 = vpop.f32.mrf.mxu0
    %v281 = vadd.f32 %v132, %v280
    %v282 = vpop.f32.mrf.mxu0
    %v283 = vadd.f32 %v136, %v282
    %284 = vdwg.mxu0
    %v285 = vpack.c.bf16 %v247, %v247
    %v286 = vpack.c.bf16 %v249, %v249
    %v287 = vpack.c.bf16 %v251, %v251
    %v288 = vpack.c.bf16 %v253, %v253
    %v289 = vpack.c.bf16 %v257, %v257
    %v290 = vpack.c.bf16 %v259, %v259
    %v291 = vpack.c.bf16 %v261, %v261
    %v292 = vpack.c.bf16 %v263, %v263
    %v293 = vpack.c.bf16 %v267, %v267
    %v294 = vpack.c.bf16 %v269, %v269
    %v295 = vpack.c.bf16 %v271, %v271
    %v296 = vpack.c.bf16 %v273, %v273
    %v297 = vpack.c.bf16 %v277, %v277
    %v298 = vpack.c.bf16 %v279, %v279
    %v299 = vpack.c.bf16 %v281, %v281
    %v300 = vpack.c.bf16 %v283, %v283
    %v317 = vunpack.c.l.b16 %v285
    %v318 = vunpack.c.l.b16 %v286
    %v319 = vunpack.c.l.b16 %v287
    %v320 = vunpack.c.l.b16 %v288
    %v321 = vunpack.c.l.b16 %v289
    %v322 = vunpack.c.l.b16 %v290
    %v323 = vunpack.c.l.b16 %v291
    %v324 = vunpack.c.l.b16 %v292
    %v325 = vunpack.c.l.b16 %v293
    %v326 = vunpack.c.l.b16 %v294
    %v327 = vunpack.c.l.b16 %v295
    %v328 = vunpack.c.l.b16 %v296
    %v329 = vunpack.c.l.b16 %v297
    %v330 = vunpack.c.l.b16 %v298
    %v331 = vunpack.c.l.b16 %v299
    %v332 = vunpack.c.l.b16 %v300
    %v333 = vpack.c.b16 %v318, %v317
    %v334 = vpack.c.b16 %v320, %v319
    %v335 = vpack.c.b16 %v322, %v321
    %v336 = vpack.c.b16 %v324, %v323
    %v337 = vpack.c.b16 %v326, %v325
    %v338 = vpack.c.b16 %v328, %v327
    %v339 = vpack.c.b16 %v330, %v329
    %v340 = vpack.c.b16 %v332, %v331
    %349 = vst [vmem:[#allocation2] sm:$0xff] %v333
    %350 = vst [vmem:[#allocation2 + $0x8] sm:$0xff] %v334
    %351 = vst [vmem:[#allocation2 + $0x10] sm:$0xff] %v335
    %352 = vst [vmem:[#allocation2 + $0x18] sm:$0xff] %v336
    %353 = vst [vmem:[#allocation2 + $0x20] sm:$0xff] %v337
    %354 = vst [vmem:[#allocation2 + $0x28] sm:$0xff] %v338
    %355 = vst [vmem:[#allocation2 + $0x30] sm:$0xff] %v339
    %356 = vst [vmem:[#allocation2 + $0x38] sm:$0xff] %v340
    %v357 = vld [vmem:[#allocation7] sm:$0xf]
    %v358 = vld [vmem:[#allocation7 + $0x4] sm:$0xf]
    %v359 = vld [vmem:[#allocation7 + $0x8] sm:$0xf]
    %v360 = vld [vmem:[#allocation7 + $0xc] sm:$0xf]
    %v361 = vld [vmem:[#allocation8] sm:$0xf]
    %v362 = vld [vmem:[#allocation8 + $0x4] sm:$0xf]
    %v363 = vld [vmem:[#allocation8 + $0x8] sm:$0xf]
    %v364 = vld [vmem:[#allocation8 + $0xc] sm:$0xf]
    %v365 = vld [vmem:[#allocation2] sm:$0xf]
    %v366 = vunpack.c.l.bf16 %v365
    %v371 = vunpack.c.l.b16 %v357
    %v372 = vunpack.c.l.b16 %v358
    %v373 = vunpack.c.l.b16 %v359
    %v374 = vunpack.c.l.b16 %v360
    %v375 = vpack.c.b16 %v372, %v371
    %v376 = vpack.c.b16 %v374, %v373
    %vm379 = vcmask 261120
    %v381 = vsel %vm379, 0, 0
    %383 = vmatprep.subr.bf16.mxu0 0
    %384 = vmatpush1.bf16.msra.mxu0 0
    %385 = vmatprep.subr.bf16.mxu0 0
    %386 = vmatpush1.bf16.msra.mxu0 0
    %387 = vmatprep.subr.bf16.mxu0 0
    %388 = vmatpush1.bf16.msra.mxu0 0
    %389 = vmatprep.subr.bf16.mxu0 0
    %390 = vmatpush1.bf16.msra.mxu0 0
    %391 = vmatprep.subr.bf16.mxu0 0
    %392 = vmatpush1.bf16.msra.mxu0 0
    %393 = vmatprep.subr.bf16.mxu0 0
    %394 = vmatpush1.bf16.msra.mxu0 0
    %395 = vmatprep.subr.bf16.mxu0 0
    %396 = vmatpush1.bf16.msra.mxu0 %v376
    %397 = vmatprep.subr.bf16.mxu0 0
    %398 = vmatpush1.bf16.msra.mxu0 %v375
    %399 = vmatprep.subr.bf16.mxu0 0
    %400 = vmatpush2.bf16.msra.mxu0 0
    %401 = vmatprep.subr.bf16.mxu0 0
    %402 = vmatpush2.bf16.msra.mxu0 0
    %403 = vmatprep.subr.bf16.mxu0 0
    %404 = vmatpush2.bf16.msra.mxu0 0
    %405 = vmatprep.subr.bf16.mxu0 0
    %406 = vmatpush2.bf16.msra.mxu0 0
    %407 = vmatprep.subr.bf16.mxu0 0
    %408 = vmatpush2.bf16.msra.mxu0 0
    %409 = vmatprep.subr.bf16.mxu0 0
    %410 = vmatpush2.bf16.msra.mxu0 0
    %411 = vmatprep.subr.bf16.mxu0 0
    %412 = vmatpush2.bf16.msra.mxu0 0
    %413 = vmatprep.subr.bf16.mxu0 0
    %414 = vmatpush2.bf16.msra.mxu0 0
    %415 = vmatprep.mubr.bf16.mxu0 0
    %416 = vmatmul.mubr.bf16.gmra.mxu0 %v381
    %v417 = vpop.f32.mrf.mxu0
    %v418 = vadd.f32 0.0, %v417
    %v419 = vpop.f32.mrf.mxu0
    %v420 = vpop.f32.mrf.mxu0
    %v421 = vpop.f32.mrf.mxu0
    %422 = vdwg.mxu0
    %v423 = vadd.f32 %v366, %v418
    %s424 = scalar_lea.vmem [#allocation2], 56
    %v425 = vld [vmem:[%s424 + $0x4] sm:$0xf]
    %v426 = vunpack.c.l.bf16 %v425
    %v431 = vunpack.c.l.b16 %v361
    %v432 = vunpack.c.l.b16 %v362
    %v433 = vunpack.c.l.b16 %v363
    %v434 = vunpack.c.l.b16 %v364
    %v435 = vpack.c.b16 %v432, %v431
    %v436 = vpack.c.b16 %v434, %v433
    %439 = vmatprep.subr.bf16.mxu0 0
    %440 = vmatpush1.bf16.msra.mxu0 0
    %441 = vmatprep.subr.bf16.mxu0 0
    %442 = vmatpush1.bf16.msra.mxu0 0
    %443 = vmatprep.subr.bf16.mxu0 0
    %444 = vmatpush1.bf16.msra.mxu0 0
    %445 = vmatprep.subr.bf16.mxu0 0
    %446 = vmatpush1.bf16.msra.mxu0 0
    %447 = vmatprep.subr.bf16.mxu0 0
    %448 = vmatpush1.bf16.msra.mxu0 0
    %449 = vmatprep.subr.bf16.mxu0 0
    %450 = vmatpush1.bf16.msra.mxu0 0
    %451 = vmatprep.subr.bf16.mxu0 0
    %452 = vmatpush1.bf16.msra.mxu0 %v436
    %453 = vmatprep.subr.bf16.mxu0 0
    %454 = vmatpush1.bf16.msra.mxu0 %v435
    %455 = vmatprep.subr.bf16.mxu0 0
    %456 = vmatpush2.bf16.msra.mxu0 0
    %457 = vmatprep.subr.bf16.mxu0 0
    %458 = vmatpush2.bf16.msra.mxu0 0
    %459 = vmatprep.subr.bf16.mxu0 0
    %460 = vmatpush2.bf16.msra.mxu0 0
    %461 = vmatprep.subr.bf16.mxu0 0
    %462 = vmatpush2.bf16.msra.mxu0 0
    %463 = vmatprep.subr.bf16.mxu0 0
    %464 = vmatpush2.bf16.msra.mxu0 0
    %465 = vmatprep.subr.bf16.mxu0 0
    %466 = vmatpush2.bf16.msra.mxu0 0
    %467 = vmatprep.subr.bf16.mxu0 0
    %468 = vmatpush2.bf16.msra.mxu0 0
    %469 = vmatprep.subr.bf16.mxu0 0
    %470 = vmatpush2.bf16.msra.mxu0 0
    %471 = vmatprep.mubr.bf16.mxu0 0
    %472 = vmatmul.mubr.bf16.gmra.mxu0 %v381
    %v473 = vpop.f32.mrf.mxu0
    %v474 = vadd.f32 0.0, %v473
    %v475 = vpop.f32.mrf.mxu0
    %v476 = vpop.f32.mrf.mxu0
    %v477 = vpop.f32.mrf.mxu0
    %478 = vdwg.mxu0
    %v479 = vadd.f32 %v426, %v474
    %v480 = vxor.u32 %v423, 2147483648
    %v481 = vmul.f32 %v480, 1.442695
    %v482 = vpow.pop %v481
    %v483 = vadd.f32 %v482, 1.0
    %v484 = vrcp.pop %v483
    %v485 = vmul.f32 1.0, %v484
    %v486 = vtanh.pop %v423
    %v487 = vmul.f32 %v485, 0.0
    %489 = vrot.lane.b32.xlu0 %v486, 32
    %v490 = vpop.permute.xlu0 %489
    %v492 = vmul.f32 %v485, %v490
    %494 = vrot.lane.b32.xlu0 %v492, 32
    %v495 = vpop.permute.xlu0 %494
    %v497 = vadd.f32 %v487, %v495
    %v498 = vtanh.pop %v497
    %500 = vrot.lane.b32.xlu0 %v498, 32
    %v501 = vpop.permute.xlu0 %500
    %v503 = vmul.f32 %v485, %v501
    %v504 = vxor.u32 %v479, 2147483648
    %v505 = vmul.f32 %v504, 1.442695
    %v506 = vpow.pop %v505
    %v507 = vadd.f32 %v506, 1.0
    %v508 = vrcp.pop %v507
    %v509 = vmul.f32 1.0, %v508
    %v510 = vtanh.pop %v479
    %v511 = vmul.f32 %v509, 0.0
    %513 = vrot.lane.b32.xlu0 %v510, 32
    %v514 = vpop.permute.xlu0 %513
    %v516 = vmul.f32 %v509, %v514
    %518 = vrot.lane.b32.xlu0 %v516, 32
    %v519 = vpop.permute.xlu0 %518
    %v521 = vadd.f32 %v511, %v519
    %v522 = vtanh.pop %v521
    %524 = vrot.lane.b32.xlu0 %v522, 32
    %v525 = vpop.permute.xlu0 %524
    %v527 = vmul.f32 %v509, %v525
    %s528 = scalar_lea.vmem [#allocation2], 8
    %v529 = vld [vmem:[%s528] sm:$0xf]
    %v530 = vunpack.c.l.bf16 %v529
    %v531 = vpack.c.bf16 %v503, %v503
    %533 = vrot.lane.b32.xlu0 %v531, 64
    %v534 = vpop.permute.xlu0 %533
    %v536 = vsel %vm379, %v534, 0
    %538 = vmatprep.subr.bf16.mxu0 0
    %539 = vmatpush1.bf16.msra.mxu0 0
    %540 = vmatprep.subr.bf16.mxu0 0
    %541 = vmatpush1.bf16.msra.mxu0 0
    %542 = vmatprep.subr.bf16.mxu0 0
    %543 = vmatpush1.bf16.msra.mxu0 0
    %544 = vmatprep.subr.bf16.mxu0 0
    %545 = vmatpush1.bf16.msra.mxu0 0
    %546 = vmatprep.subr.bf16.mxu0 0
    %547 = vmatpush1.bf16.msra.mxu0 0
    %548 = vmatprep.subr.bf16.mxu0 0
    %549 = vmatpush1.bf16.msra.mxu0 0
    %550 = vmatprep.subr.bf16.mxu0 0
    %551 = vmatpush1.bf16.msra.mxu0 %v376
    %552 = vmatprep.subr.bf16.mxu0 0
    %553 = vmatpush1.bf16.msra.mxu0 %v375
    %554 = vmatprep.subr.bf16.mxu0 0
    %555 = vmatpush2.bf16.msra.mxu0 0
    %556 = vmatprep.subr.bf16.mxu0 0
    %557 = vmatpush2.bf16.msra.mxu0 0
    %558 = vmatprep.subr.bf16.mxu0 0
    %559 = vmatpush2.bf16.msra.mxu0 0
    %560 = vmatprep.subr.bf16.mxu0 0
    %561 = vmatpush2.bf16.msra.mxu0 0
    %562 = vmatprep.subr.bf16.mxu0 0
    %563 = vmatpush2.bf16.msra.mxu0 0
    %564 = vmatprep.subr.bf16.mxu0 0
    %565 = vmatpush2.bf16.msra.mxu0 0
    %566 = vmatprep.subr.bf16.mxu0 0
    %567 = vmatpush2.bf16.msra.mxu0 0
    %568 = vmatprep.subr.bf16.mxu0 0
    %569 = vmatpush2.bf16.msra.mxu0 0
    %570 = vmatprep.mubr.bf16.mxu0 0
    %571 = vmatmul.mubr.bf16.gmra.mxu0 %v536
    %v572 = vpop.f32.mrf.mxu0
    %v573 = vadd.f32 0.0, %v572
    %v574 = vpop.f32.mrf.mxu0
    %v575 = vpop.f32.mrf.mxu0
    %v576 = vpop.f32.mrf.mxu0
    %577 = vdwg.mxu0
    %v578 = vadd.f32 %v530, %v573
    %s579 = scalar_lea.vmem [#allocation2], 48
    %v580 = vld [vmem:[%s579 + $0x4] sm:$0xf]
    %v581 = vunpack.c.l.bf16 %v580
    %v582 = vpack.c.bf16 %v527, %v527
    %584 = vrot.lane.b32.xlu0 %v582, 64
    %v585 = vpop.permute.xlu0 %584
    %v587 = vsel %vm379, %v585, 0
    %589 = vmatprep.subr.bf16.mxu0 0
    %590 = vmatpush1.bf16.msra.mxu0 0
    %591 = vmatprep.subr.bf16.mxu0 0
    %592 = vmatpush1.bf16.msra.mxu0 0
    %593 = vmatprep.subr.bf16.mxu0 0
    %594 = vmatpush1.bf16.msra.mxu0 0
    %595 = vmatprep.subr.bf16.mxu0 0
    %596 = vmatpush1.bf16.msra.mxu0 0
    %597 = vmatprep.subr.bf16.mxu0 0
    %598 = vmatpush1.bf16.msra.mxu0 0
    %599 = vmatprep.subr.bf16.mxu0 0
    %600 = vmatpush1.bf16.msra.mxu0 0
    %601 = vmatprep.subr.bf16.mxu0 0
    %602 = vmatpush1.bf16.msra.mxu0 %v436
    %603 = vmatprep.subr.bf16.mxu0 0
    %604 = vmatpush1.bf16.msra.mxu0 %v435
    %605 = vmatprep.subr.bf16.mxu0 0
    %606 = vmatpush2.bf16.msra.mxu0 0
    %607 = vmatprep.subr.bf16.mxu0 0
    %608 = vmatpush2.bf16.msra.mxu0 0
    %609 = vmatprep.subr.bf16.mxu0 0
    %610 = vmatpush2.bf16.msra.mxu0 0
    %611 = vmatprep.subr.bf16.mxu0 0
    %612 = vmatpush2.bf16.msra.mxu0 0
    %613 = vmatprep.subr.bf16.mxu0 0
    %614 = vmatpush2.bf16.msra.mxu0 0
    %615 = vmatprep.subr.bf16.mxu0 0
    %616 = vmatpush2.bf16.msra.mxu0 0
    %617 = vmatprep.subr.bf16.mxu0 0
    %618 = vmatpush2.bf16.msra.mxu0 0
    %619 = vmatprep.subr.bf16.mxu0 0
    %620 = vmatpush2.bf16.msra.mxu0 0
    %621 = vmatprep.mubr.bf16.mxu0 0
    %622 = vmatmul.mubr.bf16.gmra.mxu0 %v587
    %v623 = vpop.f32.mrf.mxu0
    %v624 = vadd.f32 0.0, %v623
    %v625 = vpop.f32.mrf.mxu0
    %v626 = vpop.f32.mrf.mxu0
    %v627 = vpop.f32.mrf.mxu0
    %628 = vdwg.mxu0
    %v629 = vadd.f32 %v581, %v624
    %v630 = vxor.u32 %v578, 2147483648
    %v631 = vmul.f32 %v630, 1.442695
    %v632 = vpow.pop %v631
    %v633 = vadd.f32 %v632, 1.0
    %v634 = vrcp.pop %v633
    %v635 = vmul.f32 1.0, %v634
    %v636 = vtanh.pop %v578
    %v637 = vmul.f32 %v635, %v497
    %639 = vrot.lane.b32.xlu0 %v636, 32
    %v640 = vpop.permute.xlu0 %639
    %v642 = vmul.f32 %v635, %v640
    %644 = vrot.lane.b32.xlu0 %v642, 32
    %v645 = vpop.permute.xlu0 %644
    %v647 = vadd.f32 %v637, %v645
    %v648 = vtanh.pop %v647
    %650 = vrot.lane.b32.xlu0 %v648, 32
    %v651 = vpop.permute.xlu0 %650
    %v653 = vmul.f32 %v635, %v651
    %v654 = vxor.u32 %v629, 2147483648
    %v655 = vmul.f32 %v654, 1.442695
    %v656 = vpow.pop %v655
    %v657 = vadd.f32 %v656, 1.0
    %v658 = vrcp.pop %v657
    %v659 = vmul.f32 1.0, %v658
    %v660 = vtanh.pop %v629
    %v661 = vmul.f32 %v659, %v521
    %663 = vrot.lane.b32.xlu0 %v660, 32
    %v664 = vpop.permute.xlu0 %663
    %v666 = vmul.f32 %v659, %v664
    %668 = vrot.lane.b32.xlu0 %v666, 32
    %v669 = vpop.permute.xlu0 %668
    %v671 = vadd.f32 %v661, %v669
    %v672 = vtanh.pop %v671
    %674 = vrot.lane.b32.xlu0 %v672, 32
    %v675 = vpop.permute.xlu0 %674
    %v677 = vmul.f32 %v659, %v675
    %s678 = scalar_lea.vmem [#allocation2], 16
    %v679 = vld [vmem:[%s678] sm:$0xf]
    %v680 = vunpack.c.l.bf16 %v679
    %v681 = vpack.c.bf16 %v653, %v653
    %683 = vrot.lane.b32.xlu0 %v681, 64
    %v684 = vpop.permute.xlu0 %683
    %v686 = vsel %vm379, %v684, 0
    %688 = vmatprep.subr.bf16.mxu0 0
    %689 = vmatpush1.bf16.msra.mxu0 0
    %690 = vmatprep.subr.bf16.mxu0 0
    %691 = vmatpush1.bf16.msra.mxu0 0
    %692 = vmatprep.subr.bf16.mxu0 0
    %693 = vmatpush1.bf16.msra.mxu0 0
    %694 = vmatprep.subr.bf16.mxu0 0
    %695 = vmatpush1.bf16.msra.mxu0 0
    %696 = vmatprep.subr.bf16.mxu0 0
    %697 = vmatpush1.bf16.msra.mxu0 0
    %698 = vmatprep.subr.bf16.mxu0 0
    %699 = vmatpush1.bf16.msra.mxu0 0
    %700 = vmatprep.subr.bf16.mxu0 0
    %701 = vmatpush1.bf16.msra.mxu0 %v376
    %702 = vmatprep.subr.bf16.mxu0 0
    %703 = vmatpush1.bf16.msra.mxu0 %v375
    %704 = vmatprep.subr.bf16.mxu0 0
    %705 = vmatpush2.bf16.msra.mxu0 0
    %706 = vmatprep.subr.bf16.mxu0 0
    %707 = vmatpush2.bf16.msra.mxu0 0
    %708 = vmatprep.subr.bf16.mxu0 0
    %709 = vmatpush2.bf16.msra.mxu0 0
    %710 = vmatprep.subr.bf16.mxu0 0
    %711 = vmatpush2.bf16.msra.mxu0 0
    %712 = vmatprep.subr.bf16.mxu0 0
    %713 = vmatpush2.bf16.msra.mxu0 0
    %714 = vmatprep.subr.bf16.mxu0 0
    %715 = vmatpush2.bf16.msra.mxu0 0
    %716 = vmatprep.subr.bf16.mxu0 0
    %717 = vmatpush2.bf16.msra.mxu0 0
    %718 = vmatprep.subr.bf16.mxu0 0
    %719 = vmatpush2.bf16.msra.mxu0 0
    %720 = vmatprep.mubr.bf16.mxu0 0
    %721 = vmatmul.mubr.bf16.gmra.mxu0 %v686
    %v722 = vpop.f32.mrf.mxu0
    %v723 = vadd.f32 0.0, %v722
    %v724 = vpop.f32.mrf.mxu0
    %v725 = vpop.f32.mrf.mxu0
    %v726 = vpop.f32.mrf.mxu0
    %727 = vdwg.mxu0
    %v728 = vadd.f32 %v680, %v723
    %s729 = scalar_lea.vmem [#allocation2], 40
    %v730 = vld [vmem:[%s729 + $0x4] sm:$0xf]
    %v731 = vunpack.c.l.bf16 %v730
    %v732 = vpack.c.bf16 %v677, %v677
    %734 = vrot.lane.b32.xlu0 %v732, 64
    %v735 = vpop.permute.xlu0 %734
    %v737 = vsel %vm379, %v735, 0
    %739 = vmatprep.subr.bf16.mxu0 0
    %740 = vmatpush1.bf16.msra.mxu0 0
    %741 = vmatprep.subr.bf16.mxu0 0
    %742 = vmatpush1.bf16.msra.mxu0 0
    %743 = vmatprep.subr.bf16.mxu0 0
    %744 = vmatpush1.bf16.msra.mxu0 0
    %745 = vmatprep.subr.bf16.mxu0 0
    %746 = vmatpush1.bf16.msra.mxu0 0
    %747 = vmatprep.subr.bf16.mxu0 0
    %748 = vmatpush1.bf16.msra.mxu0 0
    %749 = vmatprep.subr.bf16.mxu0 0
    %750 = vmatpush1.bf16.msra.mxu0 0
    %751 = vmatprep.subr.bf16.mxu0 0
    %752 = vmatpush1.bf16.msra.mxu0 %v436
    %753 = vmatprep.subr.bf16.mxu0 0
    %754 = vmatpush1.bf16.msra.mxu0 %v435
    %755 = vmatprep.subr.bf16.mxu0 0
    %756 = vmatpush2.bf16.msra.mxu0 0
    %757 = vmatprep.subr.bf16.mxu0 0
    %758 = vmatpush2.bf16.msra.mxu0 0
    %759 = vmatprep.subr.bf16.mxu0 0
    %760 = vmatpush2.bf16.msra.mxu0 0
    %761 = vmatprep.subr.bf16.mxu0 0
    %762 = vmatpush2.bf16.msra.mxu0 0
    %763 = vmatprep.subr.bf16.mxu0 0
    %764 = vmatpush2.bf16.msra.mxu0 0
    %765 = vmatprep.subr.bf16.mxu0 0
    %766 = vmatpush2.bf16.msra.mxu0 0
    %767 = vmatprep.subr.bf16.mxu0 0
    %768 = vmatpush2.bf16.msra.mxu0 0
    %769 = vmatprep.subr.bf16.mxu0 0
    %770 = vmatpush2.bf16.msra.mxu0 0
    %771 = vmatprep.mubr.bf16.mxu0 0
    %772 = vmatmul.mubr.bf16.gmra.mxu0 %v737
    %v773 = vpop.f32.mrf.mxu0
    %v774 = vadd.f32 0.0, %v773
    %v775 = vpop.f32.mrf.mxu0
    %v776 = vpop.f32.mrf.mxu0
    %v777 = vpop.f32.mrf.mxu0
    %778 = vdwg.mxu0
    %v779 = vadd.f32 %v731, %v774
    %v780 = vxor.u32 %v728, 2147483648
    %v781 = vmul.f32 %v780, 1.442695
    %v782 = vpow.pop %v781
    %v783 = vadd.f32 %v782, 1.0
    %v784 = vrcp.pop %v783
    %v785 = vmul.f32 1.0, %v784
    %v786 = vtanh.pop %v728
    %v787 = vmul.f32 %v785, %v647
    %789 = vrot.lane.b32.xlu0 %v786, 32
    %v790 = vpop.permute.xlu0 %789
    %v792 = vmul.f32 %v785, %v790
    %794 = vrot.lane.b32.xlu0 %v792, 32
    %v795 = vpop.permute.xlu0 %794
    %v797 = vadd.f32 %v787, %v795
    %v798 = vtanh.pop %v797
    %800 = vrot.lane.b32.xlu0 %v798, 32
    %v801 = vpop.permute.xlu0 %800
    %v803 = vmul.f32 %v785, %v801
    %v804 = vxor.u32 %v779, 2147483648
    %v805 = vmul.f32 %v804, 1.442695
    %v806 = vpow.pop %v805
    %v807 = vadd.f32 %v806, 1.0
    %v808 = vrcp.pop %v807
    %v809 = vmul.f32 1.0, %v808
    %v810 = vtanh.pop %v779
    %v811 = vmul.f32 %v809, %v671
    %813 = vrot.lane.b32.xlu0 %v810, 32
    %v814 = vpop.permute.xlu0 %813
    %v816 = vmul.f32 %v809, %v814
    %818 = vrot.lane.b32.xlu0 %v816, 32
    %v819 = vpop.permute.xlu0 %818
    %v821 = vadd.f32 %v811, %v819
    %v822 = vtanh.pop %v821
    %824 = vrot.lane.b32.xlu0 %v822, 32
    %v825 = vpop.permute.xlu0 %824
    %v827 = vmul.f32 %v809, %v825
    %s828 = scalar_lea.vmem [#allocation2], 24
    %v829 = vld [vmem:[%s828] sm:$0xf]
    %v830 = vunpack.c.l.bf16 %v829
    %v831 = vpack.c.bf16 %v803, %v803
    %833 = vrot.lane.b32.xlu0 %v831, 64
    %v834 = vpop.permute.xlu0 %833
    %v836 = vsel %vm379, %v834, 0
    %838 = vmatprep.subr.bf16.mxu0 0
    %839 = vmatpush1.bf16.msra.mxu0 0
    %840 = vmatprep.subr.bf16.mxu0 0
    %841 = vmatpush1.bf16.msra.mxu0 0
    %842 = vmatprep.subr.bf16.mxu0 0
    %843 = vmatpush1.bf16.msra.mxu0 0
    %844 = vmatprep.subr.bf16.mxu0 0
    %845 = vmatpush1.bf16.msra.mxu0 0
    %846 = vmatprep.subr.bf16.mxu0 0
    %847 = vmatpush1.bf16.msra.mxu0 0
    %848 = vmatprep.subr.bf16.mxu0 0
    %849 = vmatpush1.bf16.msra.mxu0 0
    %850 = vmatprep.subr.bf16.mxu0 0
    %851 = vmatpush1.bf16.msra.mxu0 %v376
    %852 = vmatprep.subr.bf16.mxu0 0
    %853 = vmatpush1.bf16.msra.mxu0 %v375
    %854 = vmatprep.subr.bf16.mxu0 0
    %855 = vmatpush2.bf16.msra.mxu0 0
    %856 = vmatprep.subr.bf16.mxu0 0
    %857 = vmatpush2.bf16.msra.mxu0 0
    %858 = vmatprep.subr.bf16.mxu0 0
    %859 = vmatpush2.bf16.msra.mxu0 0
    %860 = vmatprep.subr.bf16.mxu0 0
    %861 = vmatpush2.bf16.msra.mxu0 0
    %862 = vmatprep.subr.bf16.mxu0 0
    %863 = vmatpush2.bf16.msra.mxu0 0
    %864 = vmatprep.subr.bf16.mxu0 0
    %865 = vmatpush2.bf16.msra.mxu0 0
    %866 = vmatprep.subr.bf16.mxu0 0
    %867 = vmatpush2.bf16.msra.mxu0 0
    %868 = vmatprep.subr.bf16.mxu0 0
    %869 = vmatpush2.bf16.msra.mxu0 0
    %870 = vmatprep.mubr.bf16.mxu0 0
    %871 = vmatmul.mubr.bf16.gmra.mxu0 %v836
    %v872 = vpop.f32.mrf.mxu0
    %v873 = vadd.f32 0.0, %v872
    %v874 = vpop.f32.mrf.mxu0
    %v875 = vpop.f32.mrf.mxu0
    %v876 = vpop.f32.mrf.mxu0
    %877 = vdwg.mxu0
    %v878 = vadd.f32 %v830, %v873
    %s879 = scalar_lea.vmem [#allocation2], 32
    %v880 = vld [vmem:[%s879 + $0x4] sm:$0xf]
    %v881 = vunpack.c.l.bf16 %v880
    %v882 = vpack.c.bf16 %v827, %v827
    %884 = vrot.lane.b32.xlu0 %v882, 64
    %v885 = vpop.permute.xlu0 %884
    %v887 = vsel %vm379, %v885, 0
    %889 = vmatprep.subr.bf16.mxu0 0
    %890 = vmatpush1.bf16.msra.mxu0 0
    %891 = vmatprep.subr.bf16.mxu0 0
    %892 = vmatpush1.bf16.msra.mxu0 0
    %893 = vmatprep.subr.bf16.mxu0 0
    %894 = vmatpush1.bf16.msra.mxu0 0
    %895 = vmatprep.subr.bf16.mxu0 0
    %896 = vmatpush1.bf16.msra.mxu0 0
    %897 = vmatprep.subr.bf16.mxu0 0
    %898 = vmatpush1.bf16.msra.mxu0 0
    %899 = vmatprep.subr.bf16.mxu0 0
    %900 = vmatpush1.bf16.msra.mxu0 0
    %901 = vmatprep.subr.bf16.mxu0 0
    %902 = vmatpush1.bf16.msra.mxu0 %v436
    %903 = vmatprep.subr.bf16.mxu0 0
    %904 = vmatpush1.bf16.msra.mxu0 %v435
    %905 = vmatprep.subr.bf16.mxu0 0
    %906 = vmatpush2.bf16.msra.mxu0 0
    %907 = vmatprep.subr.bf16.mxu0 0
    %908 = vmatpush2.bf16.msra.mxu0 0
    %909 = vmatprep.subr.bf16.mxu0 0
    %910 = vmatpush2.bf16.msra.mxu0 0
    %911 = vmatprep.subr.bf16.mxu0 0
    %912 = vmatpush2.bf16.msra.mxu0 0
    %913 = vmatprep.subr.bf16.mxu0 0
    %914 = vmatpush2.bf16.msra.mxu0 0
    %915 = vmatprep.subr.bf16.mxu0 0
    %916 = vmatpush2.bf16.msra.mxu0 0
    %917 = vmatprep.subr.bf16.mxu0 0
    %918 = vmatpush2.bf16.msra.mxu0 0
    %919 = vmatprep.subr.bf16.mxu0 0
    %920 = vmatpush2.bf16.msra.mxu0 0
    %921 = vmatprep.mubr.bf16.mxu0 0
    %922 = vmatmul.mubr.bf16.gmra.mxu0 %v887
    %v923 = vpop.f32.mrf.mxu0
    %v924 = vadd.f32 0.0, %v923
    %v925 = vpop.f32.mrf.mxu0
    %v926 = vpop.f32.mrf.mxu0
    %v927 = vpop.f32.mrf.mxu0
    %928 = vdwg.mxu0
    %v929 = vadd.f32 %v881, %v924
    %v930 = vxor.u32 %v878, 2147483648
    %v931 = vmul.f32 %v930, 1.442695
    %v932 = vpow.pop %v931
    %v933 = vadd.f32 %v932, 1.0
    %v934 = vrcp.pop %v933
    %v935 = vmul.f32 1.0, %v934
    %v936 = vtanh.pop %v878
    %v937 = vmul.f32 %v935, %v797
    %939 = vrot.lane.b32.xlu0 %v936, 32
    %v940 = vpop.permute.xlu0 %939
    %v942 = vmul.f32 %v935, %v940
    %944 = vrot.lane.b32.xlu0 %v942, 32
    %v945 = vpop.permute.xlu0 %944
    %v947 = vadd.f32 %v937, %v945
    %v948 = vtanh.pop %v947
    %950 = vrot.lane.b32.xlu0 %v948, 32
    %v951 = vpop.permute.xlu0 %950
    %v953 = vmul.f32 %v935, %v951
    %v954 = vxor.u32 %v929, 2147483648
    %v955 = vmul.f32 %v954, 1.442695
    %v956 = vpow.pop %v955
    %v957 = vadd.f32 %v956, 1.0
    %v958 = vrcp.pop %v957
    %v959 = vmul.f32 1.0, %v958
    %v960 = vtanh.pop %v929
    %v961 = vmul.f32 %v959, %v821
    %963 = vrot.lane.b32.xlu0 %v960, 32
    %v964 = vpop.permute.xlu0 %963
    %v966 = vmul.f32 %v959, %v964
    %968 = vrot.lane.b32.xlu0 %v966, 32
    %v969 = vpop.permute.xlu0 %968
    %v971 = vadd.f32 %v961, %v969
    %v972 = vtanh.pop %v971
    %974 = vrot.lane.b32.xlu0 %v972, 32
    %v975 = vpop.permute.xlu0 %974
    %v977 = vmul.f32 %v959, %v975
    %v978 = vld [vmem:[%s879] sm:$0xf]
    %v979 = vunpack.c.l.bf16 %v978
    %v980 = vpack.c.bf16 %v953, %v953
    %982 = vrot.lane.b32.xlu0 %v980, 64
    %v983 = vpop.permute.xlu0 %982
    %v985 = vsel %vm379, %v983, 0
    %987 = vmatprep.subr.bf16.mxu0 0
    %988 = vmatpush1.bf16.msra.mxu0 0
    %989 = vmatprep.subr.bf16.mxu0 0
    %990 = vmatpush1.bf16.msra.mxu0 0
    %991 = vmatprep.subr.bf16.mxu0 0
    %992 = vmatpush1.bf16.msra.mxu0 0
    %993 = vmatprep.subr.bf16.mxu0 0
    %994 = vmatpush1.bf16.msra.mxu0 0
    %995 = vmatprep.subr.bf16.mxu0 0
    %996 = vmatpush1.bf16.msra.mxu0 0
    %997 = vmatprep.subr.bf16.mxu0 0
    %998 = vmatpush1.bf16.msra.mxu0 0
    %999 = vmatprep.subr.bf16.mxu0 0
    %1000 = vmatpush1.bf16.msra.mxu0 %v376
    %1001 = vmatprep.subr.bf16.mxu0 0
    %1002 = vmatpush1.bf16.msra.mxu0 %v375
    %1003 = vmatprep.subr.bf16.mxu0 0
    %1004 = vmatpush2.bf16.msra.mxu0 0
    %1005 = vmatprep.subr.bf16.mxu0 0
    %1006 = vmatpush2.bf16.msra.mxu0 0
    %1007 = vmatprep.subr.bf16.mxu0 0
    %1008 = vmatpush2.bf16.msra.mxu0 0
    %1009 = vmatprep.subr.bf16.mxu0 0
    %1010 = vmatpush2.bf16.msra.mxu0 0
    %1011 = vmatprep.subr.bf16.mxu0 0
    %1012 = vmatpush2.bf16.msra.mxu0 0
    %1013 = vmatprep.subr.bf16.mxu0 0
    %1014 = vmatpush2.bf16.msra.mxu0 0
    %1015 = vmatprep.subr.bf16.mxu0 0
    %1016 = vmatpush2.bf16.msra.mxu0 0
    %1017 = vmatprep.subr.bf16.mxu0 0
    %1018 = vmatpush2.bf16.msra.mxu0 0
    %1019 = vmatprep.mubr.bf16.mxu0 0
    %1020 = vmatmul.mubr.bf16.gmra.mxu0 %v985
    %v1021 = vpop.f32.mrf.mxu0
    %v1022 = vadd.f32 0.0, %v1021
    %v1023 = vpop.f32.mrf.mxu0
    %v1024 = vpop.f32.mrf.mxu0
    %v1025 = vpop.f32.mrf.mxu0
    %1026 = vdwg.mxu0
    %v1027 = vadd.f32 %v979, %v1022
    %v1028 = vld [vmem:[%s828 + $0x4] sm:$0xf]
    %v1029 = vunpack.c.l.bf16 %v1028
    %v1030 = vpack.c.bf16 %v977, %v977
    %1032 = vrot.lane.b32.xlu0 %v1030, 64
    %v1033 = vpop.permute.xlu0 %1032
    %v1035 = vsel %vm379, %v1033, 0
    %1037 = vmatprep.subr.bf16.mxu0 0
    %1038 = vmatpush1.bf16.msra.mxu0 0
    %1039 = vmatprep.subr.bf16.mxu0 0
    %1040 = vmatpush1.bf16.msra.mxu0 0
    %1041 = vmatprep.subr.bf16.mxu0 0
    %1042 = vmatpush1.bf16.msra.mxu0 0
    %1043 = vmatprep.subr.bf16.mxu0 0
    %1044 = vmatpush1.bf16.msra.mxu0 0
    %1045 = vmatprep.subr.bf16.mxu0 0
    %1046 = vmatpush1.bf16.msra.mxu0 0
    %1047 = vmatprep.subr.bf16.mxu0 0
    %1048 = vmatpush1.bf16.msra.mxu0 0
    %1049 = vmatprep.subr.bf16.mxu0 0
    %1050 = vmatpush1.bf16.msra.mxu0 %v436
    %1051 = vmatprep.subr.bf16.mxu0 0
    %1052 = vmatpush1.bf16.msra.mxu0 %v435
    %1053 = vmatprep.subr.bf16.mxu0 0
    %1054 = vmatpush2.bf16.msra.mxu0 0
    %1055 = vmatprep.subr.bf16.mxu0 0
    %1056 = vmatpush2.bf16.msra.mxu0 0
    %1057 = vmatprep.subr.bf16.mxu0 0
    %1058 = vmatpush2.bf16.msra.mxu0 0
    %1059 = vmatprep.subr.bf16.mxu0 0
    %1060 = vmatpush2.bf16.msra.mxu0 0
    %1061 = vmatprep.subr.bf16.mxu0 0
    %1062 = vmatpush2.bf16.msra.mxu0 0
    %1063 = vmatprep.subr.bf16.mxu0 0
    %1064 = vmatpush2.bf16.msra.mxu0 0
    %1065 = vmatprep.subr.bf16.mxu0 0
    %1066 = vmatpush2.bf16.msra.mxu0 0
    %1067 = vmatprep.subr.bf16.mxu0 0
    %1068 = vmatpush2.bf16.msra.mxu0 0
    %1069 = vmatprep.mubr.bf16.mxu0 0
    %1070 = vmatmul.mubr.bf16.gmra.mxu0 %v1035
    %v1071 = vpop.f32.mrf.mxu0
    %v1072 = vadd.f32 0.0, %v1071
    %v1073 = vpop.f32.mrf.mxu0
    %v1074 = vpop.f32.mrf.mxu0
    %v1075 = vpop.f32.mrf.mxu0
    %1076 = vdwg.mxu0
    %v1077 = vadd.f32 %v1029, %v1072
    %v1078 = vxor.u32 %v1027, 2147483648
    %v1079 = vmul.f32 %v1078, 1.442695
    %v1080 = vpow.pop %v1079
    %v1081 = vadd.f32 %v1080, 1.0
    %v1082 = vrcp.pop %v1081
    %v1083 = vmul.f32 1.0, %v1082
    %v1084 = vtanh.pop %v1027
    %v1085 = vmul.f32 %v1083, %v947
    %1087 = vrot.lane.b32.xlu0 %v1084, 32
    %v1088 = vpop.permute.xlu0 %1087
    %v1090 = vmul.f32 %v1083, %v1088
    %1092 = vrot.lane.b32.xlu0 %v1090, 32
    %v1093 = vpop.permute.xlu0 %1092
    %v1095 = vadd.f32 %v1085, %v1093
    %v1096 = vtanh.pop %v1095
    %1098 = vrot.lane.b32.xlu0 %v1096, 32
    %v1099 = vpop.permute.xlu0 %1098
    %v1101 = vmul.f32 %v1083, %v1099
    %v1102 = vxor.u32 %v1077, 2147483648
    %v1103 = vmul.f32 %v1102, 1.442695
    %v1104 = vpow.pop %v1103
    %v1105 = vadd.f32 %v1104, 1.0
    %v1106 = vrcp.pop %v1105
    %v1107 = vmul.f32 1.0, %v1106
    %v1108 = vtanh.pop %v1077
    %v1109 = vmul.f32 %v1107, %v971
    %1111 = vrot.lane.b32.xlu0 %v1108, 32
    %v1112 = vpop.permute.xlu0 %1111
    %v1114 = vmul.f32 %v1107, %v1112
    %1116 = vrot.lane.b32.xlu0 %v1114, 32
    %v1117 = vpop.permute.xlu0 %1116
    %v1119 = vadd.f32 %v1109, %v1117
    %v1120 = vtanh.pop %v1119
    %1122 = vrot.lane.b32.xlu0 %v1120, 32
    %v1123 = vpop.permute.xlu0 %1122
    %v1125 = vmul.f32 %v1107, %v1123
    %v1126 = vld [vmem:[%s729] sm:$0xf]
    %v1127 = vunpack.c.l.bf16 %v1126
    %v1128 = vpack.c.bf16 %v1101, %v1101
    %1130 = vrot.lane.b32.xlu0 %v1128, 64
    %v1131 = vpop.permute.xlu0 %1130
    %v1133 = vsel %vm379, %v1131, 0
    %1135 = vmatprep.subr.bf16.mxu0 0
    %1136 = vmatpush1.bf16.msra.mxu0 0
    %1137 = vmatprep.subr.bf16.mxu0 0
    %1138 = vmatpush1.bf16.msra.mxu0 0
    %1139 = vmatprep.subr.bf16.mxu0 0
    %1140 = vmatpush1.bf16.msra.mxu0 0
    %1141 = vmatprep.subr.bf16.mxu0 0
    %1142 = vmatpush1.bf16.msra.mxu0 0
    %1143 = vmatprep.subr.bf16.mxu0 0
    %1144 = vmatpush1.bf16.msra.mxu0 0
    %1145 = vmatprep.subr.bf16.mxu0 0
    %1146 = vmatpush1.bf16.msra.mxu0 0
    %1147 = vmatprep.subr.bf16.mxu0 0
    %1148 = vmatpush1.bf16.msra.mxu0 %v376
    %1149 = vmatprep.subr.bf16.mxu0 0
    %1150 = vmatpush1.bf16.msra.mxu0 %v375
    %1151 = vmatprep.subr.bf16.mxu0 0
    %1152 = vmatpush2.bf16.msra.mxu0 0
    %1153 = vmatprep.subr.bf16.mxu0 0
    %1154 = vmatpush2.bf16.msra.mxu0 0
    %1155 = vmatprep.subr.bf16.mxu0 0
    %1156 = vmatpush2.bf16.msra.mxu0 0
    %1157 = vmatprep.subr.bf16.mxu0 0
    %1158 = vmatpush2.bf16.msra.mxu0 0
    %1159 = vmatprep.subr.bf16.mxu0 0
    %1160 = vmatpush2.bf16.msra.mxu0 0
    %1161 = vmatprep.subr.bf16.mxu0 0
    %1162 = vmatpush2.bf16.msra.mxu0 0
    %1163 = vmatprep.subr.bf16.mxu0 0
    %1164 = vmatpush2.bf16.msra.mxu0 0
    %1165 = vmatprep.subr.bf16.mxu0 0
    %1166 = vmatpush2.bf16.msra.mxu0 0
    %1167 = vmatprep.mubr.bf16.mxu0 0
    %1168 = vmatmul.mubr.bf16.gmra.mxu0 %v1133
    %v1169 = vpop.f32.mrf.mxu0
    %v1170 = vadd.f32 0.0, %v1169
    %v1171 = vpop.f32.mrf.mxu0
    %v1172 = vpop.f32.mrf.mxu0
    %v1173 = vpop.f32.mrf.mxu0
    %1174 = vdwg.mxu0
    %v1175 = vadd.f32 %v1127, %v1170
    %v1176 = vld [vmem:[%s678 + $0x4] sm:$0xf]
    %v1177 = vunpack.c.l.bf16 %v1176
    %v1178 = vpack.c.bf16 %v1125, %v1125
    %1180 = vrot.lane.b32.xlu0 %v1178, 64
    %v1181 = vpop.permute.xlu0 %1180
    %v1183 = vsel %vm379, %v1181, 0
    %1185 = vmatprep.subr.bf16.mxu0 0
    %1186 = vmatpush1.bf16.msra.mxu0 0
    %1187 = vmatprep.subr.bf16.mxu0 0
    %1188 = vmatpush1.bf16.msra.mxu0 0
    %1189 = vmatprep.subr.bf16.mxu0 0
    %1190 = vmatpush1.bf16.msra.mxu0 0
    %1191 = vmatprep.subr.bf16.mxu0 0
    %1192 = vmatpush1.bf16.msra.mxu0 0
    %1193 = vmatprep.subr.bf16.mxu0 0
    %1194 = vmatpush1.bf16.msra.mxu0 0
    %1195 = vmatprep.subr.bf16.mxu0 0
    %1196 = vmatpush1.bf16.msra.mxu0 0
    %1197 = vmatprep.subr.bf16.mxu0 0
    %1198 = vmatpush1.bf16.msra.mxu0 %v436
    %1199 = vmatprep.subr.bf16.mxu0 0
    %1200 = vmatpush1.bf16.msra.mxu0 %v435
    %1201 = vmatprep.subr.bf16.mxu0 0
    %1202 = vmatpush2.bf16.msra.mxu0 0
    %1203 = vmatprep.subr.bf16.mxu0 0
    %1204 = vmatpush2.bf16.msra.mxu0 0
    %1205 = vmatprep.subr.bf16.mxu0 0
    %1206 = vmatpush2.bf16.msra.mxu0 0
    %1207 = vmatprep.subr.bf16.mxu0 0
    %1208 = vmatpush2.bf16.msra.mxu0 0
    %1209 = vmatprep.subr.bf16.mxu0 0
    %1210 = vmatpush2.bf16.msra.mxu0 0
    %1211 = vmatprep.subr.bf16.mxu0 0
    %1212 = vmatpush2.bf16.msra.mxu0 0
    %1213 = vmatprep.subr.bf16.mxu0 0
    %1214 = vmatpush2.bf16.msra.mxu0 0
    %1215 = vmatprep.subr.bf16.mxu0 0
    %1216 = vmatpush2.bf16.msra.mxu0 0
    %1217 = vmatprep.mubr.bf16.mxu0 0
    %1218 = vmatmul.mubr.bf16.gmra.mxu0 %v1183
    %v1219 = vpop.f32.mrf.mxu0
    %v1220 = vadd.f32 0.0, %v1219
    %v1221 = vpop.f32.mrf.mxu0
    %v1222 = vpop.f32.mrf.mxu0
    %v1223 = vpop.f32.mrf.mxu0
    %1224 = vdwg.mxu0
    %v1225 = vadd.f32 %v1177, %v1220
    %v1226 = vxor.u32 %v1175, 2147483648
    %v1227 = vmul.f32 %v1226, 1.442695
    %v1228 = vpow.pop %v1227
    %v1229 = vadd.f32 %v1228, 1.0
    %v1230 = vrcp.pop %v1229
    %v1231 = vmul.f32 1.0, %v1230
    %v1232 = vtanh.pop %v1175
    %v1233 = vmul.f32 %v1231, %v1095
    %1235 = vrot.lane.b32.xlu0 %v1232, 32
    %v1236 = vpop.permute.xlu0 %1235
    %v1238 = vmul.f32 %v1231, %v1236
    %1240 = vrot.lane.b32.xlu0 %v1238, 32
    %v1241 = vpop.permute.xlu0 %1240
    %v1243 = vadd.f32 %v1233, %v1241
    %v1244 = vtanh.pop %v1243
    %1246 = vrot.lane.b32.xlu0 %v1244, 32
    %v1247 = vpop.permute.xlu0 %1246
    %v1249 = vmul.f32 %v1231, %v1247
    %v1250 = vxor.u32 %v1225, 2147483648
    %v1251 = vmul.f32 %v1250, 1.442695
    %v1252 = vpow.pop %v1251
    %v1253 = vadd.f32 %v1252, 1.0
    %v1254 = vrcp.pop %v1253
    %v1255 = vmul.f32 1.0, %v1254
    %v1256 = vtanh.pop %v1225
    %v1257 = vmul.f32 %v1255, %v1119
    %1259 = vrot.lane.b32.xlu0 %v1256, 32
    %v1260 = vpop.permute.xlu0 %1259
    %v1262 = vmul.f32 %v1255, %v1260
    %1264 = vrot.lane.b32.xlu0 %v1262, 32
    %v1265 = vpop.permute.xlu0 %1264
    %v1267 = vadd.f32 %v1257, %v1265
    %v1268 = vtanh.pop %v1267
    %1270 = vrot.lane.b32.xlu0 %v1268, 32
    %v1271 = vpop.permute.xlu0 %1270
    %v1273 = vmul.f32 %v1255, %v1271
    %v1274 = vld [vmem:[%s579] sm:$0xf]
    %v1275 = vunpack.c.l.bf16 %v1274
    %v1276 = vpack.c.bf16 %v1249, %v1249
    %1278 = vrot.lane.b32.xlu0 %v1276, 64
    %v1279 = vpop.permute.xlu0 %1278
    %v1281 = vsel %vm379, %v1279, 0
    %1283 = vmatprep.subr.bf16.mxu0 0
    %1284 = vmatpush1.bf16.msra.mxu0 0
    %1285 = vmatprep.subr.bf16.mxu0 0
    %1286 = vmatpush1.bf16.msra.mxu0 0
    %1287 = vmatprep.subr.bf16.mxu0 0
    %1288 = vmatpush1.bf16.msra.mxu0 0
    %1289 = vmatprep.subr.bf16.mxu0 0
    %1290 = vmatpush1.bf16.msra.mxu0 0
    %1291 = vmatprep.subr.bf16.mxu0 0
    %1292 = vmatpush1.bf16.msra.mxu0 0
    %1293 = vmatprep.subr.bf16.mxu0 0
    %1294 = vmatpush1.bf16.msra.mxu0 0
    %1295 = vmatprep.subr.bf16.mxu0 0
    %1296 = vmatpush1.bf16.msra.mxu0 %v376
    %1297 = vmatprep.subr.bf16.mxu0 0
    %1298 = vmatpush1.bf16.msra.mxu0 %v375
    %1299 = vmatprep.subr.bf16.mxu0 0
    %1300 = vmatpush2.bf16.msra.mxu0 0
    %1301 = vmatprep.subr.bf16.mxu0 0
    %1302 = vmatpush2.bf16.msra.mxu0 0
    %1303 = vmatprep.subr.bf16.mxu0 0
    %1304 = vmatpush2.bf16.msra.mxu0 0
    %1305 = vmatprep.subr.bf16.mxu0 0
    %1306 = vmatpush2.bf16.msra.mxu0 0
    %1307 = vmatprep.subr.bf16.mxu0 0
    %1308 = vmatpush2.bf16.msra.mxu0 0
    %1309 = vmatprep.subr.bf16.mxu0 0
    %1310 = vmatpush2.bf16.msra.mxu0 0
    %1311 = vmatprep.subr.bf16.mxu0 0
    %1312 = vmatpush2.bf16.msra.mxu0 0
    %1313 = vmatprep.subr.bf16.mxu0 0
    %1314 = vmatpush2.bf16.msra.mxu0 0
    %1315 = vmatprep.mubr.bf16.mxu0 0
    %1316 = vmatmul.mubr.bf16.gmra.mxu0 %v1281
    %v1317 = vpop.f32.mrf.mxu0
    %v1318 = vadd.f32 0.0, %v1317
    %v1319 = vpop.f32.mrf.mxu0
    %v1320 = vpop.f32.mrf.mxu0
    %v1321 = vpop.f32.mrf.mxu0
    %1322 = vdwg.mxu0
    %v1323 = vadd.f32 %v1275, %v1318
    %v1324 = vld [vmem:[%s528 + $0x4] sm:$0xf]
    %v1325 = vunpack.c.l.bf16 %v1324
    %v1326 = vpack.c.bf16 %v1273, %v1273
    %1328 = vrot.lane.b32.xlu0 %v1326, 64
    %v1329 = vpop.permute.xlu0 %1328
    %v1331 = vsel %vm379, %v1329, 0
    %1333 = vmatprep.subr.bf16.mxu0 0
    %1334 = vmatpush1.bf16.msra.mxu0 0
    %1335 = vmatprep.subr.bf16.mxu0 0
    %1336 = vmatpush1.bf16.msra.mxu0 0
    %1337 = vmatprep.subr.bf16.mxu0 0
    %1338 = vmatpush1.bf16.msra.mxu0 0
    %1339 = vmatprep.subr.bf16.mxu0 0
    %1340 = vmatpush1.bf16.msra.mxu0 0
    %1341 = vmatprep.subr.bf16.mxu0 0
    %1342 = vmatpush1.bf16.msra.mxu0 0
    %1343 = vmatprep.subr.bf16.mxu0 0
    %1344 = vmatpush1.bf16.msra.mxu0 0
    %1345 = vmatprep.subr.bf16.mxu0 0
    %1346 = vmatpush1.bf16.msra.mxu0 %v436
    %1347 = vmatprep.subr.bf16.mxu0 0
    %1348 = vmatpush1.bf16.msra.mxu0 %v435
    %1349 = vmatprep.subr.bf16.mxu0 0
    %1350 = vmatpush2.bf16.msra.mxu0 0
    %1351 = vmatprep.subr.bf16.mxu0 0
    %1352 = vmatpush2.bf16.msra.mxu0 0
    %1353 = vmatprep.subr.bf16.mxu0 0
    %1354 = vmatpush2.bf16.msra.mxu0 0
    %1355 = vmatprep.subr.bf16.mxu0 0
    %1356 = vmatpush2.bf16.msra.mxu0 0
    %1357 = vmatprep.subr.bf16.mxu0 0
    %1358 = vmatpush2.bf16.msra.mxu0 0
    %1359 = vmatprep.subr.bf16.mxu0 0
    %1360 = vmatpush2.bf16.msra.mxu0 0
    %1361 = vmatprep.subr.bf16.mxu0 0
    %1362 = vmatpush2.bf16.msra.mxu0 0
    %1363 = vmatprep.subr.bf16.mxu0 0
    %1364 = vmatpush2.bf16.msra.mxu0 0
    %1365 = vmatprep.mubr.bf16.mxu0 0
    %1366 = vmatmul.mubr.bf16.gmra.mxu0 %v1331
    %v1367 = vpop.f32.mrf.mxu0
    %v1368 = vadd.f32 0.0, %v1367
    %v1369 = vpop.f32.mrf.mxu0
    %v1370 = vpop.f32.mrf.mxu0
    %v1371 = vpop.f32.mrf.mxu0
    %1372 = vdwg.mxu0
    %v1373 = vadd.f32 %v1325, %v1368
    %v1374 = vxor.u32 %v1323, 2147483648
    %v1375 = vmul.f32 %v1374, 1.442695
    %v1376 = vpow.pop %v1375
    %v1377 = vadd.f32 %v1376, 1.0
    %v1378 = vrcp.pop %v1377
    %v1379 = vmul.f32 1.0, %v1378
    %v1380 = vtanh.pop %v1323
    %v1381 = vmul.f32 %v1379, %v1243
    %1383 = vrot.lane.b32.xlu0 %v1380, 32
    %v1384 = vpop.permute.xlu0 %1383
    %v1386 = vmul.f32 %v1379, %v1384
    %1388 = vrot.lane.b32.xlu0 %v1386, 32
    %v1389 = vpop.permute.xlu0 %1388
    %v1391 = vadd.f32 %v1381, %v1389
    %v1392 = vtanh.pop %v1391
    %1394 = vrot.lane.b32.xlu0 %v1392, 32
    %v1395 = vpop.permute.xlu0 %1394
    %v1397 = vmul.f32 %v1379, %v1395
    %v1398 = vxor.u32 %v1373, 2147483648
    %v1399 = vmul.f32 %v1398, 1.442695
    %v1400 = vpow.pop %v1399
    %v1401 = vadd.f32 %v1400, 1.0
    %v1402 = vrcp.pop %v1401
    %v1403 = vmul.f32 1.0, %v1402
    %v1404 = vtanh.pop %v1373
    %v1405 = vmul.f32 %v1403, %v1267
    %1407 = vrot.lane.b32.xlu0 %v1404, 32
    %v1408 = vpop.permute.xlu0 %1407
    %v1410 = vmul.f32 %v1403, %v1408
    %1412 = vrot.lane.b32.xlu0 %v1410, 32
    %v1413 = vpop.permute.xlu0 %1412
    %v1415 = vadd.f32 %v1405, %v1413
    %v1416 = vtanh.pop %v1415
    %1418 = vrot.lane.b32.xlu0 %v1416, 32
    %v1419 = vpop.permute.xlu0 %1418
    %v1421 = vmul.f32 %v1403, %v1419
    %v1422 = vld [vmem:[%s424] sm:$0xf]
    %v1423 = vunpack.c.l.bf16 %v1422
    %v1424 = vpack.c.bf16 %v1397, %v1397
    %1426 = vrot.lane.b32.xlu0 %v1424, 64
    %v1427 = vpop.permute.xlu0 %1426
    %v1429 = vsel %vm379, %v1427, 0
    %1431 = vmatprep.subr.bf16.mxu0 0
    %1432 = vmatpush1.bf16.msra.mxu0 0
    %1433 = vmatprep.subr.bf16.mxu0 0
    %1434 = vmatpush1.bf16.msra.mxu0 0
    %1435 = vmatprep.subr.bf16.mxu0 0
    %1436 = vmatpush1.bf16.msra.mxu0 0
    %1437 = vmatprep.subr.bf16.mxu0 0
    %1438 = vmatpush1.bf16.msra.mxu0 0
    %1439 = vmatprep.subr.bf16.mxu0 0
    %1440 = vmatpush1.bf16.msra.mxu0 0
    %1441 = vmatprep.subr.bf16.mxu0 0
    %1442 = vmatpush1.bf16.msra.mxu0 0
    %1443 = vmatprep.subr.bf16.mxu0 0
    %1444 = vmatpush1.bf16.msra.mxu0 %v376
    %1445 = vmatprep.subr.bf16.mxu0 0
    %1446 = vmatpush1.bf16.msra.mxu0 %v375
    %1447 = vmatprep.subr.bf16.mxu0 0
    %1448 = vmatpush2.bf16.msra.mxu0 0
    %1449 = vmatprep.subr.bf16.mxu0 0
    %1450 = vmatpush2.bf16.msra.mxu0 0
    %1451 = vmatprep.subr.bf16.mxu0 0
    %1452 = vmatpush2.bf16.msra.mxu0 0
    %1453 = vmatprep.subr.bf16.mxu0 0
    %1454 = vmatpush2.bf16.msra.mxu0 0
    %1455 = vmatprep.subr.bf16.mxu0 0
    %1456 = vmatpush2.bf16.msra.mxu0 0
    %1457 = vmatprep.subr.bf16.mxu0 0
    %1458 = vmatpush2.bf16.msra.mxu0 0
    %1459 = vmatprep.subr.bf16.mxu0 0
    %1460 = vmatpush2.bf16.msra.mxu0 0
    %1461 = vmatprep.subr.bf16.mxu0 0
    %1462 = vmatpush2.bf16.msra.mxu0 0
    %1463 = vmatprep.mubr.bf16.mxu0 0
    %1464 = vmatmul.mubr.bf16.gmra.mxu0 %v1429
    %v1465 = vpop.f32.mrf.mxu0
    %v1466 = vadd.f32 0.0, %v1465
    %v1467 = vpop.f32.mrf.mxu0
    %v1468 = vpop.f32.mrf.mxu0
    %v1469 = vpop.f32.mrf.mxu0
    %1470 = vdwg.mxu0
    %v1471 = vadd.f32 %v1423, %v1466
    %v1472 = vld [vmem:[#allocation2 + $0x4] sm:$0xf]
    %v1473 = vunpack.c.l.bf16 %v1472
    %v1474 = vpack.c.bf16 %v1421, %v1421
    %1476 = vrot.lane.b32.xlu0 %v1474, 64
    %v1477 = vpop.permute.xlu0 %1476
    %v1479 = vsel %vm379, %v1477, 0
    %1481 = vmatprep.subr.bf16.mxu0 0
    %1482 = vmatpush1.bf16.msra.mxu0 0
    %1483 = vmatprep.subr.bf16.mxu0 0
    %1484 = vmatpush1.bf16.msra.mxu0 0
    %1485 = vmatprep.subr.bf16.mxu0 0
    %1486 = vmatpush1.bf16.msra.mxu0 0
    %1487 = vmatprep.subr.bf16.mxu0 0
    %1488 = vmatpush1.bf16.msra.mxu0 0
    %1489 = vmatprep.subr.bf16.mxu0 0
    %1490 = vmatpush1.bf16.msra.mxu0 0
    %1491 = vmatprep.subr.bf16.mxu0 0
    %1492 = vmatpush1.bf16.msra.mxu0 0
    %1493 = vmatprep.subr.bf16.mxu0 0
    %1494 = vmatpush1.bf16.msra.mxu0 %v436
    %1495 = vmatprep.subr.bf16.mxu0 0
    %1496 = vmatpush1.bf16.msra.mxu0 %v435
    %1497 = vmatprep.subr.bf16.mxu0 0
    %1498 = vmatpush2.bf16.msra.mxu0 0
    %1499 = vmatprep.subr.bf16.mxu0 0
    %1500 = vmatpush2.bf16.msra.mxu0 0
    %1501 = vmatprep.subr.bf16.mxu0 0
    %1502 = vmatpush2.bf16.msra.mxu0 0
    %1503 = vmatprep.subr.bf16.mxu0 0
    %1504 = vmatpush2.bf16.msra.mxu0 0
    %1505 = vmatprep.subr.bf16.mxu0 0
    %1506 = vmatpush2.bf16.msra.mxu0 0
    %1507 = vmatprep.subr.bf16.mxu0 0
    %1508 = vmatpush2.bf16.msra.mxu0 0
    %1509 = vmatprep.subr.bf16.mxu0 0
    %1510 = vmatpush2.bf16.msra.mxu0 0
    %1511 = vmatprep.subr.bf16.mxu0 0
    %1512 = vmatpush2.bf16.msra.mxu0 0
    %1513 = vmatprep.mubr.bf16.mxu0 0
    %1514 = vmatmul.mubr.bf16.gmra.mxu0 %v1479
    %v1515 = vpop.f32.mrf.mxu0
    %v1516 = vadd.f32 0.0, %v1515
    %v1517 = vpop.f32.mrf.mxu0
    %v1518 = vpop.f32.mrf.mxu0
    %v1519 = vpop.f32.mrf.mxu0
    %1520 = vdwg.mxu0
    %v1521 = vadd.f32 %v1473, %v1516
    %v1522 = vxor.u32 %v1471, 2147483648
    %v1523 = vmul.f32 %v1522, 1.442695
    %v1524 = vpow.pop %v1523
    %v1525 = vadd.f32 %v1524, 1.0
    %v1526 = vrcp.pop %v1525
    %v1527 = vmul.f32 1.0, %v1526
    %v1528 = vtanh.pop %v1471
    %v1529 = vmul.f32 %v1527, %v1391
    %1531 = vrot.lane.b32.xlu0 %v1528, 32
    %v1532 = vpop.permute.xlu0 %1531
    %v1534 = vmul.f32 %v1527, %v1532
    %1536 = vrot.lane.b32.xlu0 %v1534, 32
    %v1537 = vpop.permute.xlu0 %1536
    %v1539 = vadd.f32 %v1529, %v1537
    %v1540 = vtanh.pop %v1539
    %1542 = vrot.lane.b32.xlu0 %v1540, 32
    %v1543 = vpop.permute.xlu0 %1542
    %v1545 = vmul.f32 %v1527, %v1543
    %v1546 = vxor.u32 %v1521, 2147483648
    %v1547 = vmul.f32 %v1546, 1.442695
    %v1548 = vpow.pop %v1547
    %v1549 = vadd.f32 %v1548, 1.0
    %v1550 = vrcp.pop %v1549
    %v1551 = vmul.f32 1.0, %v1550
    %v1552 = vtanh.pop %v1521
    %v1553 = vmul.f32 %v1551, %v1415
    %1555 = vrot.lane.b32.xlu0 %v1552, 32
    %v1556 = vpop.permute.xlu0 %1555
    %v1558 = vmul.f32 %v1551, %v1556
    %1560 = vrot.lane.b32.xlu0 %v1558, 32
    %v1561 = vpop.permute.xlu0 %1560
    %v1563 = vadd.f32 %v1553, %v1561
    %v1564 = vtanh.pop %v1563
    %1566 = vrot.lane.b32.xlu0 %v1564, 32
    %v1567 = vpop.permute.xlu0 %1566
    %v1569 = vmul.f32 %v1551, %v1567
    %v1570 = vld [vmem:[%s5] sm:$0xff]
    %v1571 = vld [vmem:[%s5 + $0x8] sm:$0xff]
    %v1572 = vld [vmem:[%s5 + $0x10] sm:$0xff]
    %v1573 = vld [vmem:[%s5 + $0x18] sm:$0xff]
    %v1574 = vld [vmem:[%s5 + $0x20] sm:$0xff]
    %v1575 = vld [vmem:[%s5 + $0x28] sm:$0xff]
    %v1576 = vld [vmem:[%s5 + $0x30] sm:$0xff]
    %v1577 = vld [vmem:[%s5 + $0x38] sm:$0xff]
    %1579 = vrot.lane.b32.xlu0 %v1569, 64
    %v1580 = vpop.permute.xlu0 %1579
    %v1581 = vsel %vm379, %v1580, 0
    %1583 = vmatprep.subr.mxu0 0.0
    %1584 = vmatpush1.msra.mxu0 0.0
    %1585 = vmatprep.subr.mxu0 0.0
    %1586 = vmatpush1.msra.mxu0 0.0
    %1587 = vmatprep.subr.mxu0 0.0
    %1588 = vmatpush1.msra.mxu0 0.0
    %1589 = vmatprep.subr.mxu0 0.0
    %1590 = vmatpush1.msra.mxu0 0.0
    %1591 = vmatprep.subr.mxu0 0.0
    %1592 = vmatpush1.msra.mxu0 0.0
    %1593 = vmatprep.subr.mxu0 0.0
    %1594 = vmatpush1.msra.mxu0 0.0
    %1595 = vmatprep.subr.mxu0 0.0
    %1596 = vmatpush1.msra.mxu0 0.0
    %1597 = vmatprep.subr.mxu0 0.0
    %1598 = vmatpush1.msra.mxu0 0.0
    %1599 = vmatprep.subr.mxu0 0.0
    %1600 = vmatpush1.msra.mxu0 0.0
    %1601 = vmatprep.subr.mxu0 0.0
    %1602 = vmatpush1.msra.mxu0 0.0
    %1603 = vmatprep.subr.mxu0 0.0
    %1604 = vmatpush1.msra.mxu0 0.0
    %1605 = vmatprep.subr.mxu0 0.0
    %1606 = vmatpush1.msra.mxu0 0.0
    %1607 = vmatprep.subr.mxu0 0.0
    %1608 = vmatpush1.msra.mxu0 %v1577
    %1609 = vmatprep.subr.mxu0 0.0
    %1610 = vmatpush1.msra.mxu0 %v1576
    %1611 = vmatprep.subr.mxu0 0.0
    %1612 = vmatpush1.msra.mxu0 %v1575
    %1613 = vmatprep.subr.mxu0 0.0
    %1614 = vmatpush1.msra.mxu0 %v1574
    %1615 = vmatprep.subr.mxu0 0.0
    %1616 = vmatpush2.msra.mxu0 0.0
    %1617 = vmatprep.subr.mxu0 0.0
    %1618 = vmatpush2.msra.mxu0 0.0
    %1619 = vmatprep.subr.mxu0 0.0
    %1620 = vmatpush2.msra.mxu0 0.0
    %1621 = vmatprep.subr.mxu0 0.0
    %1622 = vmatpush2.msra.mxu0 0.0
    %1623 = vmatprep.subr.mxu0 0.0
    %1624 = vmatpush2.msra.mxu0 0.0
    %1625 = vmatprep.subr.mxu0 0.0
    %1626 = vmatpush2.msra.mxu0 0.0
    %1627 = vmatprep.subr.mxu0 0.0
    %1628 = vmatpush2.msra.mxu0 0.0
    %1629 = vmatprep.subr.mxu0 0.0
    %1630 = vmatpush2.msra.mxu0 0.0
    %1631 = vmatprep.subr.mxu0 0.0
    %1632 = vmatpush2.msra.mxu0 0.0
    %1633 = vmatprep.subr.mxu0 0.0
    %1634 = vmatpush2.msra.mxu0 0.0
    %1635 = vmatprep.subr.mxu0 0.0
    %1636 = vmatpush2.msra.mxu0 0.0
    %1637 = vmatprep.subr.mxu0 0.0
    %1638 = vmatpush2.msra.mxu0 0.0
    %1639 = vmatprep.subr.mxu0 0.0
    %1640 = vmatpush2.msra.mxu0 0.0
    %1641 = vmatprep.subr.mxu0 0.0
    %1642 = vmatpush2.msra.mxu0 0.0
    %1643 = vmatprep.subr.mxu0 0.0
    %1644 = vmatpush2.msra.mxu0 0.0
    %1645 = vmatprep.subr.mxu0 0.0
    %1646 = vmatpush2.msra.mxu0 0.0
    %1647 = vmatprep.mubr.f32.mxu0 0.0
    %1648 = vmatmul.mubr.f32.gmra.mxu0 %v1581
    %v1649 = vpop.f32.mrf.mxu0
    %v1650 = vadd.f32 0.0, %v1649
    %v1651 = vpop.f32.mrf.mxu0
    %1652 = vdwg.mxu0
    %1654 = vrot.lane.b32.xlu0 %v1545, 64
    %v1655 = vpop.permute.xlu0 %1654
    %v1656 = vsel %vm379, %v1655, 0
    %1658 = vmatprep.subr.mxu0 0.0
    %1659 = vmatpush1.msra.mxu0 0.0
    %1660 = vmatprep.subr.mxu0 0.0
    %1661 = vmatpush1.msra.mxu0 0.0
    %1662 = vmatprep.subr.mxu0 0.0
    %1663 = vmatpush1.msra.mxu0 0.0
    %1664 = vmatprep.subr.mxu0 0.0
    %1665 = vmatpush1.msra.mxu0 0.0
    %1666 = vmatprep.subr.mxu0 0.0
    %1667 = vmatpush1.msra.mxu0 0.0
    %1668 = vmatprep.subr.mxu0 0.0
    %1669 = vmatpush1.msra.mxu0 0.0
    %1670 = vmatprep.subr.mxu0 0.0
    %1671 = vmatpush1.msra.mxu0 0.0
    %1672 = vmatprep.subr.mxu0 0.0
    %1673 = vmatpush1.msra.mxu0 0.0
    %1674 = vmatprep.subr.mxu0 0.0
    %1675 = vmatpush1.msra.mxu0 0.0
    %1676 = vmatprep.subr.mxu0 0.0
    %1677 = vmatpush1.msra.mxu0 0.0
    %1678 = vmatprep.subr.mxu0 0.0
    %1679 = vmatpush1.msra.mxu0 0.0
    %1680 = vmatprep.subr.mxu0 0.0
    %1681 = vmatpush1.msra.mxu0 0.0
    %1682 = vmatprep.subr.mxu0 0.0
    %1683 = vmatpush1.msra.mxu0 %v1573
    %1684 = vmatprep.subr.mxu0 0.0
    %1685 = vmatpush1.msra.mxu0 %v1572
    %1686 = vmatprep.subr.mxu0 0.0
    %1687 = vmatpush1.msra.mxu0 %v1571
    %1688 = vmatprep.subr.mxu0 0.0
    %1689 = vmatpush1.msra.mxu0 %v1570
    %1690 = vmatprep.subr.mxu0 0.0
    %1691 = vmatpush2.msra.mxu0 0.0
    %1692 = vmatprep.subr.mxu0 0.0
    %1693 = vmatpush2.msra.mxu0 0.0
    %1694 = vmatprep.subr.mxu0 0.0
    %1695 = vmatpush2.msra.mxu0 0.0
    %1696 = vmatprep.subr.mxu0 0.0
    %1697 = vmatpush2.msra.mxu0 0.0
    %1698 = vmatprep.subr.mxu0 0.0
    %1699 = vmatpush2.msra.mxu0 0.0
    %1700 = vmatprep.subr.mxu0 0.0
    %1701 = vmatpush2.msra.mxu0 0.0
    %1702 = vmatprep.subr.mxu0 0.0
    %1703 = vmatpush2.msra.mxu0 0.0
    %1704 = vmatprep.subr.mxu0 0.0
    %1705 = vmatpush2.msra.mxu0 0.0
    %1706 = vmatprep.subr.mxu0 0.0
    %1707 = vmatpush2.msra.mxu0 0.0
    %1708 = vmatprep.subr.mxu0 0.0
    %1709 = vmatpush2.msra.mxu0 0.0
    %1710 = vmatprep.subr.mxu0 0.0
    %1711 = vmatpush2.msra.mxu0 0.0
    %1712 = vmatprep.subr.mxu0 0.0
    %1713 = vmatpush2.msra.mxu0 0.0
    %1714 = vmatprep.subr.mxu0 0.0
    %1715 = vmatpush2.msra.mxu0 0.0
    %1716 = vmatprep.subr.mxu0 0.0
    %1717 = vmatpush2.msra.mxu0 0.0
    %1718 = vmatprep.subr.mxu0 0.0
    %1719 = vmatpush2.msra.mxu0 0.0
    %1720 = vmatprep.subr.mxu0 0.0
    %1721 = vmatpush2.msra.mxu0 0.0
    %1722 = vmatprep.mubr.f32.mxu0 0.0
    %1723 = vmatmul.mubr.f32.gmra.mxu0 %v1656
    %v1724 = vpop.f32.mrf.mxu0
    %v1725 = vadd.f32 %v1650, %v1724
    %v1726 = vpop.f32.mrf.mxu0
    %1727 = vdwg.mxu0
    %v1728 = vld [vmem:[#allocation10] sm:$0x1]
    %v1730 = vlaneseq
    %v1731 = vshrl.u32 %v1730, 7
    %v1732 = vsub.s32 0, %v1731
    %v1733 = vrot.slane %v1728, %v1732
    %v1735 = vadd.f32 %v1725, %v1733
    %v1736 = vmax.f32 %v1735, 0.0
    %v1737 = vld [vmem:[%s7] sm:$0xff]
    %v1738 = vld [vmem:[%s7 + $0x8] sm:$0xff]
    %v1739 = vld [vmem:[#allocation11] sm:$0x1]
    %v1741 = vlaneseq
    %v1742 = vshrl.u32 %v1741, 7
    %v1743 = vsub.s32 0, %v1742
    %v1744 = vrot.slane %v1739, %v1743
    %vm1746 = vcmask 130048
    %v1748 = vsel %vm1746, %v1736, 0
    %1750 = vmatprep.subr.mxu0 0.0
    %1751 = vmatpush1.msra.mxu0 0.0
    %1752 = vmatprep.subr.mxu0 0.0
    %1753 = vmatpush1.msra.mxu0 0.0
    %1754 = vmatprep.subr.mxu0 0.0
    %1755 = vmatpush1.msra.mxu0 0.0
    %1756 = vmatprep.subr.mxu0 0.0
    %1757 = vmatpush1.msra.mxu0 0.0
    %1758 = vmatprep.subr.mxu0 0.0
    %1759 = vmatpush1.msra.mxu0 0.0
    %1760 = vmatprep.subr.mxu0 0.0
    %1761 = vmatpush1.msra.mxu0 0.0
    %1762 = vmatprep.subr.mxu0 0.0
    %1763 = vmatpush1.msra.mxu0 0.0
    %1764 = vmatprep.subr.mxu0 0.0
    %1765 = vmatpush1.msra.mxu0 0.0
    %1766 = vmatprep.subr.mxu0 0.0
    %1767 = vmatpush1.msra.mxu0 0.0
    %1768 = vmatprep.subr.mxu0 0.0
    %1769 = vmatpush1.msra.mxu0 0.0
    %1770 = vmatprep.subr.mxu0 0.0
    %1771 = vmatpush1.msra.mxu0 0.0
    %1772 = vmatprep.subr.mxu0 0.0
    %1773 = vmatpush1.msra.mxu0 0.0
    %1774 = vmatprep.subr.mxu0 0.0
    %1775 = vmatpush1.msra.mxu0 0.0
    %1776 = vmatprep.subr.mxu0 0.0
    %1777 = vmatpush1.msra.mxu0 0.0
    %1778 = vmatprep.subr.mxu0 0.0
    %1779 = vmatpush1.msra.mxu0 %v1738
    %1780 = vmatprep.subr.mxu0 0.0
    %1781 = vmatpush1.msra.mxu0 %v1737
    %1782 = vmatprep.subr.mxu0 0.0
    %1783 = vmatpush2.msra.mxu0 0.0
    %1784 = vmatprep.subr.mxu0 0.0
    %1785 = vmatpush2.msra.mxu0 0.0
    %1786 = vmatprep.subr.mxu0 0.0
    %1787 = vmatpush2.msra.mxu0 0.0
    %1788 = vmatprep.subr.mxu0 0.0
    %1789 = vmatpush2.msra.mxu0 0.0
    %1790 = vmatprep.subr.mxu0 0.0
    %1791 = vmatpush2.msra.mxu0 0.0
    %1792 = vmatprep.subr.mxu0 0.0
    %1793 = vmatpush2.msra.mxu0 0.0
    %1794 = vmatprep.subr.mxu0 0.0
    %1795 = vmatpush2.msra.mxu0 0.0
    %1796 = vmatprep.subr.mxu0 0.0
    %1797 = vmatpush2.msra.mxu0 0.0
    %1798 = vmatprep.subr.mxu0 0.0
    %1799 = vmatpush2.msra.mxu0 0.0
    %1800 = vmatprep.subr.mxu0 0.0
    %1801 = vmatpush2.msra.mxu0 0.0
    %1802 = vmatprep.subr.mxu0 0.0
    %1803 = vmatpush2.msra.mxu0 0.0
    %1804 = vmatprep.subr.mxu0 0.0
    %1805 = vmatpush2.msra.mxu0 0.0
    %1806 = vmatprep.subr.mxu0 0.0
    %1807 = vmatpush2.msra.mxu0 0.0
    %1808 = vmatprep.subr.mxu0 0.0
    %1809 = vmatpush2.msra.mxu0 0.0
    %1810 = vmatprep.subr.mxu0 0.0
    %1811 = vmatpush2.msra.mxu0 0.0
    %1812 = vmatprep.subr.mxu0 0.0
    %1813 = vmatpush2.msra.mxu0 0.0
    %1814 = vmatprep.mubr.f32.mxu0 0.0
    %1815 = vmatmul.mubr.f32.gmra.mxu0 %v1748
    %v1816 = vpop.f32.mrf.mxu0
    %v1817 = vadd.f32 %v1744, %v1816
    %v1818 = vpop.f32.mrf.mxu0
    %1819 = vdwg.mxu0
    %vm1820 = vcmask 31744
    %v1821 = vsel %vm1820, %v1817, -inf
    %1822 = vmax.xlane.f32.xlu0 %v1821
    %v1823 = vpop.xlane.xlu0 %1822
    %v1824 = vsub.f32 %v1817, %v1823
    %v1825 = vmul.f32 %v1824, 1.442695
    %v1826 = vpow.pop %v1825
    %v1827 = vsel %vm1820, %v1826, 0.0
    %1828 = vadd.xlane.f32.xlu0 %v1827
    %v1829 = vpop.xlane.xlu0 %1828
    %v1830 = vlog2.pop %v1829
    %v1831 = vmul.f32 %v1830, 0.6931472
    %v1832 = vadd.f32 %v1831, %v1823
    %v1833 = vsub.f32 %v1817, %v1832
    %1834 = vst.msk [vmem:[%s9] sm:$0xff] %vm1820, %v1833
    %1835 = vst.msk [vmem:[%s10] sm:$0xff] %vm1820, %v1817
    // Predicated region
    $region62: #{bilstm_classifier_forward.3} parent=1 // pred_check
      _
    $region63: #{bilstm_classifier_forward.3} parent=1 // pred_check_branch
      %1837 = sbr.rel (0) target = $region65
    $region64: #{bilstm_classifier_forward.3} parent=1 // pred_region
      _
    $region65: #{bilstm_classifier_forward.3} parent=1 // pred_fallthru
      _
    // Predicated region
    $region66: #{bilstm_classifier_forward.3} parent=1 // pred_check
      _
    $region67: #{bilstm_classifier_forward.3} parent=1 // pred_check_branch
      %1839 = sbr.rel (0) target = $region69
    $region68: #{bilstm_classifier_forward.3} parent=1 // pred_region
      _
    $region69: #{bilstm_classifier_forward.3} parent=1 // pred_fallthru
      _
    // Predicated region
    $region70: #{bilstm_classifier_forward.3} parent=1 // pred_check
      _
    $region71: #{bilstm_classifier_forward.3} parent=1 // pred_check_branch
      %1841 = sbr.rel (0) target = $region73
    $region72: #{bilstm_classifier_forward.3} parent=1 // pred_region
      _
    $region73: #{bilstm_classifier_forward.3} parent=1 // pred_fallthru
      _
    // Predicated region
    $region74: #{bilstm_classifier_forward.3} parent=1 // pred_check
      _
    $region75: #{bilstm_classifier_forward.3} parent=1 // pred_check_branch
      %1843 = sbr.rel (0) target = $region77
    $region76: #{bilstm_classifier_forward.3} parent=1 // pred_region
      _
    $region77: #{bilstm_classifier_forward.3} parent=1 // pred_fallthru
      _
    %1844 = vsyncpa [#allocation4], 1
    %1845 = vsyncpa [#allocation6], 1
    %1846 = vsyncpa [#allocation9], 1
    %1847 = vsyncpa [#allocation12], 1

</llo_original>
